<compile_context>
chip_gen: v7x
topology: tpu7x:2x2x1
jax: 0.10.0
libtpu: 0.0.40
codegen_flags: <defaults>
</compile_context>

<pallas_src>
import jax
import jax.numpy as jnp
from jax.experimental import pallas as pl
from jax.experimental.pallas import tpu as pltpu

# ----- small hyperparameters consistent with the module's structure -----
VOCAB_SIZE = 65          # len(chars) for a tiny char vocab
N_EMBED = 32
NUM_HEADS = 4
HEAD_SIZE = N_EMBED // NUM_HEADS
BLOCK_SIZE = 16
NUM_LAYERS = 2
EPS = 1e-5               # nn.LayerNorm default eps

LANES = 128              # every slab row is lane-dense
VOCAB_PAD = 128          # padded vocab rows for the one-hot embedding matmul
LOGITS_PAD = 128         # lane-dense padded logits width

# ---- f32 vector-slab layout: one 128-lane row per (1,*) parameter ----
POS_OFF = 0                                   # BLOCK_SIZE rows: position table
VEC_LAYER_OFF = BLOCK_SIZE
VEC_PER_LAYER = 8                             # 7 used rows + 1 pad (8-aligned)
LN1W, LN1B, LN2W, LN2B, BPROJ, B1, B2 = range(7)
VEC_FINAL_OFF = VEC_LAYER_OFF + NUM_LAYERS * VEC_PER_LAYER    # lnfw, lnfb, blm
VEC_ROWS = ((VEC_FINAL_OFF + 3 + 7) // 8) * 8

# ---- bf16 weight-slab layout: every matrix row-major, 128 lanes wide ----
TOK_OFF = 0                                   # VOCAB_PAD rows, cols [:C] = tok table
W_LAYER_OFF = VOCAB_PAD
WQKV_OFF, WPROJ_OFF, W1_OFF, W2_OFF = 0, N_EMBED, 2 * N_EMBED, 3 * N_EMBED
W_PER_LAYER = 7 * N_EMBED                     # wqkv(C) + wproj(C) + w1(C) + w2(4C)
W_LM_OFF = W_LAYER_OFF + NUM_LAYERS * W_PER_LAYER             # C rows, cols [:V]
W_ROWS = W_LM_OFF + N_EMBED                   # multiple of 16 (bf16 sublane tile)


def _layernorm(x, w, b):
    # fused statistics: two independent reductions instead of mean->center->mean
    mu = jnp.mean(x, axis=-1, keepdims=True)
    m2 = jnp.mean(x * x, axis=-1, keepdims=True)
    var = m2 - mu * mu
    return (x - mu) * jax.lax.rsqrt(var + EPS) * w + b


# ---------------------------------------------------------------------------
# Fused Pallas kernel: embedding + all blocks + final LN + lm_head
# ---------------------------------------------------------------------------
def fused_transformer_kernel(idx_ref, vec_ref, w_ref, out_ref):
    C, H, D = N_EMBED, NUM_HEADS, HEAD_SIZE
    ids = idx_ref[...]                                       # (T, 1) int32
    T = ids.shape[0]

    # ---- token embedding: one-hot @ padded table (bf16 MXU, f32 acc) ----
    vocab_iota = jax.lax.broadcasted_iota(jnp.int32, (T, VOCAB_PAD), 1)
    onehot = jnp.where(vocab_iota == ids, 1.0, 0.0).astype(jnp.bfloat16)
    tok_tab = w_ref[TOK_OFF:TOK_OFF + VOCAB_PAD, :]          # (128, 128) bf16
    x = jnp.dot(onehot, tok_tab, preferred_element_type=jnp.float32)[:, :C]
    x = x + vec_ref[POS_OFF:POS_OFF + T, :C]                 # (T, C) f32

    # ---- causal additive bias generated in-kernel (no DMA'd dense mask) ----
    row = jax.lax.broadcasted_iota(jnp.int32, (T, T), 0)
    col = jax.lax.broadcasted_iota(jnp.int32, (T, T), 1)
    bias = jnp.where(col <= row, 0.0, -1e30)                 # diag always unmasked
    scale = HEAD_SIZE ** -0.5

    for l in range(NUM_LAYERS):
        v0 = VEC_LAYER_OFF + l * VEC_PER_LAYER
        w0 = W_LAYER_OFF + l * W_PER_LAYER

        # ---- multi-head causal self-attention on ln1(x) ----
        ln1w = vec_ref[v0 + LN1W:v0 + LN1W + 1, :C]
        ln1b = vec_ref[v0 + LN1B:v0 + LN1B + 1, :C]
        xl = _layernorm(x, ln1w, ln1b).astype(jnp.bfloat16)
        qkv = jnp.dot(xl, w_ref[w0 + WQKV_OFF:w0 + WQKV_OFF + C, :],
                      preferred_element_type=jnp.float32)    # (T,128)=[q|k|v|0]

        # per-head scores stacked along sublanes -> ONE batched softmax
        scores = []
        for h in range(H):
            q = qkv[:, h * D:(h + 1) * D].astype(jnp.bfloat16)
            k = qkv[:, C + h * D:C + (h + 1) * D].astype(jnp.bfloat16)
            s = jax.lax.dot_general(q, k, (((1,), (1,)), ((), ())),
                                    preferred_element_type=jnp.float32)
            scores.append(s * scale + bias)
        s_all = jnp.concatenate(scores, axis=0)              # (H*T, T)
        p_all = jnp.exp(s_all - jnp.max(s_all, axis=-1, keepdims=True))
        rinv = pl.reciprocal(jnp.sum(p_all, axis=-1, keepdims=True),
                             approx=True)                    # (H*T, 1)
        p_all = p_all.astype(jnp.bfloat16)

        # heads accumulated straight through wproj row-blocks (no lane concat)
        wproj = w_ref[w0 + WPROJ_OFF:w0 + WPROJ_OFF + C, :]  # (C, 128) bf16
        sa = None
        for h in range(H):
            v = qkv[:, 2 * C + h * D:2 * C + (h + 1) * D].astype(jnp.bfloat16)
            o = jnp.dot(p_all[h * T:(h + 1) * T, :], v,
                        preferred_element_type=jnp.float32)  # (T, D)
            o = (o * rinv[h * T:(h + 1) * T, :]).astype(jnp.bfloat16)
            c = jnp.dot(o, wproj[h * D:(h + 1) * D, :],
                        preferred_element_type=jnp.float32)  # (T, 128), cols>=C zero
            sa = c if sa is None else sa + c
        bproj = vec_ref[v0 + BPROJ:v0 + BPROJ + 1, :C]
        x = x + sa[:, :C] + bproj                            # residual

        # ---- feed-forward on ln2(x) ----
        ln2w = vec_ref[v0 + LN2W:v0 + LN2W + 1, :C]
        ln2b = vec_ref[v0 + LN2B:v0 + LN2B + 1, :C]
        b1 = vec_ref[v0 + B1:v0 + B1 + 1, :]                 # (1, 128) = 4C
        b2 = vec_ref[v0 + B2:v0 + B2 + 1, :C]
        xl2 = _layernorm(x, ln2w, ln2b).astype(jnp.bfloat16)
        h1 = jnp.dot(xl2, w_ref[w0 + W1_OFF:w0 + W1_OFF + C, :],
                     preferred_element_type=jnp.float32) + b1
        h1 = jnp.maximum(h1, 0.0).astype(jnp.bfloat16)       # (T, 128)
        ff = jnp.dot(h1, w_ref[w0 + W2_OFF:w0 + W2_OFF + 4 * C, :],
                     preferred_element_type=jnp.float32)     # cols>=C zero
        x = x + ff[:, :C] + b2                               # residual

    # ---- final LayerNorm + lm_head (128-lane-dense padded logits) ----
    lnfw = vec_ref[VEC_FINAL_OFF + 0:VEC_FINAL_OFF + 1, :C]
    lnfb = vec_ref[VEC_FINAL_OFF + 1:VEC_FINAL_OFF + 2, :C]
    blm = vec_ref[VEC_FINAL_OFF + 2:VEC_FINAL_OFF + 3, :]
    xf = _layernorm(x, lnfw, lnfb).astype(jnp.bfloat16)
    logits = jnp.dot(xf, w_ref[W_LM_OFF:W_LM_OFF + C, :],
                     preferred_element_type=jnp.float32) + blm
    out_ref[...] = logits.astype(out_ref.dtype)


# ---------------------------------------------------------------------------
# One-time parameter packing (hoisted out of the per-call path)
# ---------------------------------------------------------------------------
def pack_params(tok_emb_table, pos_emb_table, blocks, final):
    C = N_EMBED
    vec = jnp.zeros((VEC_ROWS, LANES), jnp.float32)
    vec = vec.at[POS_OFF:POS_OFF + BLOCK_SIZE, :C].set(pos_emb_table)

    w = jnp.zeros((W_ROWS, LANES), jnp.float32)
    w = w.at[TOK_OFF:TOK_OFF + VOCAB_SIZE, :C].set(tok_emb_table)

    for l, blk in enumerate(blocks):
        (ln1w, ln1b, wq, wk, wv, wproj, bproj,
         ln2w, ln2b, w1, b1, w2, b2) = blk
        r = VEC_LAYER_OFF + l * VEC_PER_LAYER
        vec = vec.at[r + LN1W, :C].set(ln1w[0])
        vec = vec.at[r + LN1B, :C].set(ln1b[0])
        vec = vec.at[r + LN2W, :C].set(ln2w[0])
        vec = vec.at[r + LN2B, :C].set(ln2b[0])
        vec = vec.at[r + BPROJ, :C].set(bproj[0])
        vec = vec.at[r + B1, :4 * C].set(b1[0])
        vec = vec.at[r + B2, :C].set(b2[0])

        s = W_LAYER_OFF + l * W_PER_LAYER
        w = w.at[s + WQKV_OFF:s + WQKV_OFF + C, 0:C].set(wq)        # fused W_qkv
        w = w.at[s + WQKV_OFF:s + WQKV_OFF + C, C:2 * C].set(wk)
        w = w.at[s + WQKV_OFF:s + WQKV_OFF + C, 2 * C:3 * C].set(wv)
        w = w.at[s + WPROJ_OFF:s + WPROJ_OFF + C, :C].set(wproj)
        w = w.at[s + W1_OFF:s + W1_OFF + C, :4 * C].set(w1)
        w = w.at[s + W2_OFF:s + W2_OFF + 4 * C, :C].set(w2)

    lnfw, lnfb, wlm, blm = final
    r = VEC_FINAL_OFF
    vec = vec.at[r + 0, :C].set(lnfw[0])
    vec = vec.at[r + 1, :C].set(lnfb[0])
    vec = vec.at[r + 2, :VOCAB_SIZE].set(blm[0])
    w = w.at[W_LM_OFF:W_LM_OFF + C, :VOCAB_SIZE].set(wlm)

    return vec, w.astype(jnp.bfloat16)


# ---------------------------------------------------------------------------
# Wrapper: one pallas_call for the whole forward pass (3 operands)
# ---------------------------------------------------------------------------
@jax.jit
def transformer_forward(idx, vec_slab, w_slab):
    B, T = idx.shape
    idx_flat = idx.reshape(B * T, 1).astype(jnp.int32)

    logits_pad = pl.pallas_call(
        fused_transformer_kernel,
        out_shape=jax.ShapeDtypeStruct((B * T, LOGITS_PAD), jnp.float32),
        grid=(B,),
        in_specs=[
            pl.BlockSpec((T, 1), lambda b: (b, 0)),                 # per-seq ids
            pl.BlockSpec((VEC_ROWS, LANES), lambda b: (0, 0)),      # vec slab (resident)
            pl.BlockSpec((W_ROWS, LANES), lambda b: (0, 0)),        # weight slab (resident)
        ],
        out_specs=pl.BlockSpec((T, LOGITS_PAD), lambda b: (b, 0)),
        compiler_params=pltpu.CompilerParams(
            dimension_semantics=("parallel",)),                     # 2 TCs on v7x
    )(idx_flat, vec_slab, w_slab)

    # slice padded lanes back to the real vocab and restore (B, T, V)
    return logits_pad[:, :VOCAB_SIZE].reshape(B, T, VOCAB_SIZE)
    # TODO(synk): cross-entropy loss branch (targets != None) and generate()'s
    # multinomial sampling are not kernelized; this is the targets=None path.


# ---------------------------------------------------------------------------
# Parameter construction (deterministic, synthetic)
# ---------------------------------------------------------------------------
def init_params(key):
    def nrm(k, shape, scale=0.02):
        return (scale * jax.random.normal(k, shape)).astype(jnp.float32)

    keys = jax.random.split(key, 4 + NUM_LAYERS)
    tok_emb = nrm(keys[0], (VOCAB_SIZE, N_EMBED))
    pos_emb = nrm(keys[1], (BLOCK_SIZE, N_EMBED))

    blocks = []
    for l in range(NUM_LAYERS):
        bk = jax.random.split(keys[4 + l], 8)
        block = [
            jnp.ones((1, N_EMBED), jnp.float32),            # ln1 weight
            jnp.zeros((1, N_EMBED), jnp.float32),           # ln1 bias
            nrm(bk[0], (N_EMBED, N_EMBED)),                 # Wq (x @ Wq)
            nrm(bk[1], (N_EMBED, N_EMBED)),                 # Wk
            nrm(bk[2], (N_EMBED, N_EMBED)),                 # Wv
            nrm(bk[3], (N_EMBED, N_EMBED)),                 # proj weight
            nrm(bk[4], (1, N_EMBED)),                       # proj bias
            jnp.ones((1, N_EMBED), jnp.float32),            # ln2 weight
            jnp.zeros((1, N_EMBED), jnp.float32),           # ln2 bias
            nrm(bk[5], (N_EMBED, 4 * N_EMBED)),             # ffn W1
            nrm(bk[6], (1, 4 * N_EMBED)),                   # ffn b1
            nrm(bk[7], (4 * N_EMBED, N_EMBED)),             # ffn W2
            jnp.zeros((1, N_EMBED), jnp.float32),           # ffn b2
        ]
        blocks.append(block)

    final = [
        jnp.ones((1, N_EMBED), jnp.float32),                # ln_f weight
        jnp.zeros((1, N_EMBED), jnp.float32),               # ln_f bias
        nrm(keys[2], (N_EMBED, VOCAB_SIZE)),                # lm_head weight
        nrm(keys[3], (1, VOCAB_SIZE)),                      # lm_head bias
    ]
    return tok_emb, pos_emb, blocks, final


# ---------------------------------------------------------------------------
# Pure-JAX f32 reference (for a correctness sanity check)
# ---------------------------------------------------------------------------
def reference_forward(idx, tok_emb_table, pos_emb_table, blocks, final):
    B, T = idx.shape
    x = jnp.take(tok_emb_table, idx, axis=0) + pos_emb_table[:T][None]
    mask = jnp.tril(jnp.ones((T, T), bool))
    for (ln1w, ln1b, wq, wk, wv, wproj, bproj,
         ln2w, ln2b, w1, b1, w2, b2) in blocks:
        xl = _layernorm(x, ln1w[0], ln1b[0])
        outs = []
        for h in range(NUM_HEADS):
            s = h * HEAD_SIZE
            q = xl @ wq[:, s:s + HEAD_SIZE]
            k = xl @ wk[:, s:s + HEAD_SIZE]
            v = xl @ wv[:, s:s + HEAD_SIZE]
            att = jnp.einsum('btd,bsd->bts', q, k) * (HEAD_SIZE ** -0.5)
            att = jnp.where(mask[None], att, -jnp.inf)
            att = jax.nn.softmax(att, axis=-1)
            outs.append(jnp.einsum('bts,bsd->btd', att, v))
        x = x + jnp.concatenate(outs, -1) @ wproj + bproj[0]
        xl2 = _layernorm(x, ln2w[0], ln2b[0])
        x = x + jnp.maximum(xl2 @ w1 + b1[0], 0.0) @ w2 + b2[0]
    lnfw, lnfb, wlm, blm = final
    x = _layernorm(x, lnfw[0], lnfb[0])
    return x @ wlm + blm[0]


if __name__ == "__main__":
    key = jax.random.PRNGKey(0)
    pkey, ikey = jax.random.split(key)
    tok_emb_table, pos_emb_table, blocks, final = init_params(pkey)

    # one-time packing of all parameters into two lane-dense slabs
    vec_slab, w_slab = pack_params(tok_emb_table, pos_emb_table, blocks, final)

    B, T = 2, 8   # throughput note: larger B*T per call fills the MXU better
    idx = jax.random.randint(ikey, (B, T), 0, VOCAB_SIZE, dtype=jnp.int32)

    logits = transformer_forward(idx, vec_slab, w_slab)
    logits = jax.block_until_ready(logits)

    ref = reference_forward(idx, tok_emb_table, pos_emb_table, blocks, final)
    assert logits.shape == (B, T, VOCAB_SIZE)
    # bf16 matmul operands (f32 accumulation) + approx reciprocal -> slightly
    # looser tolerance than the pure-f32 reference.
    assert jnp.allclose(logits, ref, rtol=2e-2, atol=2e-2), "mismatch vs reference"

    print("KERNEL_OK")
</pallas_src>

<mosaic_0001>
module attributes {stable_mosaic.version = 11 : i64} {
  func.func @fused_transformer_kernel(%arg0: i32, %arg1: memref<8x1xi32, #tpu.memory_space<vmem>>, %arg2: memref<40x128xf32, #tpu.memory_space<vmem>>, %arg3: memref<608x128xbf16, #tpu.memory_space<vmem>>, %arg4: memref<8x128xf32, #tpu.memory_space<vmem>>) attributes {dimension_semantics = [#tpu.dimension_semantics<parallel>], iteration_bounds = array<i64: 2>, scalar_prefetch = 0 : i64, scratch_operands = 0 : i64, tpu.core_type = #tpu.core_type<tc>, window_params = [{transform_indices = @transform_0, window_bounds = array<i64: 8, 1>}, {pipeline_mode = #tpu.pipeline_mode<synchronous>, transform_indices = @transform_1, window_bounds = array<i64: 40, 128>}, {pipeline_mode = #tpu.pipeline_mode<synchronous>, transform_indices = @transform_2, window_bounds = array<i64: 608, 128>}, {transform_indices = @transform_3, window_bounds = array<i64: 8, 128>}]} {
    %c0 = arith.constant 0 : index
    %c0_0 = arith.constant 0 : index
    %0 = vector.load %arg1[%c0, %c0_0] : memref<8x1xi32, #tpu.memory_space<vmem>>, vector<8x1xi32>
    %1 = tpu.iota {dimensions = array<i32: 1>} : vector<8x128xi32>
    %2 = vector.broadcast %0 : vector<8x1xi32> to vector<8x128xi32>
    %3 = arith.cmpi eq, %1, %2 : vector<8x128xi32>
    %cst = arith.constant 1.000000e+00 : f32
    %cst_1 = arith.constant 0.000000e+00 : f32
    %4 = vector.broadcast %cst : f32 to vector<8x128xf32>
    %5 = vector.broadcast %cst_1 : f32 to vector<8x128xf32>
    %6 = arith.select %3, %4, %5 : vector<8x128xi1>, vector<8x128xf32>
    %7 = arith.truncf %6 : vector<8x128xf32> to vector<8x128xbf16>
    %c0_2 = arith.constant 0 : index
    %c0_3 = arith.constant 0 : index
    %8 = vector.load %arg3[%c0_2, %c0_3] : memref<608x128xbf16, #tpu.memory_space<vmem>>, vector<128x128xbf16>
    %cst_4 = arith.constant dense<0.000000e+00> : vector<8x128xf32>
    %9 = tpu.matmul %7, %8, %cst_4 {dimension_numbers = #tpu.dot_dimension_numbers<[1], [0], [0], [1], [0, 0, 1, 1], [], []>} : vector<8x128xbf16>, vector<128x128xbf16>, vector<8x128xf32> -> vector<8x128xf32>
    %10 = vector.extract_strided_slice %9 {offsets = [0, 0], sizes = [8, 32], strides = [1, 1]} : vector<8x128xf32> to vector<8x32xf32>
    %c0_5 = arith.constant 0 : index
    %c0_6 = arith.constant 0 : index
    %11 = vector.load %arg2[%c0_5, %c0_6] : memref<40x128xf32, #tpu.memory_space<vmem>>, vector<8x32xf32>
    %12 = arith.addf %10, %11 : vector<8x32xf32>
    %13 = tpu.iota {dimensions = array<i32: 0>} : vector<8x8xi32>
    %14 = tpu.iota {dimensions = array<i32: 1>} : vector<8x8xi32>
    %15 = arith.cmpi sle, %14, %13 : vector<8x8xi32>
    %cst_7 = arith.constant 0.000000e+00 : f32
    %cst_8 = arith.constant -1.000000e+30 : f32
    %16 = vector.broadcast %cst_7 : f32 to vector<8x8xf32>
    %17 = vector.broadcast %cst_8 : f32 to vector<8x8xf32>
    %18 = arith.select %15, %16, %17 : vector<8x8xi1>, vector<8x8xf32>
    %c16 = arith.constant 16 : index
    %c0_9 = arith.constant 0 : index
    %19 = vector.load %arg2[%c16, %c0_9] : memref<40x128xf32, #tpu.memory_space<vmem>>, vector<1x32xf32>
    %c17 = arith.constant 17 : index
    %c0_10 = arith.constant 0 : index
    %20 = vector.load %arg2[%c17, %c0_10] : memref<40x128xf32, #tpu.memory_space<vmem>>, vector<1x32xf32>
    %cst_11 = arith.constant dense<0.000000e+00> : vector<8xf32>
    %21 = vector.multi_reduction <add>, %12, %cst_11 [1] : vector<8x32xf32> to vector<8xf32>
    %22 = vector.shape_cast %21 : vector<8xf32> to vector<8x1xf32>
    %cst_12 = arith.constant 3.200000e+01 : f32
    %23 = vector.broadcast %cst_12 : f32 to vector<8x1xf32>
    %24 = arith.divf %22, %23 : vector<8x1xf32>
    %25 = arith.mulf %12, %12 : vector<8x32xf32>
    %cst_13 = arith.constant dense<0.000000e+00> : vector<8xf32>
    %26 = vector.multi_reduction <add>, %25, %cst_13 [1] : vector<8x32xf32> to vector<8xf32>
    %27 = vector.shape_cast %26 : vector<8xf32> to vector<8x1xf32>
    %cst_14 = arith.constant 3.200000e+01 : f32
    %28 = vector.broadcast %cst_14 : f32 to vector<8x1xf32>
    %29 = arith.divf %27, %28 : vector<8x1xf32>
    %30 = arith.mulf %24, %24 : vector<8x1xf32>
    %31 = arith.subf %29, %30 : vector<8x1xf32>
    %32 = vector.broadcast %24 : vector<8x1xf32> to vector<8x32xf32>
    %33 = arith.subf %12, %32 : vector<8x32xf32>
    %cst_15 = arith.constant 9.99999974E-6 : f32
    %34 = vector.broadcast %cst_15 : f32 to vector<8x1xf32>
    %35 = arith.addf %31, %34 : vector<8x1xf32>
    %36 = math.rsqrt %35 : vector<8x1xf32>
    %37 = vector.broadcast %36 : vector<8x1xf32> to vector<8x32xf32>
    %38 = arith.mulf %33, %37 : vector<8x32xf32>
    %39 = vector.broadcast %19 : vector<1x32xf32> to vector<8x32xf32>
    %40 = arith.mulf %38, %39 : vector<8x32xf32>
    %41 = vector.broadcast %20 : vector<1x32xf32> to vector<8x32xf32>
    %42 = arith.addf %40, %41 : vector<8x32xf32>
    %43 = arith.truncf %42 : vector<8x32xf32> to vector<8x32xbf16>
    %c128 = arith.constant 128 : index
    %c0_16 = arith.constant 0 : index
    %44 = vector.load %arg3[%c128, %c0_16] : memref<608x128xbf16, #tpu.memory_space<vmem>>, vector<32x128xbf16>
    %cst_17 = arith.constant dense<0.000000e+00> : vector<8x128xf32>
    %45 = tpu.matmul %43, %44, %cst_17 {dimension_numbers = #tpu.dot_dimension_numbers<[1], [0], [0], [1], [0, 0, 1, 1], [], []>} : vector<8x32xbf16>, vector<32x128xbf16>, vector<8x128xf32> -> vector<8x128xf32>
    %46 = vector.extract_strided_slice %45 {offsets = [0, 0], sizes = [8, 8], strides = [1, 1]} : vector<8x128xf32> to vector<8x8xf32>
    %47 = arith.truncf %46 : vector<8x8xf32> to vector<8x8xbf16>
    %48 = vector.extract_strided_slice %45 {offsets = [0, 32], sizes = [8, 8], strides = [1, 1]} : vector<8x128xf32> to vector<8x8xf32>
    %49 = arith.truncf %48 : vector<8x8xf32> to vector<8x8xbf16>
    %cst_18 = arith.constant dense<0.000000e+00> : vector<8x8xf32>
    %50 = tpu.matmul %47, %49, %cst_18 {dimension_numbers = #tpu.dot_dimension_numbers<[1], [1], [0], [0], [0, 0, 1, 0], [], []>} : vector<8x8xbf16>, vector<8x8xbf16>, vector<8x8xf32> -> vector<8x8xf32>
    %cst_19 = arith.constant 0.353553385 : f32
    %51 = vector.broadcast %cst_19 : f32 to vector<8x8xf32>
    %52 = arith.mulf %50, %51 : vector<8x8xf32>
    %53 = arith.addf %52, %18 : vector<8x8xf32>
    %54 = vector.extract_strided_slice %45 {offsets = [0, 8], sizes = [8, 8], strides = [1, 1]} : vector<8x128xf32> to vector<8x8xf32>
    %55 = arith.truncf %54 : vector<8x8xf32> to vector<8x8xbf16>
    %56 = vector.extract_strided_slice %45 {offsets = [0, 40], sizes = [8, 8], strides = [1, 1]} : vector<8x128xf32> to vector<8x8xf32>
    %57 = arith.truncf %56 : vector<8x8xf32> to vector<8x8xbf16>
    %cst_20 = arith.constant dense<0.000000e+00> : vector<8x8xf32>
    %58 = tpu.matmul %55, %57, %cst_20 {dimension_numbers = #tpu.dot_dimension_numbers<[1], [1], [0], [0], [0, 0, 1, 0], [], []>} : vector<8x8xbf16>, vector<8x8xbf16>, vector<8x8xf32> -> vector<8x8xf32>
    %cst_21 = arith.constant 0.353553385 : f32
    %59 = vector.broadcast %cst_21 : f32 to vector<8x8xf32>
    %60 = arith.mulf %58, %59 : vector<8x8xf32>
    %61 = arith.addf %60, %18 : vector<8x8xf32>
    %62 = vector.extract_strided_slice %45 {offsets = [0, 16], sizes = [8, 8], strides = [1, 1]} : vector<8x128xf32> to vector<8x8xf32>
    %63 = arith.truncf %62 : vector<8x8xf32> to vector<8x8xbf16>
    %64 = vector.extract_strided_slice %45 {offsets = [0, 48], sizes = [8, 8], strides = [1, 1]} : vector<8x128xf32> to vector<8x8xf32>
    %65 = arith.truncf %64 : vector<8x8xf32> to vector<8x8xbf16>
    %cst_22 = arith.constant dense<0.000000e+00> : vector<8x8xf32>
    %66 = tpu.matmul %63, %65, %cst_22 {dimension_numbers = #tpu.dot_dimension_numbers<[1], [1], [0], [0], [0, 0, 1, 0], [], []>} : vector<8x8xbf16>, vector<8x8xbf16>, vector<8x8xf32> -> vector<8x8xf32>
    %cst_23 = arith.constant 0.353553385 : f32
    %67 = vector.broadcast %cst_23 : f32 to vector<8x8xf32>
    %68 = arith.mulf %66, %67 : vector<8x8xf32>
    %69 = arith.addf %68, %18 : vector<8x8xf32>
    %70 = vector.extract_strided_slice %45 {offsets = [0, 24], sizes = [8, 8], strides = [1, 1]} : vector<8x128xf32> to vector<8x8xf32>
    %71 = arith.truncf %70 : vector<8x8xf32> to vector<8x8xbf16>
    %72 = vector.extract_strided_slice %45 {offsets = [0, 56], sizes = [8, 8], strides = [1, 1]} : vector<8x128xf32> to vector<8x8xf32>
    %73 = arith.truncf %72 : vector<8x8xf32> to vector<8x8xbf16>
    %cst_24 = arith.constant dense<0.000000e+00> : vector<8x8xf32>
    %74 = tpu.matmul %71, %73, %cst_24 {dimension_numbers = #tpu.dot_dimension_numbers<[1], [1], [0], [0], [0, 0, 1, 0], [], []>} : vector<8x8xbf16>, vector<8x8xbf16>, vector<8x8xf32> -> vector<8x8xf32>
    %cst_25 = arith.constant 0.353553385 : f32
    %75 = vector.broadcast %cst_25 : f32 to vector<8x8xf32>
    %76 = arith.mulf %74, %75 : vector<8x8xf32>
    %77 = arith.addf %76, %18 : vector<8x8xf32>
    %78 = tpu.concatenate %53, %61, %69, %77 in 0 : vector<8x8xf32>, vector<8x8xf32>, vector<8x8xf32>, vector<8x8xf32> -> vector<32x8xf32>
    %cst_26 = arith.constant dense<0xFF800000> : vector<32xf32>
    %79 = vector.multi_reduction <maximumf>, %78, %cst_26 [1] : vector<32x8xf32> to vector<32xf32>
    %80 = vector.shape_cast %79 : vector<32xf32> to vector<32x1xf32>
    %81 = vector.broadcast %80 : vector<32x1xf32> to vector<32x8xf32>
    %82 = arith.subf %78, %81 : vector<32x8xf32>
    %83 = math.exp %82 : vector<32x8xf32>
    %cst_27 = arith.constant dense<0.000000e+00> : vector<32xf32>
    %84 = vector.multi_reduction <add>, %83, %cst_27 [1] : vector<32x8xf32> to vector<32xf32>
    %85 = vector.shape_cast %84 : vector<32xf32> to vector<32x1xf32>
    %86 = tpu.reciprocal %85 {approx = true} : vector<32x1xf32> -> vector<32x1xf32>
    %87 = arith.truncf %83 : vector<32x8xf32> to vector<32x8xbf16>
    %c160 = arith.constant 160 : index
    %c0_28 = arith.constant 0 : index
    %88 = vector.load %arg3[%c160, %c0_28] : memref<608x128xbf16, #tpu.memory_space<vmem>>, vector<32x128xbf16>
    %89 = vector.extract_strided_slice %45 {offsets = [0, 64], sizes = [8, 8], strides = [1, 1]} : vector<8x128xf32> to vector<8x8xf32>
    %90 = arith.truncf %89 : vector<8x8xf32> to vector<8x8xbf16>
    %91 = vector.extract_strided_slice %87 {offsets = [0, 0], sizes = [8, 8], strides = [1, 1]} : vector<32x8xbf16> to vector<8x8xbf16>
    %cst_29 = arith.constant dense<0.000000e+00> : vector<8x8xf32>
    %92 = tpu.matmul %91, %90, %cst_29 {dimension_numbers = #tpu.dot_dimension_numbers<[1], [0], [0], [1], [0, 0, 1, 1], [], []>} : vector<8x8xbf16>, vector<8x8xbf16>, vector<8x8xf32> -> vector<8x8xf32>
    %93 = vector.extract_strided_slice %86 {offsets = [0, 0], sizes = [8, 1], strides = [1, 1]} : vector<32x1xf32> to vector<8x1xf32>
    %94 = vector.broadcast %93 : vector<8x1xf32> to vector<8x8xf32>
    %95 = arith.mulf %92, %94 : vector<8x8xf32>
    %96 = arith.truncf %95 : vector<8x8xf32> to vector<8x8xbf16>
    %97 = vector.extract_strided_slice %88 {offsets = [0, 0], sizes = [8, 128], strides = [1, 1]} : vector<32x128xbf16> to vector<8x128xbf16>
    %cst_30 = arith.constant dense<0.000000e+00> : vector<8x128xf32>
    %98 = tpu.matmul %96, %97, %cst_30 {dimension_numbers = #tpu.dot_dimension_numbers<[1], [0], [0], [1], [0, 0, 1, 1], [], []>} : vector<8x8xbf16>, vector<8x128xbf16>, vector<8x128xf32> -> vector<8x128xf32>
    %99 = vector.extract_strided_slice %45 {offsets = [0, 72], sizes = [8, 8], strides = [1, 1]} : vector<8x128xf32> to vector<8x8xf32>
    %100 = arith.truncf %99 : vector<8x8xf32> to vector<8x8xbf16>
    %101 = vector.extract_strided_slice %87 {offsets = [8, 0], sizes = [8, 8], strides = [1, 1]} : vector<32x8xbf16> to vector<8x8xbf16>
    %cst_31 = arith.constant dense<0.000000e+00> : vector<8x8xf32>
    %102 = tpu.matmul %101, %100, %cst_31 {dimension_numbers = #tpu.dot_dimension_numbers<[1], [0], [0], [1], [0, 0, 1, 1], [], []>} : vector<8x8xbf16>, vector<8x8xbf16>, vector<8x8xf32> -> vector<8x8xf32>
    %103 = vector.extract_strided_slice %86 {offsets = [8, 0], sizes = [8, 1], strides = [1, 1]} : vector<32x1xf32> to vector<8x1xf32>
    %104 = vector.broadcast %103 : vector<8x1xf32> to vector<8x8xf32>
    %105 = arith.mulf %102, %104 : vector<8x8xf32>
    %106 = arith.truncf %105 : vector<8x8xf32> to vector<8x8xbf16>
    %107 = vector.extract_strided_slice %88 {offsets = [8, 0], sizes = [8, 128], strides = [1, 1]} : vector<32x128xbf16> to vector<8x128xbf16>
    %cst_32 = arith.constant dense<0.000000e+00> : vector<8x128xf32>
    %108 = tpu.matmul %106, %107, %cst_32 {dimension_numbers = #tpu.dot_dimension_numbers<[1], [0], [0], [1], [0, 0, 1, 1], [], []>} : vector<8x8xbf16>, vector<8x128xbf16>, vector<8x128xf32> -> vector<8x128xf32>
    %109 = arith.addf %98, %108 : vector<8x128xf32>
    %110 = vector.extract_strided_slice %45 {offsets = [0, 80], sizes = [8, 8], strides = [1, 1]} : vector<8x128xf32> to vector<8x8xf32>
    %111 = arith.truncf %110 : vector<8x8xf32> to vector<8x8xbf16>
    %112 = vector.extract_strided_slice %87 {offsets = [16, 0], sizes = [8, 8], strides = [1, 1]} : vector<32x8xbf16> to vector<8x8xbf16>
    %cst_33 = arith.constant dense<0.000000e+00> : vector<8x8xf32>
    %113 = tpu.matmul %112, %111, %cst_33 {dimension_numbers = #tpu.dot_dimension_numbers<[1], [0], [0], [1], [0, 0, 1, 1], [], []>} : vector<8x8xbf16>, vector<8x8xbf16>, vector<8x8xf32> -> vector<8x8xf32>
    %114 = vector.extract_strided_slice %86 {offsets = [16, 0], sizes = [8, 1], strides = [1, 1]} : vector<32x1xf32> to vector<8x1xf32>
    %115 = vector.broadcast %114 : vector<8x1xf32> to vector<8x8xf32>
    %116 = arith.mulf %113, %115 : vector<8x8xf32>
    %117 = arith.truncf %116 : vector<8x8xf32> to vector<8x8xbf16>
    %118 = vector.extract_strided_slice %88 {offsets = [16, 0], sizes = [8, 128], strides = [1, 1]} : vector<32x128xbf16> to vector<8x128xbf16>
    %cst_34 = arith.constant dense<0.000000e+00> : vector<8x128xf32>
    %119 = tpu.matmul %117, %118, %cst_34 {dimension_numbers = #tpu.dot_dimension_numbers<[1], [0], [0], [1], [0, 0, 1, 1], [], []>} : vector<8x8xbf16>, vector<8x128xbf16>, vector<8x128xf32> -> vector<8x128xf32>
    %120 = arith.addf %109, %119 : vector<8x128xf32>
    %121 = vector.extract_strided_slice %45 {offsets = [0, 88], sizes = [8, 8], strides = [1, 1]} : vector<8x128xf32> to vector<8x8xf32>
    %122 = arith.truncf %121 : vector<8x8xf32> to vector<8x8xbf16>
    %123 = vector.extract_strided_slice %87 {offsets = [24, 0], sizes = [8, 8], strides = [1, 1]} : vector<32x8xbf16> to vector<8x8xbf16>
    %cst_35 = arith.constant dense<0.000000e+00> : vector<8x8xf32>
    %124 = tpu.matmul %123, %122, %cst_35 {dimension_numbers = #tpu.dot_dimension_numbers<[1], [0], [0], [1], [0, 0, 1, 1], [], []>} : vector<8x8xbf16>, vector<8x8xbf16>, vector<8x8xf32> -> vector<8x8xf32>
    %125 = vector.extract_strided_slice %86 {offsets = [24, 0], sizes = [8, 1], strides = [1, 1]} : vector<32x1xf32> to vector<8x1xf32>
    %126 = vector.broadcast %125 : vector<8x1xf32> to vector<8x8xf32>
    %127 = arith.mulf %124, %126 : vector<8x8xf32>
    %128 = arith.truncf %127 : vector<8x8xf32> to vector<8x8xbf16>
    %129 = vector.extract_strided_slice %88 {offsets = [24, 0], sizes = [8, 128], strides = [1, 1]} : vector<32x128xbf16> to vector<8x128xbf16>
    %cst_36 = arith.constant dense<0.000000e+00> : vector<8x128xf32>
    %130 = tpu.matmul %128, %129, %cst_36 {dimension_numbers = #tpu.dot_dimension_numbers<[1], [0], [0], [1], [0, 0, 1, 1], [], []>} : vector<8x8xbf16>, vector<8x128xbf16>, vector<8x128xf32> -> vector<8x128xf32>
    %131 = arith.addf %120, %130 : vector<8x128xf32>
    %c20 = arith.constant 20 : index
    %c0_37 = arith.constant 0 : index
    %132 = vector.load %arg2[%c20, %c0_37] : memref<40x128xf32, #tpu.memory_space<vmem>>, vector<1x32xf32>
    %133 = vector.extract_strided_slice %131 {offsets = [0, 0], sizes = [8, 32], strides = [1, 1]} : vector<8x128xf32> to vector<8x32xf32>
    %134 = arith.addf %12, %133 : vector<8x32xf32>
    %135 = vector.broadcast %132 : vector<1x32xf32> to vector<8x32xf32>
    %136 = arith.addf %134, %135 : vector<8x32xf32>
    %c18 = arith.constant 18 : index
    %c0_38 = arith.constant 0 : index
    %137 = vector.load %arg2[%c18, %c0_38] : memref<40x128xf32, #tpu.memory_space<vmem>>, vector<1x32xf32>
    %c19 = arith.constant 19 : index
    %c0_39 = arith.constant 0 : index
    %138 = vector.load %arg2[%c19, %c0_39] : memref<40x128xf32, #tpu.memory_space<vmem>>, vector<1x32xf32>
    %c21 = arith.constant 21 : index
    %c0_40 = arith.constant 0 : index
    %139 = vector.load %arg2[%c21, %c0_40] : memref<40x128xf32, #tpu.memory_space<vmem>>, vector<1x128xf32>
    %c22 = arith.constant 22 : index
    %c0_41 = arith.constant 0 : index
    %140 = vector.load %arg2[%c22, %c0_41] : memref<40x128xf32, #tpu.memory_space<vmem>>, vector<1x32xf32>
    %cst_42 = arith.constant dense<0.000000e+00> : vector<8xf32>
    %141 = vector.multi_reduction <add>, %136, %cst_42 [1] : vector<8x32xf32> to vector<8xf32>
    %142 = vector.shape_cast %141 : vector<8xf32> to vector<8x1xf32>
    %cst_43 = arith.constant 3.200000e+01 : f32
    %143 = vector.broadcast %cst_43 : f32 to vector<8x1xf32>
    %144 = arith.divf %142, %143 : vector<8x1xf32>
    %145 = arith.mulf %136, %136 : vector<8x32xf32>
    %cst_44 = arith.constant dense<0.000000e+00> : vector<8xf32>
    %146 = vector.multi_reduction <add>, %145, %cst_44 [1] : vector<8x32xf32> to vector<8xf32>
    %147 = vector.shape_cast %146 : vector<8xf32> to vector<8x1xf32>
    %cst_45 = arith.constant 3.200000e+01 : f32
    %148 = vector.broadcast %cst_45 : f32 to vector<8x1xf32>
    %149 = arith.divf %147, %148 : vector<8x1xf32>
    %150 = arith.mulf %144, %144 : vector<8x1xf32>
    %151 = arith.subf %149, %150 : vector<8x1xf32>
    %152 = vector.broadcast %144 : vector<8x1xf32> to vector<8x32xf32>
    %153 = arith.subf %136, %152 : vector<8x32xf32>
    %cst_46 = arith.constant 9.99999974E-6 : f32
    %154 = vector.broadcast %cst_46 : f32 to vector<8x1xf32>
    %155 = arith.addf %151, %154 : vector<8x1xf32>
    %156 = math.rsqrt %155 : vector<8x1xf32>
    %157 = vector.broadcast %156 : vector<8x1xf32> to vector<8x32xf32>
    %158 = arith.mulf %153, %157 : vector<8x32xf32>
    %159 = vector.broadcast %137 : vector<1x32xf32> to vector<8x32xf32>
    %160 = arith.mulf %158, %159 : vector<8x32xf32>
    %161 = vector.broadcast %138 : vector<1x32xf32> to vector<8x32xf32>
    %162 = arith.addf %160, %161 : vector<8x32xf32>
    %163 = arith.truncf %162 : vector<8x32xf32> to vector<8x32xbf16>
    %c192 = arith.constant 192 : index
    %c0_47 = arith.constant 0 : index
    %164 = vector.load %arg3[%c192, %c0_47] : memref<608x128xbf16, #tpu.memory_space<vmem>>, vector<32x128xbf16>
    %cst_48 = arith.constant dense<0.000000e+00> : vector<8x128xf32>
    %165 = tpu.matmul %163, %164, %cst_48 {dimension_numbers = #tpu.dot_dimension_numbers<[1], [0], [0], [1], [0, 0, 1, 1], [], []>} : vector<8x32xbf16>, vector<32x128xbf16>, vector<8x128xf32> -> vector<8x128xf32>
    %166 = vector.broadcast %139 : vector<1x128xf32> to vector<8x128xf32>
    %167 = arith.addf %165, %166 : vector<8x128xf32>
    %cst_49 = arith.constant 0.000000e+00 : f32
    %168 = vector.broadcast %cst_49 : f32 to vector<8x128xf32>
    %169 = arith.maximumf %167, %168 : vector<8x128xf32>
    %170 = arith.truncf %169 : vector<8x128xf32> to vector<8x128xbf16>
    %c224 = arith.constant 224 : index
    %c0_50 = arith.constant 0 : index
    %171 = vector.load %arg3[%c224, %c0_50] : memref<608x128xbf16, #tpu.memory_space<vmem>>, vector<128x128xbf16>
    %cst_51 = arith.constant dense<0.000000e+00> : vector<8x128xf32>
    %172 = tpu.matmul %170, %171, %cst_51 {dimension_numbers = #tpu.dot_dimension_numbers<[1], [0], [0], [1], [0, 0, 1, 1], [], []>} : vector<8x128xbf16>, vector<128x128xbf16>, vector<8x128xf32> -> vector<8x128xf32>
    %173 = vector.extract_strided_slice %172 {offsets = [0, 0], sizes = [8, 32], strides = [1, 1]} : vector<8x128xf32> to vector<8x32xf32>
    %174 = arith.addf %136, %173 : vector<8x32xf32>
    %175 = vector.broadcast %140 : vector<1x32xf32> to vector<8x32xf32>
    %176 = arith.addf %174, %175 : vector<8x32xf32>
    %c24 = arith.constant 24 : index
    %c0_52 = arith.constant 0 : index
    %177 = vector.load %arg2[%c24, %c0_52] : memref<40x128xf32, #tpu.memory_space<vmem>>, vector<1x32xf32>
    %c25 = arith.constant 25 : index
    %c0_53 = arith.constant 0 : index
    %178 = vector.load %arg2[%c25, %c0_53] : memref<40x128xf32, #tpu.memory_space<vmem>>, vector<1x32xf32>
    %cst_54 = arith.constant dense<0.000000e+00> : vector<8xf32>
    %179 = vector.multi_reduction <add>, %176, %cst_54 [1] : vector<8x32xf32> to vector<8xf32>
    %180 = vector.shape_cast %179 : vector<8xf32> to vector<8x1xf32>
    %cst_55 = arith.constant 3.200000e+01 : f32
    %181 = vector.broadcast %cst_55 : f32 to vector<8x1xf32>
    %182 = arith.divf %180, %181 : vector<8x1xf32>
    %183 = arith.mulf %176, %176 : vector<8x32xf32>
    %cst_56 = arith.constant dense<0.000000e+00> : vector<8xf32>
    %184 = vector.multi_reduction <add>, %183, %cst_56 [1] : vector<8x32xf32> to vector<8xf32>
    %185 = vector.shape_cast %184 : vector<8xf32> to vector<8x1xf32>
    %cst_57 = arith.constant 3.200000e+01 : f32
    %186 = vector.broadcast %cst_57 : f32 to vector<8x1xf32>
    %187 = arith.divf %185, %186 : vector<8x1xf32>
    %188 = arith.mulf %182, %182 : vector<8x1xf32>
    %189 = arith.subf %187, %188 : vector<8x1xf32>
    %190 = vector.broadcast %182 : vector<8x1xf32> to vector<8x32xf32>
    %191 = arith.subf %176, %190 : vector<8x32xf32>
    %cst_58 = arith.constant 9.99999974E-6 : f32
    %192 = vector.broadcast %cst_58 : f32 to vector<8x1xf32>
    %193 = arith.addf %189, %192 : vector<8x1xf32>
    %194 = math.rsqrt %193 : vector<8x1xf32>
    %195 = vector.broadcast %194 : vector<8x1xf32> to vector<8x32xf32>
    %196 = arith.mulf %191, %195 : vector<8x32xf32>
    %197 = vector.broadcast %177 : vector<1x32xf32> to vector<8x32xf32>
    %198 = arith.mulf %196, %197 : vector<8x32xf32>
    %199 = vector.broadcast %178 : vector<1x32xf32> to vector<8x32xf32>
    %200 = arith.addf %198, %199 : vector<8x32xf32>
    %201 = arith.truncf %200 : vector<8x32xf32> to vector<8x32xbf16>
    %c352 = arith.constant 352 : index
    %c0_59 = arith.constant 0 : index
    %202 = vector.load %arg3[%c352, %c0_59] : memref<608x128xbf16, #tpu.memory_space<vmem>>, vector<32x128xbf16>
    %cst_60 = arith.constant dense<0.000000e+00> : vector<8x128xf32>
    %203 = tpu.matmul %201, %202, %cst_60 {dimension_numbers = #tpu.dot_dimension_numbers<[1], [0], [0], [1], [0, 0, 1, 1], [], []>} : vector<8x32xbf16>, vector<32x128xbf16>, vector<8x128xf32> -> vector<8x128xf32>
    %204 = vector.extract_strided_slice %203 {offsets = [0, 0], sizes = [8, 8], strides = [1, 1]} : vector<8x128xf32> to vector<8x8xf32>
    %205 = arith.truncf %204 : vector<8x8xf32> to vector<8x8xbf16>
    %206 = vector.extract_strided_slice %203 {offsets = [0, 32], sizes = [8, 8], strides = [1, 1]} : vector<8x128xf32> to vector<8x8xf32>
    %207 = arith.truncf %206 : vector<8x8xf32> to vector<8x8xbf16>
    %cst_61 = arith.constant dense<0.000000e+00> : vector<8x8xf32>
    %208 = tpu.matmul %205, %207, %cst_61 {dimension_numbers = #tpu.dot_dimension_numbers<[1], [1], [0], [0], [0, 0, 1, 0], [], []>} : vector<8x8xbf16>, vector<8x8xbf16>, vector<8x8xf32> -> vector<8x8xf32>
    %cst_62 = arith.constant 0.353553385 : f32
    %209 = vector.broadcast %cst_62 : f32 to vector<8x8xf32>
    %210 = arith.mulf %208, %209 : vector<8x8xf32>
    %211 = arith.addf %210, %18 : vector<8x8xf32>
    %212 = vector.extract_strided_slice %203 {offsets = [0, 8], sizes = [8, 8], strides = [1, 1]} : vector<8x128xf32> to vector<8x8xf32>
    %213 = arith.truncf %212 : vector<8x8xf32> to vector<8x8xbf16>
    %214 = vector.extract_strided_slice %203 {offsets = [0, 40], sizes = [8, 8], strides = [1, 1]} : vector<8x128xf32> to vector<8x8xf32>
    %215 = arith.truncf %214 : vector<8x8xf32> to vector<8x8xbf16>
    %cst_63 = arith.constant dense<0.000000e+00> : vector<8x8xf32>
    %216 = tpu.matmul %213, %215, %cst_63 {dimension_numbers = #tpu.dot_dimension_numbers<[1], [1], [0], [0], [0, 0, 1, 0], [], []>} : vector<8x8xbf16>, vector<8x8xbf16>, vector<8x8xf32> -> vector<8x8xf32>
    %cst_64 = arith.constant 0.353553385 : f32
    %217 = vector.broadcast %cst_64 : f32 to vector<8x8xf32>
    %218 = arith.mulf %216, %217 : vector<8x8xf32>
    %219 = arith.addf %218, %18 : vector<8x8xf32>
    %220 = vector.extract_strided_slice %203 {offsets = [0, 16], sizes = [8, 8], strides = [1, 1]} : vector<8x128xf32> to vector<8x8xf32>
    %221 = arith.truncf %220 : vector<8x8xf32> to vector<8x8xbf16>
    %222 = vector.extract_strided_slice %203 {offsets = [0, 48], sizes = [8, 8], strides = [1, 1]} : vector<8x128xf32> to vector<8x8xf32>
    %223 = arith.truncf %222 : vector<8x8xf32> to vector<8x8xbf16>
    %cst_65 = arith.constant dense<0.000000e+00> : vector<8x8xf32>
    %224 = tpu.matmul %221, %223, %cst_65 {dimension_numbers = #tpu.dot_dimension_numbers<[1], [1], [0], [0], [0, 0, 1, 0], [], []>} : vector<8x8xbf16>, vector<8x8xbf16>, vector<8x8xf32> -> vector<8x8xf32>
    %cst_66 = arith.constant 0.353553385 : f32
    %225 = vector.broadcast %cst_66 : f32 to vector<8x8xf32>
    %226 = arith.mulf %224, %225 : vector<8x8xf32>
    %227 = arith.addf %226, %18 : vector<8x8xf32>
    %228 = vector.extract_strided_slice %203 {offsets = [0, 24], sizes = [8, 8], strides = [1, 1]} : vector<8x128xf32> to vector<8x8xf32>
    %229 = arith.truncf %228 : vector<8x8xf32> to vector<8x8xbf16>
    %230 = vector.extract_strided_slice %203 {offsets = [0, 56], sizes = [8, 8], strides = [1, 1]} : vector<8x128xf32> to vector<8x8xf32>
    %231 = arith.truncf %230 : vector<8x8xf32> to vector<8x8xbf16>
    %cst_67 = arith.constant dense<0.000000e+00> : vector<8x8xf32>
    %232 = tpu.matmul %229, %231, %cst_67 {dimension_numbers = #tpu.dot_dimension_numbers<[1], [1], [0], [0], [0, 0, 1, 0], [], []>} : vector<8x8xbf16>, vector<8x8xbf16>, vector<8x8xf32> -> vector<8x8xf32>
    %cst_68 = arith.constant 0.353553385 : f32
    %233 = vector.broadcast %cst_68 : f32 to vector<8x8xf32>
    %234 = arith.mulf %232, %233 : vector<8x8xf32>
    %235 = arith.addf %234, %18 : vector<8x8xf32>
    %236 = tpu.concatenate %211, %219, %227, %235 in 0 : vector<8x8xf32>, vector<8x8xf32>, vector<8x8xf32>, vector<8x8xf32> -> vector<32x8xf32>
    %cst_69 = arith.constant dense<0xFF800000> : vector<32xf32>
    %237 = vector.multi_reduction <maximumf>, %236, %cst_69 [1] : vector<32x8xf32> to vector<32xf32>
    %238 = vector.shape_cast %237 : vector<32xf32> to vector<32x1xf32>
    %239 = vector.broadcast %238 : vector<32x1xf32> to vector<32x8xf32>
    %240 = arith.subf %236, %239 : vector<32x8xf32>
    %241 = math.exp %240 : vector<32x8xf32>
    %cst_70 = arith.constant dense<0.000000e+00> : vector<32xf32>
    %242 = vector.multi_reduction <add>, %241, %cst_70 [1] : vector<32x8xf32> to vector<32xf32>
    %243 = vector.shape_cast %242 : vector<32xf32> to vector<32x1xf32>
    %244 = tpu.reciprocal %243 {approx = true} : vector<32x1xf32> -> vector<32x1xf32>
    %245 = arith.truncf %241 : vector<32x8xf32> to vector<32x8xbf16>
    %c384 = arith.constant 384 : index
    %c0_71 = arith.constant 0 : index
    %246 = vector.load %arg3[%c384, %c0_71] : memref<608x128xbf16, #tpu.memory_space<vmem>>, vector<32x128xbf16>
    %247 = vector.extract_strided_slice %203 {offsets = [0, 64], sizes = [8, 8], strides = [1, 1]} : vector<8x128xf32> to vector<8x8xf32>
    %248 = arith.truncf %247 : vector<8x8xf32> to vector<8x8xbf16>
    %249 = vector.extract_strided_slice %245 {offsets = [0, 0], sizes = [8, 8], strides = [1, 1]} : vector<32x8xbf16> to vector<8x8xbf16>
    %cst_72 = arith.constant dense<0.000000e+00> : vector<8x8xf32>
    %250 = tpu.matmul %249, %248, %cst_72 {dimension_numbers = #tpu.dot_dimension_numbers<[1], [0], [0], [1], [0, 0, 1, 1], [], []>} : vector<8x8xbf16>, vector<8x8xbf16>, vector<8x8xf32> -> vector<8x8xf32>
    %251 = vector.extract_strided_slice %244 {offsets = [0, 0], sizes = [8, 1], strides = [1, 1]} : vector<32x1xf32> to vector<8x1xf32>
    %252 = vector.broadcast %251 : vector<8x1xf32> to vector<8x8xf32>
    %253 = arith.mulf %250, %252 : vector<8x8xf32>
    %254 = arith.truncf %253 : vector<8x8xf32> to vector<8x8xbf16>
    %255 = vector.extract_strided_slice %246 {offsets = [0, 0], sizes = [8, 128], strides = [1, 1]} : vector<32x128xbf16> to vector<8x128xbf16>
    %cst_73 = arith.constant dense<0.000000e+00> : vector<8x128xf32>
    %256 = tpu.matmul %254, %255, %cst_73 {dimension_numbers = #tpu.dot_dimension_numbers<[1], [0], [0], [1], [0, 0, 1, 1], [], []>} : vector<8x8xbf16>, vector<8x128xbf16>, vector<8x128xf32> -> vector<8x128xf32>
    %257 = vector.extract_strided_slice %203 {offsets = [0, 72], sizes = [8, 8], strides = [1, 1]} : vector<8x128xf32> to vector<8x8xf32>
    %258 = arith.truncf %257 : vector<8x8xf32> to vector<8x8xbf16>
    %259 = vector.extract_strided_slice %245 {offsets = [8, 0], sizes = [8, 8], strides = [1, 1]} : vector<32x8xbf16> to vector<8x8xbf16>
    %cst_74 = arith.constant dense<0.000000e+00> : vector<8x8xf32>
    %260 = tpu.matmul %259, %258, %cst_74 {dimension_numbers = #tpu.dot_dimension_numbers<[1], [0], [0], [1], [0, 0, 1, 1], [], []>} : vector<8x8xbf16>, vector<8x8xbf16>, vector<8x8xf32> -> vector<8x8xf32>
    %261 = vector.extract_strided_slice %244 {offsets = [8, 0], sizes = [8, 1], strides = [1, 1]} : vector<32x1xf32> to vector<8x1xf32>
    %262 = vector.broadcast %261 : vector<8x1xf32> to vector<8x8xf32>
    %263 = arith.mulf %260, %262 : vector<8x8xf32>
    %264 = arith.truncf %263 : vector<8x8xf32> to vector<8x8xbf16>
    %265 = vector.extract_strided_slice %246 {offsets = [8, 0], sizes = [8, 128], strides = [1, 1]} : vector<32x128xbf16> to vector<8x128xbf16>
    %cst_75 = arith.constant dense<0.000000e+00> : vector<8x128xf32>
    %266 = tpu.matmul %264, %265, %cst_75 {dimension_numbers = #tpu.dot_dimension_numbers<[1], [0], [0], [1], [0, 0, 1, 1], [], []>} : vector<8x8xbf16>, vector<8x128xbf16>, vector<8x128xf32> -> vector<8x128xf32>
    %267 = arith.addf %256, %266 : vector<8x128xf32>
    %268 = vector.extract_strided_slice %203 {offsets = [0, 80], sizes = [8, 8], strides = [1, 1]} : vector<8x128xf32> to vector<8x8xf32>
    %269 = arith.truncf %268 : vector<8x8xf32> to vector<8x8xbf16>
    %270 = vector.extract_strided_slice %245 {offsets = [16, 0], sizes = [8, 8], strides = [1, 1]} : vector<32x8xbf16> to vector<8x8xbf16>
    %cst_76 = arith.constant dense<0.000000e+00> : vector<8x8xf32>
    %271 = tpu.matmul %270, %269, %cst_76 {dimension_numbers = #tpu.dot_dimension_numbers<[1], [0], [0], [1], [0, 0, 1, 1], [], []>} : vector<8x8xbf16>, vector<8x8xbf16>, vector<8x8xf32> -> vector<8x8xf32>
    %272 = vector.extract_strided_slice %244 {offsets = [16, 0], sizes = [8, 1], strides = [1, 1]} : vector<32x1xf32> to vector<8x1xf32>
    %273 = vector.broadcast %272 : vector<8x1xf32> to vector<8x8xf32>
    %274 = arith.mulf %271, %273 : vector<8x8xf32>
    %275 = arith.truncf %274 : vector<8x8xf32> to vector<8x8xbf16>
    %276 = vector.extract_strided_slice %246 {offsets = [16, 0], sizes = [8, 128], strides = [1, 1]} : vector<32x128xbf16> to vector<8x128xbf16>
    %cst_77 = arith.constant dense<0.000000e+00> : vector<8x128xf32>
    %277 = tpu.matmul %275, %276, %cst_77 {dimension_numbers = #tpu.dot_dimension_numbers<[1], [0], [0], [1], [0, 0, 1, 1], [], []>} : vector<8x8xbf16>, vector<8x128xbf16>, vector<8x128xf32> -> vector<8x128xf32>
    %278 = arith.addf %267, %277 : vector<8x128xf32>
    %279 = vector.extract_strided_slice %203 {offsets = [0, 88], sizes = [8, 8], strides = [1, 1]} : vector<8x128xf32> to vector<8x8xf32>
    %280 = arith.truncf %279 : vector<8x8xf32> to vector<8x8xbf16>
    %281 = vector.extract_strided_slice %245 {offsets = [24, 0], sizes = [8, 8], strides = [1, 1]} : vector<32x8xbf16> to vector<8x8xbf16>
    %cst_78 = arith.constant dense<0.000000e+00> : vector<8x8xf32>
    %282 = tpu.matmul %281, %280, %cst_78 {dimension_numbers = #tpu.dot_dimension_numbers<[1], [0], [0], [1], [0, 0, 1, 1], [], []>} : vector<8x8xbf16>, vector<8x8xbf16>, vector<8x8xf32> -> vector<8x8xf32>
    %283 = vector.extract_strided_slice %244 {offsets = [24, 0], sizes = [8, 1], strides = [1, 1]} : vector<32x1xf32> to vector<8x1xf32>
    %284 = vector.broadcast %283 : vector<8x1xf32> to vector<8x8xf32>
    %285 = arith.mulf %282, %284 : vector<8x8xf32>
    %286 = arith.truncf %285 : vector<8x8xf32> to vector<8x8xbf16>
    %287 = vector.extract_strided_slice %246 {offsets = [24, 0], sizes = [8, 128], strides = [1, 1]} : vector<32x128xbf16> to vector<8x128xbf16>
    %cst_79 = arith.constant dense<0.000000e+00> : vector<8x128xf32>
    %288 = tpu.matmul %286, %287, %cst_79 {dimension_numbers = #tpu.dot_dimension_numbers<[1], [0], [0], [1], [0, 0, 1, 1], [], []>} : vector<8x8xbf16>, vector<8x128xbf16>, vector<8x128xf32> -> vector<8x128xf32>
    %289 = arith.addf %278, %288 : vector<8x128xf32>
    %c28 = arith.constant 28 : index
    %c0_80 = arith.constant 0 : index
    %290 = vector.load %arg2[%c28, %c0_80] : memref<40x128xf32, #tpu.memory_space<vmem>>, vector<1x32xf32>
    %291 = vector.extract_strided_slice %289 {offsets = [0, 0], sizes = [8, 32], strides = [1, 1]} : vector<8x128xf32> to vector<8x32xf32>
    %292 = arith.addf %176, %291 : vector<8x32xf32>
    %293 = vector.broadcast %290 : vector<1x32xf32> to vector<8x32xf32>
    %294 = arith.addf %292, %293 : vector<8x32xf32>
    %c26 = arith.constant 26 : index
    %c0_81 = arith.constant 0 : index
    %295 = vector.load %arg2[%c26, %c0_81] : memref<40x128xf32, #tpu.memory_space<vmem>>, vector<1x32xf32>
    %c27 = arith.constant 27 : index
    %c0_82 = arith.constant 0 : index
    %296 = vector.load %arg2[%c27, %c0_82] : memref<40x128xf32, #tpu.memory_space<vmem>>, vector<1x32xf32>
    %c29 = arith.constant 29 : index
    %c0_83 = arith.constant 0 : index
    %297 = vector.load %arg2[%c29, %c0_83] : memref<40x128xf32, #tpu.memory_space<vmem>>, vector<1x128xf32>
    %c30 = arith.constant 30 : index
    %c0_84 = arith.constant 0 : index
    %298 = vector.load %arg2[%c30, %c0_84] : memref<40x128xf32, #tpu.memory_space<vmem>>, vector<1x32xf32>
    %cst_85 = arith.constant dense<0.000000e+00> : vector<8xf32>
    %299 = vector.multi_reduction <add>, %294, %cst_85 [1] : vector<8x32xf32> to vector<8xf32>
    %300 = vector.shape_cast %299 : vector<8xf32> to vector<8x1xf32>
    %cst_86 = arith.constant 3.200000e+01 : f32
    %301 = vector.broadcast %cst_86 : f32 to vector<8x1xf32>
    %302 = arith.divf %300, %301 : vector<8x1xf32>
    %303 = arith.mulf %294, %294 : vector<8x32xf32>
    %cst_87 = arith.constant dense<0.000000e+00> : vector<8xf32>
    %304 = vector.multi_reduction <add>, %303, %cst_87 [1] : vector<8x32xf32> to vector<8xf32>
    %305 = vector.shape_cast %304 : vector<8xf32> to vector<8x1xf32>
    %cst_88 = arith.constant 3.200000e+01 : f32
    %306 = vector.broadcast %cst_88 : f32 to vector<8x1xf32>
    %307 = arith.divf %305, %306 : vector<8x1xf32>
    %308 = arith.mulf %302, %302 : vector<8x1xf32>
    %309 = arith.subf %307, %308 : vector<8x1xf32>
    %310 = vector.broadcast %302 : vector<8x1xf32> to vector<8x32xf32>
    %311 = arith.subf %294, %310 : vector<8x32xf32>
    %cst_89 = arith.constant 9.99999974E-6 : f32
    %312 = vector.broadcast %cst_89 : f32 to vector<8x1xf32>
    %313 = arith.addf %309, %312 : vector<8x1xf32>
    %314 = math.rsqrt %313 : vector<8x1xf32>
    %315 = vector.broadcast %314 : vector<8x1xf32> to vector<8x32xf32>
    %316 = arith.mulf %311, %315 : vector<8x32xf32>
    %317 = vector.broadcast %295 : vector<1x32xf32> to vector<8x32xf32>
    %318 = arith.mulf %316, %317 : vector<8x32xf32>
    %319 = vector.broadcast %296 : vector<1x32xf32> to vector<8x32xf32>
    %320 = arith.addf %318, %319 : vector<8x32xf32>
    %321 = arith.truncf %320 : vector<8x32xf32> to vector<8x32xbf16>
    %c416 = arith.constant 416 : index
    %c0_90 = arith.constant 0 : index
    %322 = vector.load %arg3[%c416, %c0_90] : memref<608x128xbf16, #tpu.memory_space<vmem>>, vector<32x128xbf16>
    %cst_91 = arith.constant dense<0.000000e+00> : vector<8x128xf32>
    %323 = tpu.matmul %321, %322, %cst_91 {dimension_numbers = #tpu.dot_dimension_numbers<[1], [0], [0], [1], [0, 0, 1, 1], [], []>} : vector<8x32xbf16>, vector<32x128xbf16>, vector<8x128xf32> -> vector<8x128xf32>
    %324 = vector.broadcast %297 : vector<1x128xf32> to vector<8x128xf32>
    %325 = arith.addf %323, %324 : vector<8x128xf32>
    %cst_92 = arith.constant 0.000000e+00 : f32
    %326 = vector.broadcast %cst_92 : f32 to vector<8x128xf32>
    %327 = arith.maximumf %325, %326 : vector<8x128xf32>
    %328 = arith.truncf %327 : vector<8x128xf32> to vector<8x128xbf16>
    %c448 = arith.constant 448 : index
    %c0_93 = arith.constant 0 : index
    %329 = vector.load %arg3[%c448, %c0_93] : memref<608x128xbf16, #tpu.memory_space<vmem>>, vector<128x128xbf16>
    %cst_94 = arith.constant dense<0.000000e+00> : vector<8x128xf32>
    %330 = tpu.matmul %328, %329, %cst_94 {dimension_numbers = #tpu.dot_dimension_numbers<[1], [0], [0], [1], [0, 0, 1, 1], [], []>} : vector<8x128xbf16>, vector<128x128xbf16>, vector<8x128xf32> -> vector<8x128xf32>
    %331 = vector.extract_strided_slice %330 {offsets = [0, 0], sizes = [8, 32], strides = [1, 1]} : vector<8x128xf32> to vector<8x32xf32>
    %332 = arith.addf %294, %331 : vector<8x32xf32>
    %333 = vector.broadcast %298 : vector<1x32xf32> to vector<8x32xf32>
    %334 = arith.addf %332, %333 : vector<8x32xf32>
    %c32 = arith.constant 32 : index
    %c0_95 = arith.constant 0 : index
    %335 = vector.load %arg2[%c32, %c0_95] : memref<40x128xf32, #tpu.memory_space<vmem>>, vector<1x32xf32>
    %c33 = arith.constant 33 : index
    %c0_96 = arith.constant 0 : index
    %336 = vector.load %arg2[%c33, %c0_96] : memref<40x128xf32, #tpu.memory_space<vmem>>, vector<1x32xf32>
    %c34 = arith.constant 34 : index
    %c0_97 = arith.constant 0 : index
    %337 = vector.load %arg2[%c34, %c0_97] : memref<40x128xf32, #tpu.memory_space<vmem>>, vector<1x128xf32>
    %cst_98 = arith.constant dense<0.000000e+00> : vector<8xf32>
    %338 = vector.multi_reduction <add>, %334, %cst_98 [1] : vector<8x32xf32> to vector<8xf32>
    %339 = vector.shape_cast %338 : vector<8xf32> to vector<8x1xf32>
    %cst_99 = arith.constant 3.200000e+01 : f32
    %340 = vector.broadcast %cst_99 : f32 to vector<8x1xf32>
    %341 = arith.divf %339, %340 : vector<8x1xf32>
    %342 = arith.mulf %334, %334 : vector<8x32xf32>
    %cst_100 = arith.constant dense<0.000000e+00> : vector<8xf32>
    %343 = vector.multi_reduction <add>, %342, %cst_100 [1] : vector<8x32xf32> to vector<8xf32>
    %344 = vector.shape_cast %343 : vector<8xf32> to vector<8x1xf32>
    %cst_101 = arith.constant 3.200000e+01 : f32
    %345 = vector.broadcast %cst_101 : f32 to vector<8x1xf32>
    %346 = arith.divf %344, %345 : vector<8x1xf32>
    %347 = arith.mulf %341, %341 : vector<8x1xf32>
    %348 = arith.subf %346, %347 : vector<8x1xf32>
    %349 = vector.broadcast %341 : vector<8x1xf32> to vector<8x32xf32>
    %350 = arith.subf %334, %349 : vector<8x32xf32>
    %cst_102 = arith.constant 9.99999974E-6 : f32
    %351 = vector.broadcast %cst_102 : f32 to vector<8x1xf32>
    %352 = arith.addf %348, %351 : vector<8x1xf32>
    %353 = math.rsqrt %352 : vector<8x1xf32>
    %354 = vector.broadcast %353 : vector<8x1xf32> to vector<8x32xf32>
    %355 = arith.mulf %350, %354 : vector<8x32xf32>
    %356 = vector.broadcast %335 : vector<1x32xf32> to vector<8x32xf32>
    %357 = arith.mulf %355, %356 : vector<8x32xf32>
    %358 = vector.broadcast %336 : vector<1x32xf32> to vector<8x32xf32>
    %359 = arith.addf %357, %358 : vector<8x32xf32>
    %360 = arith.truncf %359 : vector<8x32xf32> to vector<8x32xbf16>
    %c576 = arith.constant 576 : index
    %c0_103 = arith.constant 0 : index
    %361 = vector.load %arg3[%c576, %c0_103] : memref<608x128xbf16, #tpu.memory_space<vmem>>, vector<32x128xbf16>
    %cst_104 = arith.constant dense<0.000000e+00> : vector<8x128xf32>
    %362 = tpu.matmul %360, %361, %cst_104 {dimension_numbers = #tpu.dot_dimension_numbers<[1], [0], [0], [1], [0, 0, 1, 1], [], []>} : vector<8x32xbf16>, vector<32x128xbf16>, vector<8x128xf32> -> vector<8x128xf32>
    %363 = vector.broadcast %337 : vector<1x128xf32> to vector<8x128xf32>
    %364 = arith.addf %362, %363 : vector<8x128xf32>
    %c0_105 = arith.constant 0 : index
    %c0_106 = arith.constant 0 : index
    %365 = vector.load %arg4[%c0_105, %c0_106] : memref<8x128xf32, #tpu.memory_space<vmem>>, vector<8x128xf32>
    tpu.vector_store %arg4[%c0_105, %c0_106], %364 {strides = array<i32>} : memref<8x128xf32, #tpu.memory_space<vmem>>, vector<8x128xf32>,
    return
  }
  func.func @transform_0(%arg0: i32) -> (i32, i32) {
    %c0_i32 = arith.constant 0 : i32
    %c0_i32_0 = arith.constant 0 : i32
    return %arg0, %c0_i32 : i32, i32
  }
  func.func @transform_1(%arg0: i32) -> (i32, i32) {
    %c0_i32 = arith.constant 0 : i32
    %c0_i32_0 = arith.constant 0 : i32
    %c0_i32_1 = arith.constant 0 : i32
    return %c0_i32, %c0_i32_0 : i32, i32
  }
  func.func @transform_2(%arg0: i32) -> (i32, i32) {
    %c0_i32 = arith.constant 0 : i32
    %c0_i32_0 = arith.constant 0 : i32
    %c0_i32_1 = arith.constant 0 : i32
    return %c0_i32, %c0_i32_0 : i32, i32
  }
  func.func @transform_3(%arg0: i32) -> (i32, i32) {
    %c0_i32 = arith.constant 0 : i32
    %c0_i32_0 = arith.constant 0 : i32
    return %arg0, %c0_i32 : i32, i32
  }
}

</mosaic_0001>

<llo_original>
// kernel: transformer_forward.1
$region0: #{transformer_forward.1}
  #allocation0 [shape = 'u32[]', space=smem, size = 0x4, offset = 0x4, fixed_abs, tag = 'smem constant byte address 0x4 - core index']
  #allocation1 [shape = 'u32[144,128]{1,0:T(1,128)}', space=vmem, size = 0x12000, scoped, tag = 'internal scratch']
  %s0 = inlined_call_operand.vmem [shape: s32[16,1], index: 0, kind: input, shape index: {}]
  %s1 = inlined_call_operand.hbm [shape: f32[40,128], index: 1, kind: input, shape index: {}]
  %s2 = inlined_call_operand.hbm [shape: bf16[608,128], index: 2, kind: input, shape index: {}]
  %s3 = inlined_call_operand.vmem [shape: f32[16,128], index: 3, kind: output, shape index: {}]
  %s4 = sld [smem:[#allocation0]]
  $region53: #{transformer_forward.1} parent=0
    _
  %s6 = ssub.s32 1, %s4
  %s7 = scalar_select 0, %s6, %s4
  $region1: #{transformer_forward.1} parent=0
    #allocation2 [shape = 'u8[20480]{0}', space=vmem, size = 0x5000, scoped, tag = 'input window, operand 1, single buffered']
    #allocation3 [shape = 's32[2]{0}', space=sflag, size = 0x8, scoped, tag = 'scoped memory for transformer_forward.1']
    #allocation4 [shape = 'u8[155648]{0}', space=vmem, size = 0x26000, scoped, tag = 'input window, operand 2, single buffered']
    #allocation5 [shape = 's32[1]{0}', space=sflag, size = 0x4, scoped, tag = 'scoped memory for transformer_forward.1']
    %8 = vsyncpa [#allocation3], 0
    %9 = vsyncpa [#allocation5], 0
    loop: start=0, step=1, limit=4
    $region2: #{transformer_forward.1} parent=1 // loop_pre_header
      _
    $region3: #{transformer_forward.1} parent=1 // loop_header
      %s11 = sphi 0, %s15
      %p12 = scmp.ge.s32.totalorder %s11, 4
      %s21 = sphi 0, %s23
      %s24 = sphi 0, %s21
      %s25 = sphi 0, %s24
      %s41 = sphi 0, %s25
      %s45 = sphi 0, %s45
      %s47 = sphi 0, %s45
      %s48 = sphi 0, %s47
      %s62 = sphi 0, %s48
      %s66 = sphi 0, %s66
      %s68 = sphi 0, %s66
      %s69 = sphi 0, %s68
      %s83 = sphi 0, %s69
      %s89 = sphi 0, %s91
      %s92 = sphi 0, %s89
      %s93 = sphi 0, %s92
      %s109 = sphi 0, %s93
    $region4: #{transformer_forward.1} parent=1 // loop_header_branch
      %14 = sbr.rel (%p12) target = $region8
    $region5: #{transformer_forward.1} parent=1 // loop_body
      %s16 = ssub.s32 %s11, 1
      %s17 = ssub.s32 %s11, 2
      %s18 = sadd.s32 %s11, 1
      %s19 = ssub.s32 %s11, %s18
      %p20 = scmp.eq.s32.totalorder %s19, 0
      %s22 = sadd.s32 %s21, 1
      %s23 = scalar_select %p20, %s21, %s22
      %p26 = pneg %p20
      %p27 = scmp.eq.s32.totalorder %s11, 1
      %p28 = por %p26, %p27
      %p29 = scmp.ne.s32.totalorder %s21, %s24
      %p30 = scmp.eq.s32.totalorder %s11, 0
      %p31 = por %p29, %p30
      %p32 = scmp.ne.s32.totalorder %s21, %s24
      %p33 = scmp.eq.s32.totalorder %s16, 1
      %p34 = por %p32, %p33
      %p35 = scmp.ne.s32.totalorder %s24, %s25
      %p36 = scmp.eq.s32.totalorder %s16, 0
      %p37 = por %p35, %p36
      %p38 = scmp.ne.s32.totalorder %s24, %s25
      %p39 = scmp.eq.s32.totalorder %s17, 1
      %p40 = por %p38, %p39
      %p42 = scmp.ne.s32.totalorder %s25, %s41
      %p43 = scmp.eq.s32.totalorder %s17, 0
      %p44 = por %p42, %p43
      %s46 = sadd.s32 %s45, 1
      %p49 = scmp.eq.s32.totalorder %s11, 1
      %p50 = scmp.ne.s32.totalorder %s45, %s47
      %p51 = scmp.eq.s32.totalorder %s11, 0
      %p52 = por %p50, %p51
      %p53 = scmp.ne.s32.totalorder %s45, %s47
      %p54 = scmp.eq.s32.totalorder %s16, 1
      %p55 = por %p53, %p54
      %p56 = scmp.ne.s32.totalorder %s47, %s48
      %p57 = scmp.eq.s32.totalorder %s16, 0
      %p58 = por %p56, %p57
      %p59 = scmp.ne.s32.totalorder %s47, %s48
      %p60 = scmp.eq.s32.totalorder %s17, 1
      %p61 = por %p59, %p60
      %p63 = scmp.ne.s32.totalorder %s48, %s62
      %p64 = scmp.eq.s32.totalorder %s17, 0
      %p65 = por %p63, %p64
      %s67 = sadd.s32 %s66, 1
      %p70 = scmp.eq.s32.totalorder %s11, 1
      %p71 = scmp.ne.s32.totalorder %s66, %s68
      %p72 = scmp.eq.s32.totalorder %s11, 0
      %p73 = por %p71, %p72
      %p74 = scmp.ne.s32.totalorder %s66, %s68
      %p75 = scmp.eq.s32.totalorder %s16, 1
      %p76 = por %p74, %p75
      %p77 = scmp.ne.s32.totalorder %s68, %s69
      %p78 = scmp.eq.s32.totalorder %s16, 0
      %p79 = por %p77, %p78
      %p80 = scmp.ne.s32.totalorder %s68, %s69
      %p81 = scmp.eq.s32.totalorder %s17, 1
      %p82 = por %p80, %p81
      %p84 = scmp.ne.s32.totalorder %s69, %s83
      %p85 = scmp.eq.s32.totalorder %s17, 0
      %p86 = por %p84, %p85
      %s87 = ssub.s32 %s11, %s18
      %p88 = scmp.eq.s32.totalorder %s87, 0
      %s90 = sadd.s32 %s89, 1
      %s91 = scalar_select %p88, %s89, %s90
      %p94 = pneg %p88
      %p95 = scmp.eq.s32.totalorder %s11, 1
      %p96 = por %p94, %p95
      %p97 = scmp.ne.s32.totalorder %s89, %s92
      %p98 = scmp.eq.s32.totalorder %s11, 0
      %p99 = por %p97, %p98
      %p100 = scmp.ne.s32.totalorder %s89, %s92
      %p101 = scmp.eq.s32.totalorder %s16, 1
      %p102 = por %p100, %p101
      %p103 = scmp.ne.s32.totalorder %s92, %s93
      %p104 = scmp.eq.s32.totalorder %s16, 0
      %p105 = por %p103, %p104
      %p106 = scmp.ne.s32.totalorder %s92, %s93
      %p107 = scmp.eq.s32.totalorder %s17, 1
      %p108 = por %p106, %p107
      %p110 = scmp.ne.s32.totalorder %s93, %s109
      %p111 = scmp.eq.s32.totalorder %s17, 0
      %p112 = por %p110, %p111
      %p113 = scmp.le.s32.totalorder 1, %s11
      %p114 = scmp.lt.s32.totalorder %s11, 3
      %p115 = pnand %p113, %p114
      %p116 = pneg %p115
      // Predicated region
      $region9: #{transformer_forward.1} parent=5 // pred_check
        _
      $region10: #{transformer_forward.1} parent=5 // pred_check_branch
        %118 = sbr.rel (%p115) target = $region12
      $region11: #{transformer_forward.1} parent=5 // pred_region
        %s119 = ssub.s32 %s11, 1
        // Predicated region
        $region13: #{transformer_forward.1} parent=11 // pred_check
          %p120 = pneg %p58
        $region14: #{transformer_forward.1} parent=11 // pred_check_branch
          %122 = sbr.rel (%p120) target = $region16
        $region15: #{transformer_forward.1} parent=11 // pred_region
          %s124 = ssub.s32 640, 640
          %125 = vsyncadd [#allocation3], %s124
          %s126 = sshll.u32 [#allocation2], 4
          %s127 = int_to_ptr.vmem [resolvable:$true] %s126
          %132 = dma.hbm_to_vmem [thread:$0]  %s1, 640, %s127, [#allocation3], 128, 128, 8
        $region16: #{transformer_forward.1} parent=11 // pred_fallthru
          _
        // Predicated region
        $region17: #{transformer_forward.1} parent=11 // pred_check
          %p133 = pneg %p79
        $region18: #{transformer_forward.1} parent=11 // pred_check_branch
          %135 = sbr.rel (%p133) target = $region20
        $region19: #{transformer_forward.1} parent=11 // pred_region
          %s137 = ssub.s32 4864, 4864
          %138 = vsyncadd [#allocation5], %s137
          %s139 = sshll.u32 [#allocation4], 4
          %s140 = int_to_ptr.vmem [resolvable:$true] %s139
          %145 = dma.hbm_to_vmem [thread:$0]  %s2, 4864, %s140, [#allocation5], 64, 64, 4
        $region20: #{transformer_forward.1} parent=11 // pred_fallthru
          _
      $region12: #{transformer_forward.1} parent=5 // pred_fallthru
        _
      %p146 = scmp.lt.s32.totalorder %s11, 2
      // Predicated region
      $region21: #{transformer_forward.1} parent=5 // pred_check
        %p147 = pneg %p146
      $region22: #{transformer_forward.1} parent=5 // pred_check_branch
        %149 = sbr.rel (%p147) target = $region24
      $region23: #{transformer_forward.1} parent=5 // pred_region
        // Predicated region
        $region25: #{transformer_forward.1} parent=23 // pred_check
          %p150 = pneg %p31
        $region26: #{transformer_forward.1} parent=23 // pred_check_branch
          %152 = sbr.rel (%p150) target = $region28
        $region27: #{transformer_forward.1} parent=23 // pred_region
          %p153 = scmp.lt.s32.totalorder %s11, 1
          %s154 = scalar_select %p153, %s11, 1
          %s155 = smul.addr %s154, 8
          %s156 = scalar_lea.vmem %s0, %s155
        $region28: #{transformer_forward.1} parent=23 // pred_fallthru
          _
      $region24: #{transformer_forward.1} parent=5 // pred_fallthru
        _
      %p157 = scmp.le.s32.totalorder 1, %s11
      %p158 = scmp.lt.s32.totalorder %s11, 3
      %p159 = pnand %p157, %p158
      %p160 = pneg %p159
      // Predicated region
      $region29: #{transformer_forward.1} parent=5 // pred_check
        _
      $region30: #{transformer_forward.1} parent=5 // pred_check_branch
        %162 = sbr.rel (%p159) target = $region32
      $region31: #{transformer_forward.1} parent=5 // pred_region
        %s163 = ssub.s32 %s11, 1
        // Predicated region
        $region33: #{transformer_forward.1} parent=31 // pred_check
          %p164 = pneg %p58
        $region34: #{transformer_forward.1} parent=31 // pred_check_branch
          %166 = sbr.rel (%p164) target = $region36
        $region35: #{transformer_forward.1} parent=31 // pred_region
          %167 = dma.done [#allocation3], 640
        $region36: #{transformer_forward.1} parent=31 // pred_fallthru
          _
        // Predicated region
        $region37: #{transformer_forward.1} parent=31 // pred_check
          %p168 = pneg %p79
        $region38: #{transformer_forward.1} parent=31 // pred_check_branch
          %170 = sbr.rel (%p168) target = $region40
        $region39: #{transformer_forward.1} parent=31 // pred_region
          %171 = dma.done [#allocation5], 4864
        $region40: #{transformer_forward.1} parent=31 // pred_fallthru
          _
        %p172 = scmp.lt.s32.totalorder %s16, 1
        %s173 = scalar_select %p172, %s16, 1
        %s174 = smul.addr %s173, 8
        %s175 = scalar_lea.vmem %s0, %s174
        %p176 = pneg %p37
        %p177 = pneg %p34
        %p178 = pneg %p58
        %p179 = pneg %p55
        %p180 = pneg %p79
        %p181 = pneg %p76
        %p182 = pneg %p105
        %p183 = pneg %p102
        %p184 = scmp.lt.s32.totalorder %s16, 1
        %s185 = scalar_select %p184, %s16, 1
        %s186 = smul.addr %s185, 8
        %s187 = scalar_lea.vmem %s3, %s186
        %p188 = scmp.lt.s32.totalorder %s16, 1
        %s189 = scalar_select %p188, %s16, 1
        %s190 = smul.addr %s189, 8
        %s191 = scalar_lea.vmem %s0, %s190
        %p192 = scmp.lt.s32.totalorder %s16, 1
        %s193 = scalar_select %p192, %s16, 1
        %s194 = smul.addr %s193, 8
        %s195 = scalar_lea.vmem %s3, %s194
        %v197 = vld [vmem:[%s191] sm:$0xff]
        %v198 = vlaneseq
        %v199 = vand.u32 %v198, 127
        %200 = vset.pattern.permute.xlu0 0
        %201 = vperm.xlu0 %200, %v197
        %v202 = vpop.permute.xlu0 %201
        %vm203 = vcmp.eq.s32.totalorder %v199, %v202
        %v204 = vsel %vm203, 1.0, 0.0
        %v205 = vpack.c.bf16 %v204, %v204
        %v206 = vld [vmem:[#allocation4] sm:$0xf]
        %v207 = vld [vmem:[#allocation4 + $0x4] sm:$0xf]
        %v208 = vld [vmem:[#allocation4 + $0x8] sm:$0xf]
        %v209 = vld [vmem:[#allocation4 + $0xc] sm:$0xf]
        %v210 = vld [vmem:[#allocation4 + $0x10] sm:$0xf]
        %v211 = vld [vmem:[#allocation4 + $0x14] sm:$0xf]
        %v212 = vld [vmem:[#allocation4 + $0x18] sm:$0xf]
        %v213 = vld [vmem:[#allocation4 + $0x1c] sm:$0xf]
        %v214 = vld [vmem:[#allocation4 + $0x20] sm:$0xf]
        %v215 = vld [vmem:[#allocation4 + $0x24] sm:$0xf]
        %v216 = vld [vmem:[#allocation4 + $0x28] sm:$0xf]
        %v217 = vld [vmem:[#allocation4 + $0x2c] sm:$0xf]
        %v218 = vld [vmem:[#allocation4 + $0x30] sm:$0xf]
        %v219 = vld [vmem:[#allocation4 + $0x34] sm:$0xf]
        %v220 = vld [vmem:[#allocation4 + $0x38] sm:$0xf]
        %v221 = vld [vmem:[#allocation4 + $0x3c] sm:$0xf]
        %v238 = vunpack.c.l.b16 %v206
        %v239 = vunpack.c.l.b16 %v207
        %v240 = vunpack.c.l.b16 %v208
        %v241 = vunpack.c.l.b16 %v209
        %v242 = vunpack.c.l.b16 %v210
        %v243 = vunpack.c.l.b16 %v211
        %v244 = vunpack.c.l.b16 %v212
        %v245 = vunpack.c.l.b16 %v213
        %v246 = vunpack.c.l.b16 %v214
        %v247 = vunpack.c.l.b16 %v215
        %v248 = vunpack.c.l.b16 %v216
        %v249 = vunpack.c.l.b16 %v217
        %v250 = vunpack.c.l.b16 %v218
        %v251 = vunpack.c.l.b16 %v219
        %v252 = vunpack.c.l.b16 %v220
        %v253 = vunpack.c.l.b16 %v221
        %v254 = vpack.c.b16 %v239, %v238
        %v255 = vpack.c.b16 %v241, %v240
        %v256 = vpack.c.b16 %v243, %v242
        %v257 = vpack.c.b16 %v245, %v244
        %v258 = vpack.c.b16 %v247, %v246
        %v259 = vpack.c.b16 %v249, %v248
        %v260 = vpack.c.b16 %v251, %v250
        %v261 = vpack.c.b16 %v253, %v252
        %270 = vmatprep.subr.bf16.mxu0 0
        %271 = vmatpush1.bf16.msra.mxu0 %v254
        %272 = vmatprep.subr.bf16.mxu0 0
        %273 = vmatpush1.bf16.msra.mxu0 %v255
        %274 = vmatprep.subr.bf16.mxu0 0
        %275 = vmatpush1.bf16.msra.mxu0 %v256
        %276 = vmatprep.subr.bf16.mxu0 0
        %277 = vmatpush1.bf16.msra.mxu0 %v257
        %278 = vmatprep.subr.bf16.mxu0 0
        %279 = vmatpush1.bf16.msra.mxu0 %v258
        %280 = vmatprep.subr.bf16.mxu0 0
        %281 = vmatpush1.bf16.msra.mxu0 %v259
        %282 = vmatprep.subr.bf16.mxu0 0
        %283 = vmatpush1.bf16.msra.mxu0 %v260
        %284 = vmatprep.subr.bf16.mxu0 0
        %285 = vmatpush1.bf16.msra.mxu0 %v261
        %286 = vmatprep.subr.bf16.mxu0 0
        %287 = vmatpush1.bf16.msra.mxu0 0
        %288 = vmatprep.subr.bf16.mxu0 0
        %289 = vmatpush1.bf16.msra.mxu0 0
        %290 = vmatprep.subr.bf16.mxu0 0
        %291 = vmatpush1.bf16.msra.mxu0 0
        %292 = vmatprep.subr.bf16.mxu0 0
        %293 = vmatpush1.bf16.msra.mxu0 0
        %294 = vmatprep.subr.bf16.mxu0 0
        %295 = vmatpush1.bf16.msra.mxu0 0
        %296 = vmatprep.subr.bf16.mxu0 0
        %297 = vmatpush1.bf16.msra.mxu0 0
        %298 = vmatprep.subr.bf16.mxu0 0
        %299 = vmatpush1.bf16.msra.mxu0 0
        %300 = vmatprep.subr.bf16.mxu0 0
        %301 = vmatpush1.bf16.msra.mxu0 0
        %302 = vmatprep.mubr.bf16.mxu0 0
        %303 = vmatmul.mubr.bf16.gmra.mrb[0].mxu0 %v205
        %v304 = vpop.f32.mrb[0].mxu0
        %v305 = vadd.f32 0.0, %v304
        %v306 = vpop.f32.mrb[0].mxu0
        %v307 = vpop.f32.mrb[0].mxu0
        %v308 = vpop.f32.mrb[0].mxu0
        %309 = vdwg.mxu0
        %v310 = vld [vmem:[#allocation2] sm:$0xff]
        %v311 = vadd.f32 %v305, %v310
        %v312 = vlaneseq
        %v313 = vshrl.u32 %v312, 7
        %vm314 = vcmp.le.s32.totalorder %v199, %v313
        %v315 = vsel %vm314, 0.0, -1e+30
        %v316 = vld [vmem:[#allocation2 + $0x10] sm:$0x1]
        %v317 = vld [vmem:[#allocation2 + $0x11] sm:$0x1]
        %vm318 = vcmask 261120
        %v319 = vsel %vm318, %v311, 0.0
        %320 = vadd.xlane.f32.xlu0 %v319
        %v321 = vpop.xlane.xlu0 %320
        %v322 = vrcp.pop 32.0
        %v323 = vmul.f32 %v321, %v322
        %v324 = vmul.f32 %v311, %v311
        %v325 = vsel %vm318, %v324, 0.0
        %326 = vadd.xlane.f32.xlu0 %v325
        %v327 = vpop.xlane.xlu0 %326
        %v328 = vmul.f32 %v327, %v322
        %v329 = vmul.f32 %v323, %v323
        %v330 = vsub.f32 %v328, %v329
        %v331 = vsub.f32 %v311, %v323
        %v332 = vadd.f32 %v330, 1e-05
        %v333 = vrsqrt.pop %v332
        %v334 = vmul.f32 %v331, %v333
        %v335 = vlaneseq
        %v336 = vshrl.u32 %v335, 7
        %v337 = vsub.s32 0, %v336
        %v338 = vrot.slane %v316, %v337
        %v339 = vmul.f32 %v334, %v338
        %v340 = vlaneseq
        %v341 = vshrl.u32 %v340, 7
        %v342 = vsub.s32 0, %v341
        %v343 = vrot.slane %v317, %v342
        %v344 = vadd.f32 %v339, %v343
        %v345 = vpack.c.bf16 %v344, %v344
        %v346 = vld [vmem:[#allocation4 + $0x40] sm:$0xf]
        %v347 = vld [vmem:[#allocation4 + $0x44] sm:$0xf]
        %v348 = vld [vmem:[#allocation4 + $0x48] sm:$0xf]
        %v349 = vld [vmem:[#allocation4 + $0x4c] sm:$0xf]
        %v354 = vunpack.c.l.b16 %v346
        %v355 = vunpack.c.l.b16 %v347
        %v356 = vunpack.c.l.b16 %v348
        %v357 = vunpack.c.l.b16 %v349
        %v358 = vpack.c.b16 %v355, %v354
        %v359 = vpack.c.b16 %v357, %v356
        %v363 = vsel %vm318, %v345, 0
        %365 = vmatprep.subr.bf16.mxu0 0
        %366 = vmatpush1.bf16.msra.mxu0 %v358
        %367 = vmatprep.subr.bf16.mxu0 0
        %368 = vmatpush1.bf16.msra.mxu0 %v359
        %369 = vmatprep.subr.bf16.mxu0 0
        %370 = vmatpush1.bf16.msra.mxu0 0
        %371 = vmatprep.subr.bf16.mxu0 0
        %372 = vmatpush1.bf16.msra.mxu0 0
        %373 = vmatprep.subr.bf16.mxu0 0
        %374 = vmatpush1.bf16.msra.mxu0 0
        %375 = vmatprep.subr.bf16.mxu0 0
        %376 = vmatpush1.bf16.msra.mxu0 0
        %377 = vmatprep.subr.bf16.mxu0 0
        %378 = vmatpush1.bf16.msra.mxu0 0
        %379 = vmatprep.subr.bf16.mxu0 0
        %380 = vmatpush1.bf16.msra.mxu0 0
        %381 = vmatprep.subr.bf16.mxu0 0
        %382 = vmatpush1.bf16.msra.mxu0 0
        %383 = vmatprep.subr.bf16.mxu0 0
        %384 = vmatpush1.bf16.msra.mxu0 0
        %385 = vmatprep.subr.bf16.mxu0 0
        %386 = vmatpush1.bf16.msra.mxu0 0
        %387 = vmatprep.subr.bf16.mxu0 0
        %388 = vmatpush1.bf16.msra.mxu0 0
        %389 = vmatprep.subr.bf16.mxu0 0
        %390 = vmatpush1.bf16.msra.mxu0 0
        %391 = vmatprep.subr.bf16.mxu0 0
        %392 = vmatpush1.bf16.msra.mxu0 0
        %393 = vmatprep.subr.bf16.mxu0 0
        %394 = vmatpush1.bf16.msra.mxu0 0
        %395 = vmatprep.subr.bf16.mxu0 0
        %396 = vmatpush1.bf16.msra.mxu0 0
        %397 = vmatprep.mubr.bf16.mxu0 0
        %398 = vmatmul.mubr.bf16.gmra.mrb[0].mxu0 %v363
        %v399 = vpop.f32.mrb[0].mxu0
        %v400 = vadd.f32 0.0, %v399
        %v401 = vpop.f32.mrb[0].mxu0
        %v402 = vpop.f32.mrb[0].mxu0
        %v403 = vpop.f32.mrb[0].mxu0
        %404 = vdwg.mxu0
        %v405 = vpack.c.bf16 %v400, %v400
        %407 = vrot.lane.b32.xlu0 %v405, 96
        %v408 = vpop.permute.xlu0 %407
        %vm409 = vcmask 64512
        %v411 = vsel %vm409, %v405, 0
        %v414 = vsel %vm409, %v408, 0
        %416 = vmatprep.subr.bf16.mxu0 0
        %417 = vmatpush1.bf16.xpose.msra.mxu0 %v414
        %418 = vmatprep.subr.bf16.mxu0 0
        %419 = vmatpush1.bf16.xpose.msra.mxu0 0
        %420 = vmatprep.subr.bf16.mxu0 0
        %421 = vmatpush1.bf16.xpose.msra.mxu0 0
        %422 = vmatprep.subr.bf16.mxu0 0
        %423 = vmatpush1.bf16.xpose.msra.mxu0 0
        %424 = vmatprep.subr.bf16.mxu0 0
        %425 = vmatpush1.bf16.xpose.msra.mxu0 0
        %426 = vmatprep.subr.bf16.mxu0 0
        %427 = vmatpush1.bf16.xpose.msra.mxu0 0
        %428 = vmatprep.subr.bf16.mxu0 0
        %429 = vmatpush1.bf16.xpose.msra.mxu0 0
        %430 = vmatprep.subr.bf16.mxu0 0
        %431 = vmatpush1.bf16.xpose.msra.mxu0 0
        %432 = vmatprep.subr.bf16.mxu0 0
        %433 = vmatpush1.bf16.xpose.msra.mxu0 0
        %434 = vmatprep.subr.bf16.mxu0 0
        %435 = vmatpush1.bf16.xpose.msra.mxu0 0
        %436 = vmatprep.subr.bf16.mxu0 0
        %437 = vmatpush1.bf16.xpose.msra.mxu0 0
        %438 = vmatprep.subr.bf16.mxu0 0
        %439 = vmatpush1.bf16.xpose.msra.mxu0 0
        %440 = vmatprep.subr.bf16.mxu0 0
        %441 = vmatpush1.bf16.xpose.msra.mxu0 0
        %442 = vmatprep.subr.bf16.mxu0 0
        %443 = vmatpush1.bf16.xpose.msra.mxu0 0
        %444 = vmatprep.subr.bf16.mxu0 0
        %445 = vmatpush1.bf16.xpose.msra.mxu0 0
        %446 = vmatprep.subr.bf16.mxu0 0
        %447 = vmatpush1.bf16.xpose.msra.mxu0 0
        %448 = vmatprep.mubr.bf16.mxu0 0
        %449 = vmatmul.mubr.bf16.gmra.mrb[0].mxu0 %v411
        %v450 = vpop.f32.mrb[0].mxu0
        %v451 = vadd.f32 0.0, %v450
        %v452 = vpop.f32.mrb[0].mxu0
        %v453 = vpop.f32.mrb[0].mxu0
        %v454 = vpop.f32.mrb[0].mxu0
        %455 = vdwg.mxu0
        %v456 = vmul.f32 %v451, 0.35355338
        %v457 = vadd.f32 %v456, %v315
        %458 = vrot.lane.b32.xlu0 %v405, 120
        %v459 = vpop.permute.xlu0 %458
        %460 = vrot.lane.b32.xlu0 %v405, 88
        %v461 = vpop.permute.xlu0 %460
        %v463 = vsel %vm409, %v459, 0
        %v466 = vsel %vm409, %v461, 0
        %468 = vmatprep.subr.bf16.mxu0 0
        %469 = vmatpush1.bf16.xpose.msra.mxu0 %v466
        %470 = vmatprep.subr.bf16.mxu0 0
        %471 = vmatpush1.bf16.xpose.msra.mxu0 0
        %472 = vmatprep.subr.bf16.mxu0 0
        %473 = vmatpush1.bf16.xpose.msra.mxu0 0
        %474 = vmatprep.subr.bf16.mxu0 0
        %475 = vmatpush1.bf16.xpose.msra.mxu0 0
        %476 = vmatprep.subr.bf16.mxu0 0
        %477 = vmatpush1.bf16.xpose.msra.mxu0 0
        %478 = vmatprep.subr.bf16.mxu0 0
        %479 = vmatpush1.bf16.xpose.msra.mxu0 0
        %480 = vmatprep.subr.bf16.mxu0 0
        %481 = vmatpush1.bf16.xpose.msra.mxu0 0
        %482 = vmatprep.subr.bf16.mxu0 0
        %483 = vmatpush1.bf16.xpose.msra.mxu0 0
        %484 = vmatprep.subr.bf16.mxu0 0
        %485 = vmatpush1.bf16.xpose.msra.mxu0 0
        %486 = vmatprep.subr.bf16.mxu0 0
        %487 = vmatpush1.bf16.xpose.msra.mxu0 0
        %488 = vmatprep.subr.bf16.mxu0 0
        %489 = vmatpush1.bf16.xpose.msra.mxu0 0
        %490 = vmatprep.subr.bf16.mxu0 0
        %491 = vmatpush1.bf16.xpose.msra.mxu0 0
        %492 = vmatprep.subr.bf16.mxu0 0
        %493 = vmatpush1.bf16.xpose.msra.mxu0 0
        %494 = vmatprep.subr.bf16.mxu0 0
        %495 = vmatpush1.bf16.xpose.msra.mxu0 0
        %496 = vmatprep.subr.bf16.mxu0 0
        %497 = vmatpush1.bf16.xpose.msra.mxu0 0
        %498 = vmatprep.subr.bf16.mxu0 0
        %499 = vmatpush1.bf16.xpose.msra.mxu0 0
        %500 = vmatprep.mubr.bf16.mxu0 0
        %501 = vmatmul.mubr.bf16.gmra.mrb[0].mxu0 %v463
        %v502 = vpop.f32.mrb[0].mxu0
        %v503 = vadd.f32 0.0, %v502
        %v504 = vpop.f32.mrb[0].mxu0
        %v505 = vpop.f32.mrb[0].mxu0
        %v506 = vpop.f32.mrb[0].mxu0
        %507 = vdwg.mxu0
        %v508 = vmul.f32 %v503, 0.35355338
        %v509 = vadd.f32 %v508, %v315
        %510 = vrot.lane.b32.xlu0 %v405, 112
        %v511 = vpop.permute.xlu0 %510
        %512 = vrot.lane.b32.xlu0 %v405, 80
        %v513 = vpop.permute.xlu0 %512
        %v515 = vsel %vm409, %v511, 0
        %v518 = vsel %vm409, %v513, 0
        %520 = vmatprep.subr.bf16.mxu0 0
        %521 = vmatpush1.bf16.xpose.msra.mxu0 %v518
        %522 = vmatprep.subr.bf16.mxu0 0
        %523 = vmatpush1.bf16.xpose.msra.mxu0 0
        %524 = vmatprep.subr.bf16.mxu0 0
        %525 = vmatpush1.bf16.xpose.msra.mxu0 0
        %526 = vmatprep.subr.bf16.mxu0 0
        %527 = vmatpush1.bf16.xpose.msra.mxu0 0
        %528 = vmatprep.subr.bf16.mxu0 0
        %529 = vmatpush1.bf16.xpose.msra.mxu0 0
        %530 = vmatprep.subr.bf16.mxu0 0
        %531 = vmatpush1.bf16.xpose.msra.mxu0 0
        %532 = vmatprep.subr.bf16.mxu0 0
        %533 = vmatpush1.bf16.xpose.msra.mxu0 0
        %534 = vmatprep.subr.bf16.mxu0 0
        %535 = vmatpush1.bf16.xpose.msra.mxu0 0
        %536 = vmatprep.subr.bf16.mxu0 0
        %537 = vmatpush1.bf16.xpose.msra.mxu0 0
        %538 = vmatprep.subr.bf16.mxu0 0
        %539 = vmatpush1.bf16.xpose.msra.mxu0 0
        %540 = vmatprep.subr.bf16.mxu0 0
        %541 = vmatpush1.bf16.xpose.msra.mxu0 0
        %542 = vmatprep.subr.bf16.mxu0 0
        %543 = vmatpush1.bf16.xpose.msra.mxu0 0
        %544 = vmatprep.subr.bf16.mxu0 0
        %545 = vmatpush1.bf16.xpose.msra.mxu0 0
        %546 = vmatprep.subr.bf16.mxu0 0
        %547 = vmatpush1.bf16.xpose.msra.mxu0 0
        %548 = vmatprep.subr.bf16.mxu0 0
        %549 = vmatpush1.bf16.xpose.msra.mxu0 0
        %550 = vmatprep.subr.bf16.mxu0 0
        %551 = vmatpush1.bf16.xpose.msra.mxu0 0
        %552 = vmatprep.mubr.bf16.mxu0 0
        %553 = vmatmul.mubr.bf16.gmra.mrb[0].mxu0 %v515
        %v554 = vpop.f32.mrb[0].mxu0
        %v555 = vadd.f32 0.0, %v554
        %v556 = vpop.f32.mrb[0].mxu0
        %v557 = vpop.f32.mrb[0].mxu0
        %v558 = vpop.f32.mrb[0].mxu0
        %559 = vdwg.mxu0
        %v560 = vmul.f32 %v555, 0.35355338
        %v561 = vadd.f32 %v560, %v315
        %562 = vrot.lane.b32.xlu0 %v405, 104
        %v563 = vpop.permute.xlu0 %562
        %564 = vrot.lane.b32.xlu0 %v405, 72
        %v565 = vpop.permute.xlu0 %564
        %v567 = vsel %vm409, %v563, 0
        %v570 = vsel %vm409, %v565, 0
        %572 = vmatprep.subr.bf16.mxu0 0
        %573 = vmatpush1.bf16.xpose.msra.mxu0 %v570
        %574 = vmatprep.subr.bf16.mxu0 0
        %575 = vmatpush1.bf16.xpose.msra.mxu0 0
        %576 = vmatprep.subr.bf16.mxu0 0
        %577 = vmatpush1.bf16.xpose.msra.mxu0 0
        %578 = vmatprep.subr.bf16.mxu0 0
        %579 = vmatpush1.bf16.xpose.msra.mxu0 0
        %580 = vmatprep.subr.bf16.mxu0 0
        %581 = vmatpush1.bf16.xpose.msra.mxu0 0
        %582 = vmatprep.subr.bf16.mxu0 0
        %583 = vmatpush1.bf16.xpose.msra.mxu0 0
        %584 = vmatprep.subr.bf16.mxu0 0
        %585 = vmatpush1.bf16.xpose.msra.mxu0 0
        %586 = vmatprep.subr.bf16.mxu0 0
        %587 = vmatpush1.bf16.xpose.msra.mxu0 0
        %588 = vmatprep.subr.bf16.mxu0 0
        %589 = vmatpush1.bf16.xpose.msra.mxu0 0
        %590 = vmatprep.subr.bf16.mxu0 0
        %591 = vmatpush1.bf16.xpose.msra.mxu0 0
        %592 = vmatprep.subr.bf16.mxu0 0
        %593 = vmatpush1.bf16.xpose.msra.mxu0 0
        %594 = vmatprep.subr.bf16.mxu0 0
        %595 = vmatpush1.bf16.xpose.msra.mxu0 0
        %596 = vmatprep.subr.bf16.mxu0 0
        %597 = vmatpush1.bf16.xpose.msra.mxu0 0
        %598 = vmatprep.subr.bf16.mxu0 0
        %599 = vmatpush1.bf16.xpose.msra.mxu0 0
        %600 = vmatprep.subr.bf16.mxu0 0
        %601 = vmatpush1.bf16.xpose.msra.mxu0 0
        %602 = vmatprep.subr.bf16.mxu0 0
        %603 = vmatpush1.bf16.xpose.msra.mxu0 0
        %604 = vmatprep.mubr.bf16.mxu0 0
        %605 = vmatmul.mubr.bf16.gmra.mrb[0].mxu0 %v567
        %v606 = vpop.f32.mrb[0].mxu0
        %v607 = vadd.f32 0.0, %v606
        %v608 = vpop.f32.mrb[0].mxu0
        %v609 = vpop.f32.mrb[0].mxu0
        %v610 = vpop.f32.mrb[0].mxu0
        %611 = vdwg.mxu0
        %v612 = vmul.f32 %v607, 0.35355338
        %v613 = vadd.f32 %v612, %v315
        %v614 = vsel %vm409, %v457, -inf
        %615 = vmax.xlane.f32.xlu0 %v614
        %v616 = vpop.xlane.xlu0 %615
        %v617 = vsel %vm409, %v509, -inf
        %618 = vmax.xlane.f32.xlu0 %v617
        %v619 = vpop.xlane.xlu0 %618
        %v620 = vsel %vm409, %v561, -inf
        %621 = vmax.xlane.f32.xlu0 %v620
        %v622 = vpop.xlane.xlu0 %621
        %v623 = vsel %vm409, %v613, -inf
        %624 = vmax.xlane.f32.xlu0 %v623
        %v625 = vpop.xlane.xlu0 %624
        %v626 = vsub.f32 %v457, %v616
        %v627 = vsub.f32 %v509, %v619
        %v628 = vsub.f32 %v561, %v622
        %v629 = vsub.f32 %v613, %v625
        %v630 = vmul.f32 %v626, 1.442695
        %v631 = vpow.pop %v630
        %v632 = vmul.f32 %v627, 1.442695
        %v633 = vpow.pop %v632
        %v634 = vmul.f32 %v628, 1.442695
        %v635 = vpow.pop %v634
        %v636 = vmul.f32 %v629, 1.442695
        %v637 = vpow.pop %v636
        %v638 = vsel %vm409, %v631, 0.0
        %639 = vadd.xlane.f32.xlu0 %v638
        %v640 = vpop.xlane.xlu0 %639
        %v641 = vsel %vm409, %v633, 0.0
        %642 = vadd.xlane.f32.xlu0 %v641
        %v643 = vpop.xlane.xlu0 %642
        %v644 = vsel %vm409, %v635, 0.0
        %645 = vadd.xlane.f32.xlu0 %v644
        %v646 = vpop.xlane.xlu0 %645
        %v647 = vsel %vm409, %v637, 0.0
        %648 = vadd.xlane.f32.xlu0 %v647
        %v649 = vpop.xlane.xlu0 %648
        %v650 = vrcp.pop %v640
        %v651 = vrcp.pop %v643
        %v652 = vrcp.pop %v646
        %v653 = vrcp.pop %v649
        %v654 = vpack.c.bf16 %v633, %v631
        %v655 = vpack.c.bf16 %v637, %v635
        %v656 = vld [vmem:[#allocation4 + $0x50] sm:$0xf]
        %v657 = vld [vmem:[#allocation4 + $0x54] sm:$0xf]
        %v658 = vld [vmem:[#allocation4 + $0x58] sm:$0xf]
        %v659 = vld [vmem:[#allocation4 + $0x5c] sm:$0xf]
        %660 = vrot.lane.b32.xlu0 %v405, 64
        %v661 = vpop.permute.xlu0 %660
        %v663 = vsel %vm409, %v654, 0
        %vm665 = vcmask 1043456
        %v667 = vsel %vm665, %v661, 0
        %669 = vmatprep.subr.bf16.mxu0 0
        %670 = vmatpush1.bf16.msra.mxu0 %v667
        %671 = vmatprep.subr.bf16.mxu0 0
        %672 = vmatpush1.bf16.msra.mxu0 0
        %673 = vmatprep.subr.bf16.mxu0 0
        %674 = vmatpush1.bf16.msra.mxu0 0
        %675 = vmatprep.subr.bf16.mxu0 0
        %676 = vmatpush1.bf16.msra.mxu0 0
        %677 = vmatprep.subr.bf16.mxu0 0
        %678 = vmatpush1.bf16.msra.mxu0 0
        %679 = vmatprep.subr.bf16.mxu0 0
        %680 = vmatpush1.bf16.msra.mxu0 0
        %681 = vmatprep.subr.bf16.mxu0 0
        %682 = vmatpush1.bf16.msra.mxu0 0
        %683 = vmatprep.subr.bf16.mxu0 0
        %684 = vmatpush1.bf16.msra.mxu0 0
        %685 = vmatprep.subr.bf16.mxu0 0
        %686 = vmatpush1.bf16.msra.mxu0 0
        %687 = vmatprep.subr.bf16.mxu0 0
        %688 = vmatpush1.bf16.msra.mxu0 0
        %689 = vmatprep.subr.bf16.mxu0 0
        %690 = vmatpush1.bf16.msra.mxu0 0
        %691 = vmatprep.subr.bf16.mxu0 0
        %692 = vmatpush1.bf16.msra.mxu0 0
        %693 = vmatprep.subr.bf16.mxu0 0
        %694 = vmatpush1.bf16.msra.mxu0 0
        %695 = vmatprep.subr.bf16.mxu0 0
        %696 = vmatpush1.bf16.msra.mxu0 0
        %697 = vmatprep.subr.bf16.mxu0 0
        %698 = vmatpush1.bf16.msra.mxu0 0
        %699 = vmatprep.subr.bf16.mxu0 0
        %700 = vmatpush1.bf16.msra.mxu0 0
        %701 = vmatprep.mubr.bf16.mxu0 0
        %702 = vmatmul.mubr.bf16.gmra.mrb[0].mxu0 %v663
        %v703 = vpop.f32.mrb[0].mxu0
        %v704 = vadd.f32 0.0, %v703
        %v705 = vpop.f32.mrb[0].mxu0
        %v706 = vpop.f32.mrb[0].mxu0
        %v707 = vpop.f32.mrb[0].mxu0
        %708 = vdwg.mxu0
        %v709 = vmul.f32 %v704, %v650
        %v710 = vpack.c.bf16 %v709, %v709
        %v712 = vrot.slane %v654, 4
        %713 = vrot.lane.b32.xlu0 %v405, 56
        %v714 = vpop.permute.xlu0 %713
        %v716 = vsel %vm409, %v712, 0
        %v719 = vsel %vm665, %v714, 0
        %721 = vmatprep.subr.bf16.mxu0 0
        %722 = vmatpush1.bf16.msra.mxu0 %v719
        %723 = vmatprep.subr.bf16.mxu0 0
        %724 = vmatpush1.bf16.msra.mxu0 0
        %725 = vmatprep.subr.bf16.mxu0 0
        %726 = vmatpush1.bf16.msra.mxu0 0
        %727 = vmatprep.subr.bf16.mxu0 0
        %728 = vmatpush1.bf16.msra.mxu0 0
        %729 = vmatprep.subr.bf16.mxu0 0
        %730 = vmatpush1.bf16.msra.mxu0 0
        %731 = vmatprep.subr.bf16.mxu0 0
        %732 = vmatpush1.bf16.msra.mxu0 0
        %733 = vmatprep.subr.bf16.mxu0 0
        %734 = vmatpush1.bf16.msra.mxu0 0
        %735 = vmatprep.subr.bf16.mxu0 0
        %736 = vmatpush1.bf16.msra.mxu0 0
        %737 = vmatprep.subr.bf16.mxu0 0
        %738 = vmatpush1.bf16.msra.mxu0 0
        %739 = vmatprep.subr.bf16.mxu0 0
        %740 = vmatpush1.bf16.msra.mxu0 0
        %741 = vmatprep.subr.bf16.mxu0 0
        %742 = vmatpush1.bf16.msra.mxu0 0
        %743 = vmatprep.subr.bf16.mxu0 0
        %744 = vmatpush1.bf16.msra.mxu0 0
        %745 = vmatprep.subr.bf16.mxu0 0
        %746 = vmatpush1.bf16.msra.mxu0 0
        %747 = vmatprep.subr.bf16.mxu0 0
        %748 = vmatpush1.bf16.msra.mxu0 0
        %749 = vmatprep.subr.bf16.mxu0 0
        %750 = vmatpush1.bf16.msra.mxu0 0
        %751 = vmatprep.subr.bf16.mxu0 0
        %752 = vmatpush1.bf16.msra.mxu0 0
        %753 = vmatprep.mubr.bf16.mxu0 0
        %754 = vmatmul.mubr.bf16.gmra.mrb[0].mxu0 %v716
        %v755 = vpop.f32.mrb[0].mxu0
        %v756 = vadd.f32 0.0, %v755
        %v757 = vpop.f32.mrb[0].mxu0
        %v758 = vpop.f32.mrb[0].mxu0
        %v759 = vpop.f32.mrb[0].mxu0
        %760 = vdwg.mxu0
        %v761 = vmul.f32 %v756, %v651
        %v762 = vpack.c.bf16 %v761, %v761
        %v764 = vsel %vm409, %v762, 0
        %v767 = vsel %vm665, %v657, 0
        %769 = vmatprep.subr.bf16.mxu0 0
        %770 = vmatpush1.bf16.msra.mxu0 %v767
        %771 = vmatprep.subr.bf16.mxu0 0
        %772 = vmatpush1.bf16.msra.mxu0 0
        %773 = vmatprep.subr.bf16.mxu0 0
        %774 = vmatpush1.bf16.msra.mxu0 0
        %775 = vmatprep.subr.bf16.mxu0 0
        %776 = vmatpush1.bf16.msra.mxu0 0
        %777 = vmatprep.subr.bf16.mxu0 0
        %778 = vmatpush1.bf16.msra.mxu0 0
        %779 = vmatprep.subr.bf16.mxu0 0
        %780 = vmatpush1.bf16.msra.mxu0 0
        %781 = vmatprep.subr.bf16.mxu0 0
        %782 = vmatpush1.bf16.msra.mxu0 0
        %783 = vmatprep.subr.bf16.mxu0 0
        %784 = vmatpush1.bf16.msra.mxu0 0
        %785 = vmatprep.subr.bf16.mxu0 0
        %786 = vmatpush1.bf16.msra.mxu0 0
        %787 = vmatprep.subr.bf16.mxu0 0
        %788 = vmatpush1.bf16.msra.mxu0 0
        %789 = vmatprep.subr.bf16.mxu0 0
        %790 = vmatpush1.bf16.msra.mxu0 0
        %791 = vmatprep.subr.bf16.mxu0 0
        %792 = vmatpush1.bf16.msra.mxu0 0
        %793 = vmatprep.subr.bf16.mxu0 0
        %794 = vmatpush1.bf16.msra.mxu0 0
        %795 = vmatprep.subr.bf16.mxu0 0
        %796 = vmatpush1.bf16.msra.mxu0 0
        %797 = vmatprep.subr.bf16.mxu0 0
        %798 = vmatpush1.bf16.msra.mxu0 0
        %799 = vmatprep.subr.bf16.mxu0 0
        %800 = vmatpush1.bf16.msra.mxu0 0
        %801 = vmatprep.mubr.bf16.mxu0 0
        %802 = vmatmul.mubr.bf16.gmra.mrb[0].mxu0 %v764
        %v803 = vpop.f32.mrb[0].mxu0
        %v804 = vadd.f32 0.0, %v803
        %v805 = vpop.f32.mrb[0].mxu0
        %v806 = vpop.f32.mrb[0].mxu0
        %v807 = vpop.f32.mrb[0].mxu0
        %808 = vdwg.mxu0
        %v810 = vsel %vm409, %v710, 0
        %v813 = vsel %vm665, %v656, 0
        %815 = vmatprep.subr.bf16.mxu0 0
        %816 = vmatpush1.bf16.msra.mxu0 %v813
        %817 = vmatprep.subr.bf16.mxu0 0
        %818 = vmatpush1.bf16.msra.mxu0 0
        %819 = vmatprep.subr.bf16.mxu0 0
        %820 = vmatpush1.bf16.msra.mxu0 0
        %821 = vmatprep.subr.bf16.mxu0 0
        %822 = vmatpush1.bf16.msra.mxu0 0
        %823 = vmatprep.subr.bf16.mxu0 0
        %824 = vmatpush1.bf16.msra.mxu0 0
        %825 = vmatprep.subr.bf16.mxu0 0
        %826 = vmatpush1.bf16.msra.mxu0 0
        %827 = vmatprep.subr.bf16.mxu0 0
        %828 = vmatpush1.bf16.msra.mxu0 0
        %829 = vmatprep.subr.bf16.mxu0 0
        %830 = vmatpush1.bf16.msra.mxu0 0
        %831 = vmatprep.subr.bf16.mxu0 0
        %832 = vmatpush1.bf16.msra.mxu0 0
        %833 = vmatprep.subr.bf16.mxu0 0
        %834 = vmatpush1.bf16.msra.mxu0 0
        %835 = vmatprep.subr.bf16.mxu0 0
        %836 = vmatpush1.bf16.msra.mxu0 0
        %837 = vmatprep.subr.bf16.mxu0 0
        %838 = vmatpush1.bf16.msra.mxu0 0
        %839 = vmatprep.subr.bf16.mxu0 0
        %840 = vmatpush1.bf16.msra.mxu0 0
        %841 = vmatprep.subr.bf16.mxu0 0
        %842 = vmatpush1.bf16.msra.mxu0 0
        %843 = vmatprep.subr.bf16.mxu0 0
        %844 = vmatpush1.bf16.msra.mxu0 0
        %845 = vmatprep.subr.bf16.mxu0 0
        %846 = vmatpush1.bf16.msra.mxu0 0
        %847 = vmatprep.mubr.bf16.mxu0 0
        %848 = vmatmul.mubr.bf16.gmra.mrb[0].mxu0 %v810
        %v849 = vpop.f32.mrb[0].mxu0
        %v850 = vadd.f32 %v804, %v849
        %v851 = vpop.f32.mrb[0].mxu0
        %v852 = vpop.f32.mrb[0].mxu0
        %v853 = vpop.f32.mrb[0].mxu0
        %854 = vdwg.mxu0
        %855 = vrot.lane.b32.xlu0 %v405, 48
        %v856 = vpop.permute.xlu0 %855
        %v858 = vsel %vm409, %v655, 0
        %v861 = vsel %vm665, %v856, 0
        %863 = vmatprep.subr.bf16.mxu0 0
        %864 = vmatpush1.bf16.msra.mxu0 %v861
        %865 = vmatprep.subr.bf16.mxu0 0
        %866 = vmatpush1.bf16.msra.mxu0 0
        %867 = vmatprep.subr.bf16.mxu0 0
        %868 = vmatpush1.bf16.msra.mxu0 0
        %869 = vmatprep.subr.bf16.mxu0 0
        %870 = vmatpush1.bf16.msra.mxu0 0
        %871 = vmatprep.subr.bf16.mxu0 0
        %872 = vmatpush1.bf16.msra.mxu0 0
        %873 = vmatprep.subr.bf16.mxu0 0
        %874 = vmatpush1.bf16.msra.mxu0 0
        %875 = vmatprep.subr.bf16.mxu0 0
        %876 = vmatpush1.bf16.msra.mxu0 0
        %877 = vmatprep.subr.bf16.mxu0 0
        %878 = vmatpush1.bf16.msra.mxu0 0
        %879 = vmatprep.subr.bf16.mxu0 0
        %880 = vmatpush1.bf16.msra.mxu0 0
        %881 = vmatprep.subr.bf16.mxu0 0
        %882 = vmatpush1.bf16.msra.mxu0 0
        %883 = vmatprep.subr.bf16.mxu0 0
        %884 = vmatpush1.bf16.msra.mxu0 0
        %885 = vmatprep.subr.bf16.mxu0 0
        %886 = vmatpush1.bf16.msra.mxu0 0
        %887 = vmatprep.subr.bf16.mxu0 0
        %888 = vmatpush1.bf16.msra.mxu0 0
        %889 = vmatprep.subr.bf16.mxu0 0
        %890 = vmatpush1.bf16.msra.mxu0 0
        %891 = vmatprep.subr.bf16.mxu0 0
        %892 = vmatpush1.bf16.msra.mxu0 0
        %893 = vmatprep.subr.bf16.mxu0 0
        %894 = vmatpush1.bf16.msra.mxu0 0
        %895 = vmatprep.mubr.bf16.mxu0 0
        %896 = vmatmul.mubr.bf16.gmra.mrb[0].mxu0 %v858
        %v897 = vpop.f32.mrb[0].mxu0
        %v898 = vadd.f32 0.0, %v897
        %v899 = vpop.f32.mrb[0].mxu0
        %v900 = vpop.f32.mrb[0].mxu0
        %v901 = vpop.f32.mrb[0].mxu0
        %902 = vdwg.mxu0
        %v903 = vmul.f32 %v898, %v652
        %v904 = vpack.c.bf16 %v903, %v903
        %v906 = vsel %vm409, %v904, 0
        %v909 = vsel %vm665, %v658, 0
        %911 = vmatprep.subr.bf16.mxu0 0
        %912 = vmatpush1.bf16.msra.mxu0 %v909
        %913 = vmatprep.subr.bf16.mxu0 0
        %914 = vmatpush1.bf16.msra.mxu0 0
        %915 = vmatprep.subr.bf16.mxu0 0
        %916 = vmatpush1.bf16.msra.mxu0 0
        %917 = vmatprep.subr.bf16.mxu0 0
        %918 = vmatpush1.bf16.msra.mxu0 0
        %919 = vmatprep.subr.bf16.mxu0 0
        %920 = vmatpush1.bf16.msra.mxu0 0
        %921 = vmatprep.subr.bf16.mxu0 0
        %922 = vmatpush1.bf16.msra.mxu0 0
        %923 = vmatprep.subr.bf16.mxu0 0
        %924 = vmatpush1.bf16.msra.mxu0 0
        %925 = vmatprep.subr.bf16.mxu0 0
        %926 = vmatpush1.bf16.msra.mxu0 0
        %927 = vmatprep.subr.bf16.mxu0 0
        %928 = vmatpush1.bf16.msra.mxu0 0
        %929 = vmatprep.subr.bf16.mxu0 0
        %930 = vmatpush1.bf16.msra.mxu0 0
        %931 = vmatprep.subr.bf16.mxu0 0
        %932 = vmatpush1.bf16.msra.mxu0 0
        %933 = vmatprep.subr.bf16.mxu0 0
        %934 = vmatpush1.bf16.msra.mxu0 0
        %935 = vmatprep.subr.bf16.mxu0 0
        %936 = vmatpush1.bf16.msra.mxu0 0
        %937 = vmatprep.subr.bf16.mxu0 0
        %938 = vmatpush1.bf16.msra.mxu0 0
        %939 = vmatprep.subr.bf16.mxu0 0
        %940 = vmatpush1.bf16.msra.mxu0 0
        %941 = vmatprep.subr.bf16.mxu0 0
        %942 = vmatpush1.bf16.msra.mxu0 0
        %943 = vmatprep.mubr.bf16.mxu0 0
        %944 = vmatmul.mubr.bf16.gmra.mrb[0].mxu0 %v906
        %v945 = vpop.f32.mrb[0].mxu0
        %v946 = vadd.f32 0.0, %v945
        %v947 = vpop.f32.mrb[0].mxu0
        %v948 = vpop.f32.mrb[0].mxu0
        %v949 = vpop.f32.mrb[0].mxu0
        %950 = vdwg.mxu0
        %v951 = vadd.f32 %v850, %v946
        %v953 = vrot.slane %v655, 4
        %954 = vrot.lane.b32.xlu0 %v405, 40
        %v955 = vpop.permute.xlu0 %954
        %v957 = vsel %vm409, %v953, 0
        %v960 = vsel %vm665, %v955, 0
        %962 = vmatprep.subr.bf16.mxu0 0
        %963 = vmatpush1.bf16.msra.mxu0 %v960
        %964 = vmatprep.subr.bf16.mxu0 0
        %965 = vmatpush1.bf16.msra.mxu0 0
        %966 = vmatprep.subr.bf16.mxu0 0
        %967 = vmatpush1.bf16.msra.mxu0 0
        %968 = vmatprep.subr.bf16.mxu0 0
        %969 = vmatpush1.bf16.msra.mxu0 0
        %970 = vmatprep.subr.bf16.mxu0 0
        %971 = vmatpush1.bf16.msra.mxu0 0
        %972 = vmatprep.subr.bf16.mxu0 0
        %973 = vmatpush1.bf16.msra.mxu0 0
        %974 = vmatprep.subr.bf16.mxu0 0
        %975 = vmatpush1.bf16.msra.mxu0 0
        %976 = vmatprep.subr.bf16.mxu0 0
        %977 = vmatpush1.bf16.msra.mxu0 0
        %978 = vmatprep.subr.bf16.mxu0 0
        %979 = vmatpush1.bf16.msra.mxu0 0
        %980 = vmatprep.subr.bf16.mxu0 0
        %981 = vmatpush1.bf16.msra.mxu0 0
        %982 = vmatprep.subr.bf16.mxu0 0
        %983 = vmatpush1.bf16.msra.mxu0 0
        %984 = vmatprep.subr.bf16.mxu0 0
        %985 = vmatpush1.bf16.msra.mxu0 0
        %986 = vmatprep.subr.bf16.mxu0 0
        %987 = vmatpush1.bf16.msra.mxu0 0
        %988 = vmatprep.subr.bf16.mxu0 0
        %989 = vmatpush1.bf16.msra.mxu0 0
        %990 = vmatprep.subr.bf16.mxu0 0
        %991 = vmatpush1.bf16.msra.mxu0 0
        %992 = vmatprep.subr.bf16.mxu0 0
        %993 = vmatpush1.bf16.msra.mxu0 0
        %994 = vmatprep.mubr.bf16.mxu0 0
        %995 = vmatmul.mubr.bf16.gmra.mrb[0].mxu0 %v957
        %v996 = vpop.f32.mrb[0].mxu0
        %v997 = vadd.f32 0.0, %v996
        %v998 = vpop.f32.mrb[0].mxu0
        %v999 = vpop.f32.mrb[0].mxu0
        %v1000 = vpop.f32.mrb[0].mxu0
        %1001 = vdwg.mxu0
        %v1002 = vmul.f32 %v997, %v653
        %v1003 = vpack.c.bf16 %v1002, %v1002
        %v1005 = vsel %vm409, %v1003, 0
        %v1008 = vsel %vm665, %v659, 0
        %1010 = vmatprep.subr.bf16.mxu0 0
        %1011 = vmatpush1.bf16.msra.mxu0 %v1008
        %1012 = vmatprep.subr.bf16.mxu0 0
        %1013 = vmatpush1.bf16.msra.mxu0 0
        %1014 = vmatprep.subr.bf16.mxu0 0
        %1015 = vmatpush1.bf16.msra.mxu0 0
        %1016 = vmatprep.subr.bf16.mxu0 0
        %1017 = vmatpush1.bf16.msra.mxu0 0
        %1018 = vmatprep.subr.bf16.mxu0 0
        %1019 = vmatpush1.bf16.msra.mxu0 0
        %1020 = vmatprep.subr.bf16.mxu0 0
        %1021 = vmatpush1.bf16.msra.mxu0 0
        %1022 = vmatprep.subr.bf16.mxu0 0
        %1023 = vmatpush1.bf16.msra.mxu0 0
        %1024 = vmatprep.subr.bf16.mxu0 0
        %1025 = vmatpush1.bf16.msra.mxu0 0
        %1026 = vmatprep.subr.bf16.mxu0 0
        %1027 = vmatpush1.bf16.msra.mxu0 0
        %1028 = vmatprep.subr.bf16.mxu0 0
        %1029 = vmatpush1.bf16.msra.mxu0 0
        %1030 = vmatprep.subr.bf16.mxu0 0
        %1031 = vmatpush1.bf16.msra.mxu0 0
        %1032 = vmatprep.subr.bf16.mxu0 0
        %1033 = vmatpush1.bf16.msra.mxu0 0
        %1034 = vmatprep.subr.bf16.mxu0 0
        %1035 = vmatpush1.bf16.msra.mxu0 0
        %1036 = vmatprep.subr.bf16.mxu0 0
        %1037 = vmatpush1.bf16.msra.mxu0 0
        %1038 = vmatprep.subr.bf16.mxu0 0
        %1039 = vmatpush1.bf16.msra.mxu0 0
        %1040 = vmatprep.subr.bf16.mxu0 0
        %1041 = vmatpush1.bf16.msra.mxu0 0
        %1042 = vmatprep.mubr.bf16.mxu0 0
        %1043 = vmatmul.mubr.bf16.gmra.mrb[0].mxu0 %v1005
        %v1044 = vpop.f32.mrb[0].mxu0
        %v1045 = vadd.f32 0.0, %v1044
        %v1046 = vpop.f32.mrb[0].mxu0
        %v1047 = vpop.f32.mrb[0].mxu0
        %v1048 = vpop.f32.mrb[0].mxu0
        %1049 = vdwg.mxu0
        %v1050 = vadd.f32 %v951, %v1045
        %v1051 = vld [vmem:[#allocation2 + $0x14] sm:$0x1]
        %v1052 = vadd.f32 %v311, %v1050
        %v1053 = vlaneseq
        %v1054 = vshrl.u32 %v1053, 7
        %v1055 = vsub.s32 0, %v1054
        %v1056 = vrot.slane %v1051, %v1055
        %v1057 = vadd.f32 %v1052, %v1056
        %v1058 = vld [vmem:[#allocation2 + $0x12] sm:$0x1]
        %v1059 = vld [vmem:[#allocation2 + $0x13] sm:$0x1]
        %v1060 = vld [vmem:[#allocation2 + $0x15] sm:$0x1]
        %v1061 = vld [vmem:[#allocation2 + $0x16] sm:$0x1]
        %v1062 = vsel %vm318, %v1057, 0.0
        %1063 = vadd.xlane.f32.xlu0 %v1062
        %v1064 = vpop.xlane.xlu0 %1063
        %v1065 = vmul.f32 %v1064, %v322
        %v1066 = vmul.f32 %v1057, %v1057
        %v1067 = vsel %vm318, %v1066, 0.0
        %1068 = vadd.xlane.f32.xlu0 %v1067
        %v1069 = vpop.xlane.xlu0 %1068
        %v1070 = vmul.f32 %v1069, %v322
        %v1071 = vmul.f32 %v1065, %v1065
        %v1072 = vsub.f32 %v1070, %v1071
        %v1073 = vsub.f32 %v1057, %v1065
        %v1074 = vadd.f32 %v1072, 1e-05
        %v1075 = vrsqrt.pop %v1074
        %v1076 = vmul.f32 %v1073, %v1075
        %v1077 = vlaneseq
        %v1078 = vshrl.u32 %v1077, 7
        %v1079 = vsub.s32 0, %v1078
        %v1080 = vrot.slane %v1058, %v1079
        %v1081 = vmul.f32 %v1076, %v1080
        %v1082 = vlaneseq
        %v1083 = vshrl.u32 %v1082, 7
        %v1084 = vsub.s32 0, %v1083
        %v1085 = vrot.slane %v1059, %v1084
        %v1086 = vadd.f32 %v1081, %v1085
        %v1087 = vpack.c.bf16 %v1086, %v1086
        %v1088 = vld [vmem:[#allocation4 + $0x60] sm:$0xf]
        %v1089 = vld [vmem:[#allocation4 + $0x64] sm:$0xf]
        %v1090 = vld [vmem:[#allocation4 + $0x68] sm:$0xf]
        %v1091 = vld [vmem:[#allocation4 + $0x6c] sm:$0xf]
        %v1092 = vlaneseq
        %v1093 = vshrl.u32 %v1092, 7
        %v1094 = vsub.s32 0, %v1093
        %v1095 = vrot.slane %v1060, %v1094
        %v1100 = vunpack.c.l.b16 %v1088
        %v1101 = vunpack.c.l.b16 %v1089
        %v1102 = vunpack.c.l.b16 %v1090
        %v1103 = vunpack.c.l.b16 %v1091
        %v1104 = vpack.c.b16 %v1101, %v1100
        %v1105 = vpack.c.b16 %v1103, %v1102
        %v1109 = vsel %vm318, %v1087, 0
        %1111 = vmatprep.subr.bf16.mxu0 0
        %1112 = vmatpush1.bf16.msra.mxu0 %v1104
        %1113 = vmatprep.subr.bf16.mxu0 0
        %1114 = vmatpush1.bf16.msra.mxu0 %v1105
        %1115 = vmatprep.subr.bf16.mxu0 0
        %1116 = vmatpush1.bf16.msra.mxu0 0
        %1117 = vmatprep.subr.bf16.mxu0 0
        %1118 = vmatpush1.bf16.msra.mxu0 0
        %1119 = vmatprep.subr.bf16.mxu0 0
        %1120 = vmatpush1.bf16.msra.mxu0 0
        %1121 = vmatprep.subr.bf16.mxu0 0
        %1122 = vmatpush1.bf16.msra.mxu0 0
        %1123 = vmatprep.subr.bf16.mxu0 0
        %1124 = vmatpush1.bf16.msra.mxu0 0
        %1125 = vmatprep.subr.bf16.mxu0 0
        %1126 = vmatpush1.bf16.msra.mxu0 0
        %1127 = vmatprep.subr.bf16.mxu0 0
        %1128 = vmatpush1.bf16.msra.mxu0 0
        %1129 = vmatprep.subr.bf16.mxu0 0
        %1130 = vmatpush1.bf16.msra.mxu0 0
        %1131 = vmatprep.subr.bf16.mxu0 0
        %1132 = vmatpush1.bf16.msra.mxu0 0
        %1133 = vmatprep.subr.bf16.mxu0 0
        %1134 = vmatpush1.bf16.msra.mxu0 0
        %1135 = vmatprep.subr.bf16.mxu0 0
        %1136 = vmatpush1.bf16.msra.mxu0 0
        %1137 = vmatprep.subr.bf16.mxu0 0
        %1138 = vmatpush1.bf16.msra.mxu0 0
        %1139 = vmatprep.subr.bf16.mxu0 0
        %1140 = vmatpush1.bf16.msra.mxu0 0
        %1141 = vmatprep.subr.bf16.mxu0 0
        %1142 = vmatpush1.bf16.msra.mxu0 0
        %1143 = vmatprep.mubr.bf16.mxu0 0
        %1144 = vmatmul.mubr.bf16.gmra.mrb[0].mxu0 %v1109
        %v1145 = vpop.f32.mrb[0].mxu0
        %v1146 = vadd.f32 %v1095, %v1145
        %v1147 = vpop.f32.mrb[0].mxu0
        %v1148 = vpop.f32.mrb[0].mxu0
        %v1149 = vpop.f32.mrb[0].mxu0
        %1150 = vdwg.mxu0
        %v1151 = vmax.f32 %v1146, 0.0
        %v1152 = vpack.c.bf16 %v1151, %v1151
        %v1153 = vld [vmem:[#allocation4 + $0x70] sm:$0xf]
        %v1154 = vld [vmem:[#allocation4 + $0x74] sm:$0xf]
        %v1155 = vld [vmem:[#allocation4 + $0x78] sm:$0xf]
        %v1156 = vld [vmem:[#allocation4 + $0x7c] sm:$0xf]
        %v1157 = vld [vmem:[#allocation4 + $0x80] sm:$0xf]
        %v1158 = vld [vmem:[#allocation4 + $0x84] sm:$0xf]
        %v1159 = vld [vmem:[#allocation4 + $0x88] sm:$0xf]
        %v1160 = vld [vmem:[#allocation4 + $0x8c] sm:$0xf]
        %v1161 = vld [vmem:[#allocation4 + $0x90] sm:$0xf]
        %v1162 = vld [vmem:[#allocation4 + $0x94] sm:$0xf]
        %v1163 = vld [vmem:[#allocation4 + $0x98] sm:$0xf]
        %v1164 = vld [vmem:[#allocation4 + $0x9c] sm:$0xf]
        %v1165 = vld [vmem:[#allocation4 + $0xa0] sm:$0xf]
        %v1166 = vld [vmem:[#allocation4 + $0xa4] sm:$0xf]
        %v1167 = vld [vmem:[#allocation4 + $0xa8] sm:$0xf]
        %v1168 = vld [vmem:[#allocation4 + $0xac] sm:$0xf]
        %v1185 = vunpack.c.l.b16 %v1153
        %v1186 = vunpack.c.l.b16 %v1154
        %v1187 = vunpack.c.l.b16 %v1155
        %v1188 = vunpack.c.l.b16 %v1156
        %v1189 = vunpack.c.l.b16 %v1157
        %v1190 = vunpack.c.l.b16 %v1158
        %v1191 = vunpack.c.l.b16 %v1159
        %v1192 = vunpack.c.l.b16 %v1160
        %v1193 = vunpack.c.l.b16 %v1161
        %v1194 = vunpack.c.l.b16 %v1162
        %v1195 = vunpack.c.l.b16 %v1163
        %v1196 = vunpack.c.l.b16 %v1164
        %v1197 = vunpack.c.l.b16 %v1165
        %v1198 = vunpack.c.l.b16 %v1166
        %v1199 = vunpack.c.l.b16 %v1167
        %v1200 = vunpack.c.l.b16 %v1168
        %v1201 = vpack.c.b16 %v1186, %v1185
        %v1202 = vpack.c.b16 %v1188, %v1187
        %v1203 = vpack.c.b16 %v1190, %v1189
        %v1204 = vpack.c.b16 %v1192, %v1191
        %v1205 = vpack.c.b16 %v1194, %v1193
        %v1206 = vpack.c.b16 %v1196, %v1195
        %v1207 = vpack.c.b16 %v1198, %v1197
        %v1208 = vpack.c.b16 %v1200, %v1199
        %1217 = vmatprep.subr.bf16.mxu0 0
        %1218 = vmatpush1.bf16.msra.mxu0 %v1201
        %1219 = vmatprep.subr.bf16.mxu0 0
        %1220 = vmatpush1.bf16.msra.mxu0 %v1202
        %1221 = vmatprep.subr.bf16.mxu0 0
        %1222 = vmatpush1.bf16.msra.mxu0 %v1203
        %1223 = vmatprep.subr.bf16.mxu0 0
        %1224 = vmatpush1.bf16.msra.mxu0 %v1204
        %1225 = vmatprep.subr.bf16.mxu0 0
        %1226 = vmatpush1.bf16.msra.mxu0 %v1205
        %1227 = vmatprep.subr.bf16.mxu0 0
        %1228 = vmatpush1.bf16.msra.mxu0 %v1206
        %1229 = vmatprep.subr.bf16.mxu0 0
        %1230 = vmatpush1.bf16.msra.mxu0 %v1207
        %1231 = vmatprep.subr.bf16.mxu0 0
        %1232 = vmatpush1.bf16.msra.mxu0 %v1208
        %1233 = vmatprep.subr.bf16.mxu0 0
        %1234 = vmatpush1.bf16.msra.mxu0 0
        %1235 = vmatprep.subr.bf16.mxu0 0
        %1236 = vmatpush1.bf16.msra.mxu0 0
        %1237 = vmatprep.subr.bf16.mxu0 0
        %1238 = vmatpush1.bf16.msra.mxu0 0
        %1239 = vmatprep.subr.bf16.mxu0 0
        %1240 = vmatpush1.bf16.msra.mxu0 0
        %1241 = vmatprep.subr.bf16.mxu0 0
        %1242 = vmatpush1.bf16.msra.mxu0 0
        %1243 = vmatprep.subr.bf16.mxu0 0
        %1244 = vmatpush1.bf16.msra.mxu0 0
        %1245 = vmatprep.subr.bf16.mxu0 0
        %1246 = vmatpush1.bf16.msra.mxu0 0
        %1247 = vmatprep.subr.bf16.mxu0 0
        %1248 = vmatpush1.bf16.msra.mxu0 0
        %1249 = vmatprep.mubr.bf16.mxu0 0
        %1250 = vmatmul.mubr.bf16.gmra.mrb[0].mxu0 %v1152
        %v1251 = vpop.f32.mrb[0].mxu0
        %v1252 = vadd.f32 0.0, %v1251
        %v1253 = vpop.f32.mrb[0].mxu0
        %v1254 = vpop.f32.mrb[0].mxu0
        %v1255 = vpop.f32.mrb[0].mxu0
        %1256 = vdwg.mxu0
        %v1257 = vadd.f32 %v1057, %v1252
        %v1258 = vlaneseq
        %v1259 = vshrl.u32 %v1258, 7
        %v1260 = vsub.s32 0, %v1259
        %v1261 = vrot.slane %v1061, %v1260
        %v1262 = vadd.f32 %v1257, %v1261
        %v1263 = vld [vmem:[#allocation2 + $0x18] sm:$0x1]
        %v1264 = vld [vmem:[#allocation2 + $0x19] sm:$0x1]
        %v1265 = vsel %vm318, %v1262, 0.0
        %1266 = vadd.xlane.f32.xlu0 %v1265
        %v1267 = vpop.xlane.xlu0 %1266
        %v1268 = vmul.f32 %v1267, %v322
        %v1269 = vmul.f32 %v1262, %v1262
        %v1270 = vsel %vm318, %v1269, 0.0
        %1271 = vadd.xlane.f32.xlu0 %v1270
        %v1272 = vpop.xlane.xlu0 %1271
        %v1273 = vmul.f32 %v1272, %v322
        %v1274 = vmul.f32 %v1268, %v1268
        %v1275 = vsub.f32 %v1273, %v1274
        %v1276 = vsub.f32 %v1262, %v1268
        %v1277 = vadd.f32 %v1275, 1e-05
        %v1278 = vrsqrt.pop %v1277
        %v1279 = vmul.f32 %v1276, %v1278
        %v1280 = vlaneseq
        %v1281 = vshrl.u32 %v1280, 7
        %v1282 = vsub.s32 0, %v1281
        %v1283 = vrot.slane %v1263, %v1282
        %v1284 = vmul.f32 %v1279, %v1283
        %v1285 = vlaneseq
        %v1286 = vshrl.u32 %v1285, 7
        %v1287 = vsub.s32 0, %v1286
        %v1288 = vrot.slane %v1264, %v1287
        %v1289 = vadd.f32 %v1284, %v1288
        %v1290 = vpack.c.bf16 %v1289, %v1289
        %v1291 = vld [vmem:[#allocation4 + $0xb0] sm:$0xf]
        %v1292 = vld [vmem:[#allocation4 + $0xb4] sm:$0xf]
        %v1293 = vld [vmem:[#allocation4 + $0xb8] sm:$0xf]
        %v1294 = vld [vmem:[#allocation4 + $0xbc] sm:$0xf]
        %v1299 = vunpack.c.l.b16 %v1291
        %v1300 = vunpack.c.l.b16 %v1292
        %v1301 = vunpack.c.l.b16 %v1293
        %v1302 = vunpack.c.l.b16 %v1294
        %v1303 = vpack.c.b16 %v1300, %v1299
        %v1304 = vpack.c.b16 %v1302, %v1301
        %v1308 = vsel %vm318, %v1290, 0
        %1310 = vmatprep.subr.bf16.mxu0 0
        %1311 = vmatpush1.bf16.msra.mxu0 %v1303
        %1312 = vmatprep.subr.bf16.mxu0 0
        %1313 = vmatpush1.bf16.msra.mxu0 %v1304
        %1314 = vmatprep.subr.bf16.mxu0 0
        %1315 = vmatpush1.bf16.msra.mxu0 0
        %1316 = vmatprep.subr.bf16.mxu0 0
        %1317 = vmatpush1.bf16.msra.mxu0 0
        %1318 = vmatprep.subr.bf16.mxu0 0
        %1319 = vmatpush1.bf16.msra.mxu0 0
        %1320 = vmatprep.subr.bf16.mxu0 0
        %1321 = vmatpush1.bf16.msra.mxu0 0
        %1322 = vmatprep.subr.bf16.mxu0 0
        %1323 = vmatpush1.bf16.msra.mxu0 0
        %1324 = vmatprep.subr.bf16.mxu0 0
        %1325 = vmatpush1.bf16.msra.mxu0 0
        %1326 = vmatprep.subr.bf16.mxu0 0
        %1327 = vmatpush1.bf16.msra.mxu0 0
        %1328 = vmatprep.subr.bf16.mxu0 0
        %1329 = vmatpush1.bf16.msra.mxu0 0
        %1330 = vmatprep.subr.bf16.mxu0 0
        %1331 = vmatpush1.bf16.msra.mxu0 0
        %1332 = vmatprep.subr.bf16.mxu0 0
        %1333 = vmatpush1.bf16.msra.mxu0 0
        %1334 = vmatprep.subr.bf16.mxu0 0
        %1335 = vmatpush1.bf16.msra.mxu0 0
        %1336 = vmatprep.subr.bf16.mxu0 0
        %1337 = vmatpush1.bf16.msra.mxu0 0
        %1338 = vmatprep.subr.bf16.mxu0 0
        %1339 = vmatpush1.bf16.msra.mxu0 0
        %1340 = vmatprep.subr.bf16.mxu0 0
        %1341 = vmatpush1.bf16.msra.mxu0 0
        %1342 = vmatprep.mubr.bf16.mxu0 0
        %1343 = vmatmul.mubr.bf16.gmra.mrb[0].mxu0 %v1308
        %v1344 = vpop.f32.mrb[0].mxu0
        %v1345 = vadd.f32 0.0, %v1344
        %v1346 = vpop.f32.mrb[0].mxu0
        %v1347 = vpop.f32.mrb[0].mxu0
        %v1348 = vpop.f32.mrb[0].mxu0
        %1349 = vdwg.mxu0
        %v1350 = vpack.c.bf16 %v1345, %v1345
        %1352 = vrot.lane.b32.xlu0 %v1350, 96
        %v1353 = vpop.permute.xlu0 %1352
        %v1355 = vsel %vm409, %v1350, 0
        %v1358 = vsel %vm409, %v1353, 0
        %1360 = vmatprep.subr.bf16.mxu0 0
        %1361 = vmatpush1.bf16.xpose.msra.mxu0 %v1358
        %1362 = vmatprep.subr.bf16.mxu0 0
        %1363 = vmatpush1.bf16.xpose.msra.mxu0 0
        %1364 = vmatprep.subr.bf16.mxu0 0
        %1365 = vmatpush1.bf16.xpose.msra.mxu0 0
        %1366 = vmatprep.subr.bf16.mxu0 0
        %1367 = vmatpush1.bf16.xpose.msra.mxu0 0
        %1368 = vmatprep.subr.bf16.mxu0 0
        %1369 = vmatpush1.bf16.xpose.msra.mxu0 0
        %1370 = vmatprep.subr.bf16.mxu0 0
        %1371 = vmatpush1.bf16.xpose.msra.mxu0 0
        %1372 = vmatprep.subr.bf16.mxu0 0
        %1373 = vmatpush1.bf16.xpose.msra.mxu0 0
        %1374 = vmatprep.subr.bf16.mxu0 0
        %1375 = vmatpush1.bf16.xpose.msra.mxu0 0
        %1376 = vmatprep.subr.bf16.mxu0 0
        %1377 = vmatpush1.bf16.xpose.msra.mxu0 0
        %1378 = vmatprep.subr.bf16.mxu0 0
        %1379 = vmatpush1.bf16.xpose.msra.mxu0 0
        %1380 = vmatprep.subr.bf16.mxu0 0
        %1381 = vmatpush1.bf16.xpose.msra.mxu0 0
        %1382 = vmatprep.subr.bf16.mxu0 0
        %1383 = vmatpush1.bf16.xpose.msra.mxu0 0
        %1384 = vmatprep.subr.bf16.mxu0 0
        %1385 = vmatpush1.bf16.xpose.msra.mxu0 0
        %1386 = vmatprep.subr.bf16.mxu0 0
        %1387 = vmatpush1.bf16.xpose.msra.mxu0 0
        %1388 = vmatprep.subr.bf16.mxu0 0
        %1389 = vmatpush1.bf16.xpose.msra.mxu0 0
        %1390 = vmatprep.subr.bf16.mxu0 0
        %1391 = vmatpush1.bf16.xpose.msra.mxu0 0
        %1392 = vmatprep.mubr.bf16.mxu0 0
        %1393 = vmatmul.mubr.bf16.gmra.mrb[0].mxu0 %v1355
        %v1394 = vpop.f32.mrb[0].mxu0
        %v1395 = vadd.f32 0.0, %v1394
        %v1396 = vpop.f32.mrb[0].mxu0
        %v1397 = vpop.f32.mrb[0].mxu0
        %v1398 = vpop.f32.mrb[0].mxu0
        %1399 = vdwg.mxu0
        %v1400 = vmul.f32 %v1395, 0.35355338
        %v1401 = vadd.f32 %v1400, %v315
        %1402 = vrot.lane.b32.xlu0 %v1350, 120
        %v1403 = vpop.permute.xlu0 %1402
        %1404 = vrot.lane.b32.xlu0 %v1350, 88
        %v1405 = vpop.permute.xlu0 %1404
        %v1407 = vsel %vm409, %v1403, 0
        %v1410 = vsel %vm409, %v1405, 0
        %1412 = vmatprep.subr.bf16.mxu0 0
        %1413 = vmatpush1.bf16.xpose.msra.mxu0 %v1410
        %1414 = vmatprep.subr.bf16.mxu0 0
        %1415 = vmatpush1.bf16.xpose.msra.mxu0 0
        %1416 = vmatprep.subr.bf16.mxu0 0
        %1417 = vmatpush1.bf16.xpose.msra.mxu0 0
        %1418 = vmatprep.subr.bf16.mxu0 0
        %1419 = vmatpush1.bf16.xpose.msra.mxu0 0
        %1420 = vmatprep.subr.bf16.mxu0 0
        %1421 = vmatpush1.bf16.xpose.msra.mxu0 0
        %1422 = vmatprep.subr.bf16.mxu0 0
        %1423 = vmatpush1.bf16.xpose.msra.mxu0 0
        %1424 = vmatprep.subr.bf16.mxu0 0
        %1425 = vmatpush1.bf16.xpose.msra.mxu0 0
        %1426 = vmatprep.subr.bf16.mxu0 0
        %1427 = vmatpush1.bf16.xpose.msra.mxu0 0
        %1428 = vmatprep.subr.bf16.mxu0 0
        %1429 = vmatpush1.bf16.xpose.msra.mxu0 0
        %1430 = vmatprep.subr.bf16.mxu0 0
        %1431 = vmatpush1.bf16.xpose.msra.mxu0 0
        %1432 = vmatprep.subr.bf16.mxu0 0
        %1433 = vmatpush1.bf16.xpose.msra.mxu0 0
        %1434 = vmatprep.subr.bf16.mxu0 0
        %1435 = vmatpush1.bf16.xpose.msra.mxu0 0
        %1436 = vmatprep.subr.bf16.mxu0 0
        %1437 = vmatpush1.bf16.xpose.msra.mxu0 0
        %1438 = vmatprep.subr.bf16.mxu0 0
        %1439 = vmatpush1.bf16.xpose.msra.mxu0 0
        %1440 = vmatprep.subr.bf16.mxu0 0
        %1441 = vmatpush1.bf16.xpose.msra.mxu0 0
        %1442 = vmatprep.subr.bf16.mxu0 0
        %1443 = vmatpush1.bf16.xpose.msra.mxu0 0
        %1444 = vmatprep.mubr.bf16.mxu0 0
        %1445 = vmatmul.mubr.bf16.gmra.mrb[0].mxu0 %v1407
        %v1446 = vpop.f32.mrb[0].mxu0
        %v1447 = vadd.f32 0.0, %v1446
        %v1448 = vpop.f32.mrb[0].mxu0
        %v1449 = vpop.f32.mrb[0].mxu0
        %v1450 = vpop.f32.mrb[0].mxu0
        %1451 = vdwg.mxu0
        %v1452 = vmul.f32 %v1447, 0.35355338
        %v1453 = vadd.f32 %v1452, %v315
        %1454 = vrot.lane.b32.xlu0 %v1350, 112
        %v1455 = vpop.permute.xlu0 %1454
        %1456 = vrot.lane.b32.xlu0 %v1350, 80
        %v1457 = vpop.permute.xlu0 %1456
        %v1459 = vsel %vm409, %v1455, 0
        %v1462 = vsel %vm409, %v1457, 0
        %1464 = vmatprep.subr.bf16.mxu0 0
        %1465 = vmatpush1.bf16.xpose.msra.mxu0 %v1462
        %1466 = vmatprep.subr.bf16.mxu0 0
        %1467 = vmatpush1.bf16.xpose.msra.mxu0 0
        %1468 = vmatprep.subr.bf16.mxu0 0
        %1469 = vmatpush1.bf16.xpose.msra.mxu0 0
        %1470 = vmatprep.subr.bf16.mxu0 0
        %1471 = vmatpush1.bf16.xpose.msra.mxu0 0
        %1472 = vmatprep.subr.bf16.mxu0 0
        %1473 = vmatpush1.bf16.xpose.msra.mxu0 0
        %1474 = vmatprep.subr.bf16.mxu0 0
        %1475 = vmatpush1.bf16.xpose.msra.mxu0 0
        %1476 = vmatprep.subr.bf16.mxu0 0
        %1477 = vmatpush1.bf16.xpose.msra.mxu0 0
        %1478 = vmatprep.subr.bf16.mxu0 0
        %1479 = vmatpush1.bf16.xpose.msra.mxu0 0
        %1480 = vmatprep.subr.bf16.mxu0 0
        %1481 = vmatpush1.bf16.xpose.msra.mxu0 0
        %1482 = vmatprep.subr.bf16.mxu0 0
        %1483 = vmatpush1.bf16.xpose.msra.mxu0 0
        %1484 = vmatprep.subr.bf16.mxu0 0
        %1485 = vmatpush1.bf16.xpose.msra.mxu0 0
        %1486 = vmatprep.subr.bf16.mxu0 0
        %1487 = vmatpush1.bf16.xpose.msra.mxu0 0
        %1488 = vmatprep.subr.bf16.mxu0 0
        %1489 = vmatpush1.bf16.xpose.msra.mxu0 0
        %1490 = vmatprep.subr.bf16.mxu0 0
        %1491 = vmatpush1.bf16.xpose.msra.mxu0 0
        %1492 = vmatprep.subr.bf16.mxu0 0
        %1493 = vmatpush1.bf16.xpose.msra.mxu0 0
        %1494 = vmatprep.subr.bf16.mxu0 0
        %1495 = vmatpush1.bf16.xpose.msra.mxu0 0
        %1496 = vmatprep.mubr.bf16.mxu0 0
        %1497 = vmatmul.mubr.bf16.gmra.mrb[0].mxu0 %v1459
        %v1498 = vpop.f32.mrb[0].mxu0
        %v1499 = vadd.f32 0.0, %v1498
        %v1500 = vpop.f32.mrb[0].mxu0
        %v1501 = vpop.f32.mrb[0].mxu0
        %v1502 = vpop.f32.mrb[0].mxu0
        %1503 = vdwg.mxu0
        %v1504 = vmul.f32 %v1499, 0.35355338
        %v1505 = vadd.f32 %v1504, %v315
        %1506 = vrot.lane.b32.xlu0 %v1350, 104
        %v1507 = vpop.permute.xlu0 %1506
        %1508 = vrot.lane.b32.xlu0 %v1350, 72
        %v1509 = vpop.permute.xlu0 %1508
        %v1511 = vsel %vm409, %v1507, 0
        %v1514 = vsel %vm409, %v1509, 0
        %1516 = vmatprep.subr.bf16.mxu0 0
        %1517 = vmatpush1.bf16.xpose.msra.mxu0 %v1514
        %1518 = vmatprep.subr.bf16.mxu0 0
        %1519 = vmatpush1.bf16.xpose.msra.mxu0 0
        %1520 = vmatprep.subr.bf16.mxu0 0
        %1521 = vmatpush1.bf16.xpose.msra.mxu0 0
        %1522 = vmatprep.subr.bf16.mxu0 0
        %1523 = vmatpush1.bf16.xpose.msra.mxu0 0
        %1524 = vmatprep.subr.bf16.mxu0 0
        %1525 = vmatpush1.bf16.xpose.msra.mxu0 0
        %1526 = vmatprep.subr.bf16.mxu0 0
        %1527 = vmatpush1.bf16.xpose.msra.mxu0 0
        %1528 = vmatprep.subr.bf16.mxu0 0
        %1529 = vmatpush1.bf16.xpose.msra.mxu0 0
        %1530 = vmatprep.subr.bf16.mxu0 0
        %1531 = vmatpush1.bf16.xpose.msra.mxu0 0
        %1532 = vmatprep.subr.bf16.mxu0 0
        %1533 = vmatpush1.bf16.xpose.msra.mxu0 0
        %1534 = vmatprep.subr.bf16.mxu0 0
        %1535 = vmatpush1.bf16.xpose.msra.mxu0 0
        %1536 = vmatprep.subr.bf16.mxu0 0
        %1537 = vmatpush1.bf16.xpose.msra.mxu0 0
        %1538 = vmatprep.subr.bf16.mxu0 0
        %1539 = vmatpush1.bf16.xpose.msra.mxu0 0
        %1540 = vmatprep.subr.bf16.mxu0 0
        %1541 = vmatpush1.bf16.xpose.msra.mxu0 0
        %1542 = vmatprep.subr.bf16.mxu0 0
        %1543 = vmatpush1.bf16.xpose.msra.mxu0 0
        %1544 = vmatprep.subr.bf16.mxu0 0
        %1545 = vmatpush1.bf16.xpose.msra.mxu0 0
        %1546 = vmatprep.subr.bf16.mxu0 0
        %1547 = vmatpush1.bf16.xpose.msra.mxu0 0
        %1548 = vmatprep.mubr.bf16.mxu0 0
        %1549 = vmatmul.mubr.bf16.gmra.mrb[0].mxu0 %v1511
        %v1550 = vpop.f32.mrb[0].mxu0
        %v1551 = vadd.f32 0.0, %v1550
        %v1552 = vpop.f32.mrb[0].mxu0
        %v1553 = vpop.f32.mrb[0].mxu0
        %v1554 = vpop.f32.mrb[0].mxu0
        %1555 = vdwg.mxu0
        %v1556 = vmul.f32 %v1551, 0.35355338
        %v1557 = vadd.f32 %v1556, %v315
        %v1558 = vsel %vm409, %v1401, -inf
        %1559 = vmax.xlane.f32.xlu0 %v1558
        %v1560 = vpop.xlane.xlu0 %1559
        %v1561 = vsel %vm409, %v1453, -inf
        %1562 = vmax.xlane.f32.xlu0 %v1561
        %v1563 = vpop.xlane.xlu0 %1562
        %v1564 = vsel %vm409, %v1505, -inf
        %1565 = vmax.xlane.f32.xlu0 %v1564
        %v1566 = vpop.xlane.xlu0 %1565
        %v1567 = vsel %vm409, %v1557, -inf
        %1568 = vmax.xlane.f32.xlu0 %v1567
        %v1569 = vpop.xlane.xlu0 %1568
        %v1570 = vsub.f32 %v1401, %v1560
        %v1571 = vsub.f32 %v1453, %v1563
        %v1572 = vsub.f32 %v1505, %v1566
        %v1573 = vsub.f32 %v1557, %v1569
        %v1574 = vmul.f32 %v1570, 1.442695
        %v1575 = vpow.pop %v1574
        %v1576 = vmul.f32 %v1571, 1.442695
        %v1577 = vpow.pop %v1576
        %v1578 = vmul.f32 %v1572, 1.442695
        %v1579 = vpow.pop %v1578
        %v1580 = vmul.f32 %v1573, 1.442695
        %v1581 = vpow.pop %v1580
        %v1582 = vsel %vm409, %v1575, 0.0
        %1583 = vadd.xlane.f32.xlu0 %v1582
        %v1584 = vpop.xlane.xlu0 %1583
        %v1585 = vsel %vm409, %v1577, 0.0
        %1586 = vadd.xlane.f32.xlu0 %v1585
        %v1587 = vpop.xlane.xlu0 %1586
        %v1588 = vsel %vm409, %v1579, 0.0
        %1589 = vadd.xlane.f32.xlu0 %v1588
        %v1590 = vpop.xlane.xlu0 %1589
        %v1591 = vsel %vm409, %v1581, 0.0
        %1592 = vadd.xlane.f32.xlu0 %v1591
        %v1593 = vpop.xlane.xlu0 %1592
        %v1594 = vrcp.pop %v1584
        %v1595 = vrcp.pop %v1587
        %v1596 = vrcp.pop %v1590
        %v1597 = vrcp.pop %v1593
        %v1598 = vpack.c.bf16 %v1577, %v1575
        %v1599 = vpack.c.bf16 %v1581, %v1579
        %v1600 = vld [vmem:[#allocation4 + $0xc0] sm:$0xf]
        %v1601 = vld [vmem:[#allocation4 + $0xc4] sm:$0xf]
        %v1602 = vld [vmem:[#allocation4 + $0xc8] sm:$0xf]
        %v1603 = vld [vmem:[#allocation4 + $0xcc] sm:$0xf]
        %1604 = vrot.lane.b32.xlu0 %v1350, 64
        %v1605 = vpop.permute.xlu0 %1604
        %v1607 = vsel %vm409, %v1598, 0
        %v1610 = vsel %vm665, %v1605, 0
        %1612 = vmatprep.subr.bf16.mxu0 0
        %1613 = vmatpush1.bf16.msra.mxu0 %v1610
        %1614 = vmatprep.subr.bf16.mxu0 0
        %1615 = vmatpush1.bf16.msra.mxu0 0
        %1616 = vmatprep.subr.bf16.mxu0 0
        %1617 = vmatpush1.bf16.msra.mxu0 0
        %1618 = vmatprep.subr.bf16.mxu0 0
        %1619 = vmatpush1.bf16.msra.mxu0 0
        %1620 = vmatprep.subr.bf16.mxu0 0
        %1621 = vmatpush1.bf16.msra.mxu0 0
        %1622 = vmatprep.subr.bf16.mxu0 0
        %1623 = vmatpush1.bf16.msra.mxu0 0
        %1624 = vmatprep.subr.bf16.mxu0 0
        %1625 = vmatpush1.bf16.msra.mxu0 0
        %1626 = vmatprep.subr.bf16.mxu0 0
        %1627 = vmatpush1.bf16.msra.mxu0 0
        %1628 = vmatprep.subr.bf16.mxu0 0
        %1629 = vmatpush1.bf16.msra.mxu0 0
        %1630 = vmatprep.subr.bf16.mxu0 0
        %1631 = vmatpush1.bf16.msra.mxu0 0
        %1632 = vmatprep.subr.bf16.mxu0 0
        %1633 = vmatpush1.bf16.msra.mxu0 0
        %1634 = vmatprep.subr.bf16.mxu0 0
        %1635 = vmatpush1.bf16.msra.mxu0 0
        %1636 = vmatprep.subr.bf16.mxu0 0
        %1637 = vmatpush1.bf16.msra.mxu0 0
        %1638 = vmatprep.subr.bf16.mxu0 0
        %1639 = vmatpush1.bf16.msra.mxu0 0
        %1640 = vmatprep.subr.bf16.mxu0 0
        %1641 = vmatpush1.bf16.msra.mxu0 0
        %1642 = vmatprep.subr.bf16.mxu0 0
        %1643 = vmatpush1.bf16.msra.mxu0 0
        %1644 = vmatprep.mubr.bf16.mxu0 0
        %1645 = vmatmul.mubr.bf16.gmra.mrb[0].mxu0 %v1607
        %v1646 = vpop.f32.mrb[0].mxu0
        %v1647 = vadd.f32 0.0, %v1646
        %v1648 = vpop.f32.mrb[0].mxu0
        %v1649 = vpop.f32.mrb[0].mxu0
        %v1650 = vpop.f32.mrb[0].mxu0
        %1651 = vdwg.mxu0
        %v1652 = vmul.f32 %v1647, %v1594
        %v1653 = vpack.c.bf16 %v1652, %v1652
        %v1655 = vrot.slane %v1598, 4
        %1656 = vrot.lane.b32.xlu0 %v1350, 56
        %v1657 = vpop.permute.xlu0 %1656
        %v1659 = vsel %vm409, %v1655, 0
        %v1662 = vsel %vm665, %v1657, 0
        %1664 = vmatprep.subr.bf16.mxu0 0
        %1665 = vmatpush1.bf16.msra.mxu0 %v1662
        %1666 = vmatprep.subr.bf16.mxu0 0
        %1667 = vmatpush1.bf16.msra.mxu0 0
        %1668 = vmatprep.subr.bf16.mxu0 0
        %1669 = vmatpush1.bf16.msra.mxu0 0
        %1670 = vmatprep.subr.bf16.mxu0 0
        %1671 = vmatpush1.bf16.msra.mxu0 0
        %1672 = vmatprep.subr.bf16.mxu0 0
        %1673 = vmatpush1.bf16.msra.mxu0 0
        %1674 = vmatprep.subr.bf16.mxu0 0
        %1675 = vmatpush1.bf16.msra.mxu0 0
        %1676 = vmatprep.subr.bf16.mxu0 0
        %1677 = vmatpush1.bf16.msra.mxu0 0
        %1678 = vmatprep.subr.bf16.mxu0 0
        %1679 = vmatpush1.bf16.msra.mxu0 0
        %1680 = vmatprep.subr.bf16.mxu0 0
        %1681 = vmatpush1.bf16.msra.mxu0 0
        %1682 = vmatprep.subr.bf16.mxu0 0
        %1683 = vmatpush1.bf16.msra.mxu0 0
        %1684 = vmatprep.subr.bf16.mxu0 0
        %1685 = vmatpush1.bf16.msra.mxu0 0
        %1686 = vmatprep.subr.bf16.mxu0 0
        %1687 = vmatpush1.bf16.msra.mxu0 0
        %1688 = vmatprep.subr.bf16.mxu0 0
        %1689 = vmatpush1.bf16.msra.mxu0 0
        %1690 = vmatprep.subr.bf16.mxu0 0
        %1691 = vmatpush1.bf16.msra.mxu0 0
        %1692 = vmatprep.subr.bf16.mxu0 0
        %1693 = vmatpush1.bf16.msra.mxu0 0
        %1694 = vmatprep.subr.bf16.mxu0 0
        %1695 = vmatpush1.bf16.msra.mxu0 0
        %1696 = vmatprep.mubr.bf16.mxu0 0
        %1697 = vmatmul.mubr.bf16.gmra.mrb[0].mxu0 %v1659
        %v1698 = vpop.f32.mrb[0].mxu0
        %v1699 = vadd.f32 0.0, %v1698
        %v1700 = vpop.f32.mrb[0].mxu0
        %v1701 = vpop.f32.mrb[0].mxu0
        %v1702 = vpop.f32.mrb[0].mxu0
        %1703 = vdwg.mxu0
        %v1704 = vmul.f32 %v1699, %v1595
        %v1705 = vpack.c.bf16 %v1704, %v1704
        %v1707 = vsel %vm409, %v1705, 0
        %v1710 = vsel %vm665, %v1601, 0
        %1712 = vmatprep.subr.bf16.mxu0 0
        %1713 = vmatpush1.bf16.msra.mxu0 %v1710
        %1714 = vmatprep.subr.bf16.mxu0 0
        %1715 = vmatpush1.bf16.msra.mxu0 0
        %1716 = vmatprep.subr.bf16.mxu0 0
        %1717 = vmatpush1.bf16.msra.mxu0 0
        %1718 = vmatprep.subr.bf16.mxu0 0
        %1719 = vmatpush1.bf16.msra.mxu0 0
        %1720 = vmatprep.subr.bf16.mxu0 0
        %1721 = vmatpush1.bf16.msra.mxu0 0
        %1722 = vmatprep.subr.bf16.mxu0 0
        %1723 = vmatpush1.bf16.msra.mxu0 0
        %1724 = vmatprep.subr.bf16.mxu0 0
        %1725 = vmatpush1.bf16.msra.mxu0 0
        %1726 = vmatprep.subr.bf16.mxu0 0
        %1727 = vmatpush1.bf16.msra.mxu0 0
        %1728 = vmatprep.subr.bf16.mxu0 0
        %1729 = vmatpush1.bf16.msra.mxu0 0
        %1730 = vmatprep.subr.bf16.mxu0 0
        %1731 = vmatpush1.bf16.msra.mxu0 0
        %1732 = vmatprep.subr.bf16.mxu0 0
        %1733 = vmatpush1.bf16.msra.mxu0 0
        %1734 = vmatprep.subr.bf16.mxu0 0
        %1735 = vmatpush1.bf16.msra.mxu0 0
        %1736 = vmatprep.subr.bf16.mxu0 0
        %1737 = vmatpush1.bf16.msra.mxu0 0
        %1738 = vmatprep.subr.bf16.mxu0 0
        %1739 = vmatpush1.bf16.msra.mxu0 0
        %1740 = vmatprep.subr.bf16.mxu0 0
        %1741 = vmatpush1.bf16.msra.mxu0 0
        %1742 = vmatprep.subr.bf16.mxu0 0
        %1743 = vmatpush1.bf16.msra.mxu0 0
        %1744 = vmatprep.mubr.bf16.mxu0 0
        %1745 = vmatmul.mubr.bf16.gmra.mrb[0].mxu0 %v1707
        %v1746 = vpop.f32.mrb[0].mxu0
        %v1747 = vadd.f32 0.0, %v1746
        %v1748 = vpop.f32.mrb[0].mxu0
        %v1749 = vpop.f32.mrb[0].mxu0
        %v1750 = vpop.f32.mrb[0].mxu0
        %1751 = vdwg.mxu0
        %v1753 = vsel %vm409, %v1653, 0
        %v1756 = vsel %vm665, %v1600, 0
        %1758 = vmatprep.subr.bf16.mxu0 0
        %1759 = vmatpush1.bf16.msra.mxu0 %v1756
        %1760 = vmatprep.subr.bf16.mxu0 0
        %1761 = vmatpush1.bf16.msra.mxu0 0
        %1762 = vmatprep.subr.bf16.mxu0 0
        %1763 = vmatpush1.bf16.msra.mxu0 0
        %1764 = vmatprep.subr.bf16.mxu0 0
        %1765 = vmatpush1.bf16.msra.mxu0 0
        %1766 = vmatprep.subr.bf16.mxu0 0
        %1767 = vmatpush1.bf16.msra.mxu0 0
        %1768 = vmatprep.subr.bf16.mxu0 0
        %1769 = vmatpush1.bf16.msra.mxu0 0
        %1770 = vmatprep.subr.bf16.mxu0 0
        %1771 = vmatpush1.bf16.msra.mxu0 0
        %1772 = vmatprep.subr.bf16.mxu0 0
        %1773 = vmatpush1.bf16.msra.mxu0 0
        %1774 = vmatprep.subr.bf16.mxu0 0
        %1775 = vmatpush1.bf16.msra.mxu0 0
        %1776 = vmatprep.subr.bf16.mxu0 0
        %1777 = vmatpush1.bf16.msra.mxu0 0
        %1778 = vmatprep.subr.bf16.mxu0 0
        %1779 = vmatpush1.bf16.msra.mxu0 0
        %1780 = vmatprep.subr.bf16.mxu0 0
        %1781 = vmatpush1.bf16.msra.mxu0 0
        %1782 = vmatprep.subr.bf16.mxu0 0
        %1783 = vmatpush1.bf16.msra.mxu0 0
        %1784 = vmatprep.subr.bf16.mxu0 0
        %1785 = vmatpush1.bf16.msra.mxu0 0
        %1786 = vmatprep.subr.bf16.mxu0 0
        %1787 = vmatpush1.bf16.msra.mxu0 0
        %1788 = vmatprep.subr.bf16.mxu0 0
        %1789 = vmatpush1.bf16.msra.mxu0 0
        %1790 = vmatprep.mubr.bf16.mxu0 0
        %1791 = vmatmul.mubr.bf16.gmra.mrb[0].mxu0 %v1753
        %v1792 = vpop.f32.mrb[0].mxu0
        %v1793 = vadd.f32 %v1747, %v1792
        %v1794 = vpop.f32.mrb[0].mxu0
        %v1795 = vpop.f32.mrb[0].mxu0
        %v1796 = vpop.f32.mrb[0].mxu0
        %1797 = vdwg.mxu0
        %1798 = vrot.lane.b32.xlu0 %v1350, 48
        %v1799 = vpop.permute.xlu0 %1798
        %v1801 = vsel %vm409, %v1599, 0
        %v1804 = vsel %vm665, %v1799, 0
        %1806 = vmatprep.subr.bf16.mxu0 0
        %1807 = vmatpush1.bf16.msra.mxu0 %v1804
        %1808 = vmatprep.subr.bf16.mxu0 0
        %1809 = vmatpush1.bf16.msra.mxu0 0
        %1810 = vmatprep.subr.bf16.mxu0 0
        %1811 = vmatpush1.bf16.msra.mxu0 0
        %1812 = vmatprep.subr.bf16.mxu0 0
        %1813 = vmatpush1.bf16.msra.mxu0 0
        %1814 = vmatprep.subr.bf16.mxu0 0
        %1815 = vmatpush1.bf16.msra.mxu0 0
        %1816 = vmatprep.subr.bf16.mxu0 0
        %1817 = vmatpush1.bf16.msra.mxu0 0
        %1818 = vmatprep.subr.bf16.mxu0 0
        %1819 = vmatpush1.bf16.msra.mxu0 0
        %1820 = vmatprep.subr.bf16.mxu0 0
        %1821 = vmatpush1.bf16.msra.mxu0 0
        %1822 = vmatprep.subr.bf16.mxu0 0
        %1823 = vmatpush1.bf16.msra.mxu0 0
        %1824 = vmatprep.subr.bf16.mxu0 0
        %1825 = vmatpush1.bf16.msra.mxu0 0
        %1826 = vmatprep.subr.bf16.mxu0 0
        %1827 = vmatpush1.bf16.msra.mxu0 0
        %1828 = vmatprep.subr.bf16.mxu0 0
        %1829 = vmatpush1.bf16.msra.mxu0 0
        %1830 = vmatprep.subr.bf16.mxu0 0
        %1831 = vmatpush1.bf16.msra.mxu0 0
        %1832 = vmatprep.subr.bf16.mxu0 0
        %1833 = vmatpush1.bf16.msra.mxu0 0
        %1834 = vmatprep.subr.bf16.mxu0 0
        %1835 = vmatpush1.bf16.msra.mxu0 0
        %1836 = vmatprep.subr.bf16.mxu0 0
        %1837 = vmatpush1.bf16.msra.mxu0 0
        %1838 = vmatprep.mubr.bf16.mxu0 0
        %1839 = vmatmul.mubr.bf16.gmra.mrb[0].mxu0 %v1801
        %v1840 = vpop.f32.mrb[0].mxu0
        %v1841 = vadd.f32 0.0, %v1840
        %v1842 = vpop.f32.mrb[0].mxu0
        %v1843 = vpop.f32.mrb[0].mxu0
        %v1844 = vpop.f32.mrb[0].mxu0
        %1845 = vdwg.mxu0
        %v1846 = vmul.f32 %v1841, %v1596
        %v1847 = vpack.c.bf16 %v1846, %v1846
        %v1849 = vsel %vm409, %v1847, 0
        %v1852 = vsel %vm665, %v1602, 0
        %1854 = vmatprep.subr.bf16.mxu0 0
        %1855 = vmatpush1.bf16.msra.mxu0 %v1852
        %1856 = vmatprep.subr.bf16.mxu0 0
        %1857 = vmatpush1.bf16.msra.mxu0 0
        %1858 = vmatprep.subr.bf16.mxu0 0
        %1859 = vmatpush1.bf16.msra.mxu0 0
        %1860 = vmatprep.subr.bf16.mxu0 0
        %1861 = vmatpush1.bf16.msra.mxu0 0
        %1862 = vmatprep.subr.bf16.mxu0 0
        %1863 = vmatpush1.bf16.msra.mxu0 0
        %1864 = vmatprep.subr.bf16.mxu0 0
        %1865 = vmatpush1.bf16.msra.mxu0 0
        %1866 = vmatprep.subr.bf16.mxu0 0
        %1867 = vmatpush1.bf16.msra.mxu0 0
        %1868 = vmatprep.subr.bf16.mxu0 0
        %1869 = vmatpush1.bf16.msra.mxu0 0
        %1870 = vmatprep.subr.bf16.mxu0 0
        %1871 = vmatpush1.bf16.msra.mxu0 0
        %1872 = vmatprep.subr.bf16.mxu0 0
        %1873 = vmatpush1.bf16.msra.mxu0 0
        %1874 = vmatprep.subr.bf16.mxu0 0
        %1875 = vmatpush1.bf16.msra.mxu0 0
        %1876 = vmatprep.subr.bf16.mxu0 0
        %1877 = vmatpush1.bf16.msra.mxu0 0
        %1878 = vmatprep.subr.bf16.mxu0 0
        %1879 = vmatpush1.bf16.msra.mxu0 0
        %1880 = vmatprep.subr.bf16.mxu0 0
        %1881 = vmatpush1.bf16.msra.mxu0 0
        %1882 = vmatprep.subr.bf16.mxu0 0
        %1883 = vmatpush1.bf16.msra.mxu0 0
        %1884 = vmatprep.subr.bf16.mxu0 0
        %1885 = vmatpush1.bf16.msra.mxu0 0
        %1886 = vmatprep.mubr.bf16.mxu0 0
        %1887 = vmatmul.mubr.bf16.gmra.mrb[0].mxu0 %v1849
        %v1888 = vpop.f32.mrb[0].mxu0
        %v1889 = vadd.f32 0.0, %v1888
        %v1890 = vpop.f32.mrb[0].mxu0
        %v1891 = vpop.f32.mrb[0].mxu0
        %v1892 = vpop.f32.mrb[0].mxu0
        %1893 = vdwg.mxu0
        %v1894 = vadd.f32 %v1793, %v1889
        %v1896 = vrot.slane %v1599, 4
        %1897 = vrot.lane.b32.xlu0 %v1350, 40
        %v1898 = vpop.permute.xlu0 %1897
        %v1900 = vsel %vm409, %v1896, 0
        %v1903 = vsel %vm665, %v1898, 0
        %1905 = vmatprep.subr.bf16.mxu0 0
        %1906 = vmatpush1.bf16.msra.mxu0 %v1903
        %1907 = vmatprep.subr.bf16.mxu0 0
        %1908 = vmatpush1.bf16.msra.mxu0 0
        %1909 = vmatprep.subr.bf16.mxu0 0
        %1910 = vmatpush1.bf16.msra.mxu0 0
        %1911 = vmatprep.subr.bf16.mxu0 0
        %1912 = vmatpush1.bf16.msra.mxu0 0
        %1913 = vmatprep.subr.bf16.mxu0 0
        %1914 = vmatpush1.bf16.msra.mxu0 0
        %1915 = vmatprep.subr.bf16.mxu0 0
        %1916 = vmatpush1.bf16.msra.mxu0 0
        %1917 = vmatprep.subr.bf16.mxu0 0
        %1918 = vmatpush1.bf16.msra.mxu0 0
        %1919 = vmatprep.subr.bf16.mxu0 0
        %1920 = vmatpush1.bf16.msra.mxu0 0
        %1921 = vmatprep.subr.bf16.mxu0 0
        %1922 = vmatpush1.bf16.msra.mxu0 0
        %1923 = vmatprep.subr.bf16.mxu0 0
        %1924 = vmatpush1.bf16.msra.mxu0 0
        %1925 = vmatprep.subr.bf16.mxu0 0
        %1926 = vmatpush1.bf16.msra.mxu0 0
        %1927 = vmatprep.subr.bf16.mxu0 0
        %1928 = vmatpush1.bf16.msra.mxu0 0
        %1929 = vmatprep.subr.bf16.mxu0 0
        %1930 = vmatpush1.bf16.msra.mxu0 0
        %1931 = vmatprep.subr.bf16.mxu0 0
        %1932 = vmatpush1.bf16.msra.mxu0 0
        %1933 = vmatprep.subr.bf16.mxu0 0
        %1934 = vmatpush1.bf16.msra.mxu0 0
        %1935 = vmatprep.subr.bf16.mxu0 0
        %1936 = vmatpush1.bf16.msra.mxu0 0
        %1937 = vmatprep.mubr.bf16.mxu0 0
        %1938 = vmatmul.mubr.bf16.gmra.mrb[0].mxu0 %v1900
        %v1939 = vpop.f32.mrb[0].mxu0
        %v1940 = vadd.f32 0.0, %v1939
        %v1941 = vpop.f32.mrb[0].mxu0
        %v1942 = vpop.f32.mrb[0].mxu0
        %v1943 = vpop.f32.mrb[0].mxu0
        %1944 = vdwg.mxu0
        %v1945 = vmul.f32 %v1940, %v1597
        %v1946 = vpack.c.bf16 %v1945, %v1945
        %v1948 = vsel %vm409, %v1946, 0
        %v1951 = vsel %vm665, %v1603, 0
        %1953 = vmatprep.subr.bf16.mxu0 0
        %1954 = vmatpush1.bf16.msra.mxu0 %v1951
        %1955 = vmatprep.subr.bf16.mxu0 0
        %1956 = vmatpush1.bf16.msra.mxu0 0
        %1957 = vmatprep.subr.bf16.mxu0 0
        %1958 = vmatpush1.bf16.msra.mxu0 0
        %1959 = vmatprep.subr.bf16.mxu0 0
        %1960 = vmatpush1.bf16.msra.mxu0 0
        %1961 = vmatprep.subr.bf16.mxu0 0
        %1962 = vmatpush1.bf16.msra.mxu0 0
        %1963 = vmatprep.subr.bf16.mxu0 0
        %1964 = vmatpush1.bf16.msra.mxu0 0
        %1965 = vmatprep.subr.bf16.mxu0 0
        %1966 = vmatpush1.bf16.msra.mxu0 0
        %1967 = vmatprep.subr.bf16.mxu0 0
        %1968 = vmatpush1.bf16.msra.mxu0 0
        %1969 = vmatprep.subr.bf16.mxu0 0
        %1970 = vmatpush1.bf16.msra.mxu0 0
        %1971 = vmatprep.subr.bf16.mxu0 0
        %1972 = vmatpush1.bf16.msra.mxu0 0
        %1973 = vmatprep.subr.bf16.mxu0 0
        %1974 = vmatpush1.bf16.msra.mxu0 0
        %1975 = vmatprep.subr.bf16.mxu0 0
        %1976 = vmatpush1.bf16.msra.mxu0 0
        %1977 = vmatprep.subr.bf16.mxu0 0
        %1978 = vmatpush1.bf16.msra.mxu0 0
        %1979 = vmatprep.subr.bf16.mxu0 0
        %1980 = vmatpush1.bf16.msra.mxu0 0
        %1981 = vmatprep.subr.bf16.mxu0 0
        %1982 = vmatpush1.bf16.msra.mxu0 0
        %1983 = vmatprep.subr.bf16.mxu0 0
        %1984 = vmatpush1.bf16.msra.mxu0 0
        %1985 = vmatprep.mubr.bf16.mxu0 0
        %1986 = vmatmul.mubr.bf16.gmra.mrb[0].mxu0 %v1948
        %v1987 = vpop.f32.mrb[0].mxu0
        %v1988 = vadd.f32 0.0, %v1987
        %v1989 = vpop.f32.mrb[0].mxu0
        %v1990 = vpop.f32.mrb[0].mxu0
        %v1991 = vpop.f32.mrb[0].mxu0
        %1992 = vdwg.mxu0
        %v1993 = vadd.f32 %v1894, %v1988
        %v1994 = vld [vmem:[#allocation2 + $0x1c] sm:$0x1]
        %v1995 = vadd.f32 %v1262, %v1993
        %v1996 = vlaneseq
        %v1997 = vshrl.u32 %v1996, 7
        %v1998 = vsub.s32 0, %v1997
        %v1999 = vrot.slane %v1994, %v1998
        %v2000 = vadd.f32 %v1995, %v1999
        %v2001 = vld [vmem:[#allocation2 + $0x1a] sm:$0x1]
        %v2002 = vld [vmem:[#allocation2 + $0x1b] sm:$0x1]
        %v2003 = vld [vmem:[#allocation2 + $0x1d] sm:$0x1]
        %v2004 = vld [vmem:[#allocation2 + $0x1e] sm:$0x1]
        %v2005 = vsel %vm318, %v2000, 0.0
        %2006 = vadd.xlane.f32.xlu0 %v2005
        %v2007 = vpop.xlane.xlu0 %2006
        %v2008 = vmul.f32 %v2007, %v322
        %v2009 = vmul.f32 %v2000, %v2000
        %v2010 = vsel %vm318, %v2009, 0.0
        %2011 = vadd.xlane.f32.xlu0 %v2010
        %v2012 = vpop.xlane.xlu0 %2011
        %v2013 = vmul.f32 %v2012, %v322
        %v2014 = vmul.f32 %v2008, %v2008
        %v2015 = vsub.f32 %v2013, %v2014
        %v2016 = vsub.f32 %v2000, %v2008
        %v2017 = vadd.f32 %v2015, 1e-05
        %v2018 = vrsqrt.pop %v2017
        %v2019 = vmul.f32 %v2016, %v2018
        %v2020 = vlaneseq
        %v2021 = vshrl.u32 %v2020, 7
        %v2022 = vsub.s32 0, %v2021
        %v2023 = vrot.slane %v2001, %v2022
        %v2024 = vmul.f32 %v2019, %v2023
        %v2025 = vlaneseq
        %v2026 = vshrl.u32 %v2025, 7
        %v2027 = vsub.s32 0, %v2026
        %v2028 = vrot.slane %v2002, %v2027
        %v2029 = vadd.f32 %v2024, %v2028
        %v2030 = vpack.c.bf16 %v2029, %v2029
        %v2031 = vld [vmem:[#allocation4 + $0xd0] sm:$0xf]
        %v2032 = vld [vmem:[#allocation4 + $0xd4] sm:$0xf]
        %v2033 = vld [vmem:[#allocation4 + $0xd8] sm:$0xf]
        %v2034 = vld [vmem:[#allocation4 + $0xdc] sm:$0xf]
        %v2035 = vlaneseq
        %v2036 = vshrl.u32 %v2035, 7
        %v2037 = vsub.s32 0, %v2036
        %v2038 = vrot.slane %v2003, %v2037
        %v2043 = vunpack.c.l.b16 %v2031
        %v2044 = vunpack.c.l.b16 %v2032
        %v2045 = vunpack.c.l.b16 %v2033
        %v2046 = vunpack.c.l.b16 %v2034
        %v2047 = vpack.c.b16 %v2044, %v2043
        %v2048 = vpack.c.b16 %v2046, %v2045
        %v2052 = vsel %vm318, %v2030, 0
        %2054 = vmatprep.subr.bf16.mxu0 0
        %2055 = vmatpush1.bf16.msra.mxu0 %v2047
        %2056 = vmatprep.subr.bf16.mxu0 0
        %2057 = vmatpush1.bf16.msra.mxu0 %v2048
        %2058 = vmatprep.subr.bf16.mxu0 0
        %2059 = vmatpush1.bf16.msra.mxu0 0
        %2060 = vmatprep.subr.bf16.mxu0 0
        %2061 = vmatpush1.bf16.msra.mxu0 0
        %2062 = vmatprep.subr.bf16.mxu0 0
        %2063 = vmatpush1.bf16.msra.mxu0 0
        %2064 = vmatprep.subr.bf16.mxu0 0
        %2065 = vmatpush1.bf16.msra.mxu0 0
        %2066 = vmatprep.subr.bf16.mxu0 0
        %2067 = vmatpush1.bf16.msra.mxu0 0
        %2068 = vmatprep.subr.bf16.mxu0 0
        %2069 = vmatpush1.bf16.msra.mxu0 0
        %2070 = vmatprep.subr.bf16.mxu0 0
        %2071 = vmatpush1.bf16.msra.mxu0 0
        %2072 = vmatprep.subr.bf16.mxu0 0
        %2073 = vmatpush1.bf16.msra.mxu0 0
        %2074 = vmatprep.subr.bf16.mxu0 0
        %2075 = vmatpush1.bf16.msra.mxu0 0
        %2076 = vmatprep.subr.bf16.mxu0 0
        %2077 = vmatpush1.bf16.msra.mxu0 0
        %2078 = vmatprep.subr.bf16.mxu0 0
        %2079 = vmatpush1.bf16.msra.mxu0 0
        %2080 = vmatprep.subr.bf16.mxu0 0
        %2081 = vmatpush1.bf16.msra.mxu0 0
        %2082 = vmatprep.subr.bf16.mxu0 0
        %2083 = vmatpush1.bf16.msra.mxu0 0
        %2084 = vmatprep.subr.bf16.mxu0 0
        %2085 = vmatpush1.bf16.msra.mxu0 0
        %2086 = vmatprep.mubr.bf16.mxu0 0
        %2087 = vmatmul.mubr.bf16.gmra.mrb[0].mxu0 %v2052
        %v2088 = vpop.f32.mrb[0].mxu0
        %v2089 = vadd.f32 %v2038, %v2088
        %v2090 = vpop.f32.mrb[0].mxu0
        %v2091 = vpop.f32.mrb[0].mxu0
        %v2092 = vpop.f32.mrb[0].mxu0
        %2093 = vdwg.mxu0
        %v2094 = vmax.f32 %v2089, 0.0
        %v2095 = vpack.c.bf16 %v2094, %v2094
        %v2096 = vld [vmem:[#allocation4 + $0xe0] sm:$0xf]
        %v2097 = vld [vmem:[#allocation4 + $0xe4] sm:$0xf]
        %v2098 = vld [vmem:[#allocation4 + $0xe8] sm:$0xf]
        %v2099 = vld [vmem:[#allocation4 + $0xec] sm:$0xf]
        %v2100 = vld [vmem:[#allocation4 + $0xf0] sm:$0xf]
        %v2101 = vld [vmem:[#allocation4 + $0xf4] sm:$0xf]
        %v2102 = vld [vmem:[#allocation4 + $0xf8] sm:$0xf]
        %v2103 = vld [vmem:[#allocation4 + $0xfc] sm:$0xf]
        %v2104 = vld [vmem:[#allocation4 + $0x100] sm:$0xf]
        %v2105 = vld [vmem:[#allocation4 + $0x104] sm:$0xf]
        %v2106 = vld [vmem:[#allocation4 + $0x108] sm:$0xf]
        %v2107 = vld [vmem:[#allocation4 + $0x10c] sm:$0xf]
        %v2108 = vld [vmem:[#allocation4 + $0x110] sm:$0xf]
        %v2109 = vld [vmem:[#allocation4 + $0x114] sm:$0xf]
        %v2110 = vld [vmem:[#allocation4 + $0x118] sm:$0xf]
        %v2111 = vld [vmem:[#allocation4 + $0x11c] sm:$0xf]
        %v2128 = vunpack.c.l.b16 %v2096
        %v2129 = vunpack.c.l.b16 %v2097
        %v2130 = vunpack.c.l.b16 %v2098
        %v2131 = vunpack.c.l.b16 %v2099
        %v2132 = vunpack.c.l.b16 %v2100
        %v2133 = vunpack.c.l.b16 %v2101
        %v2134 = vunpack.c.l.b16 %v2102
        %v2135 = vunpack.c.l.b16 %v2103
        %v2136 = vunpack.c.l.b16 %v2104
        %v2137 = vunpack.c.l.b16 %v2105
        %v2138 = vunpack.c.l.b16 %v2106
        %v2139 = vunpack.c.l.b16 %v2107
        %v2140 = vunpack.c.l.b16 %v2108
        %v2141 = vunpack.c.l.b16 %v2109
        %v2142 = vunpack.c.l.b16 %v2110
        %v2143 = vunpack.c.l.b16 %v2111
        %v2144 = vpack.c.b16 %v2129, %v2128
        %v2145 = vpack.c.b16 %v2131, %v2130
        %v2146 = vpack.c.b16 %v2133, %v2132
        %v2147 = vpack.c.b16 %v2135, %v2134
        %v2148 = vpack.c.b16 %v2137, %v2136
        %v2149 = vpack.c.b16 %v2139, %v2138
        %v2150 = vpack.c.b16 %v2141, %v2140
        %v2151 = vpack.c.b16 %v2143, %v2142
        %2160 = vmatprep.subr.bf16.mxu0 0
        %2161 = vmatpush1.bf16.msra.mxu0 %v2144
        %2162 = vmatprep.subr.bf16.mxu0 0
        %2163 = vmatpush1.bf16.msra.mxu0 %v2145
        %2164 = vmatprep.subr.bf16.mxu0 0
        %2165 = vmatpush1.bf16.msra.mxu0 %v2146
        %2166 = vmatprep.subr.bf16.mxu0 0
        %2167 = vmatpush1.bf16.msra.mxu0 %v2147
        %2168 = vmatprep.subr.bf16.mxu0 0
        %2169 = vmatpush1.bf16.msra.mxu0 %v2148
        %2170 = vmatprep.subr.bf16.mxu0 0
        %2171 = vmatpush1.bf16.msra.mxu0 %v2149
        %2172 = vmatprep.subr.bf16.mxu0 0
        %2173 = vmatpush1.bf16.msra.mxu0 %v2150
        %2174 = vmatprep.subr.bf16.mxu0 0
        %2175 = vmatpush1.bf16.msra.mxu0 %v2151
        %2176 = vmatprep.subr.bf16.mxu0 0
        %2177 = vmatpush1.bf16.msra.mxu0 0
        %2178 = vmatprep.subr.bf16.mxu0 0
        %2179 = vmatpush1.bf16.msra.mxu0 0
        %2180 = vmatprep.subr.bf16.mxu0 0
        %2181 = vmatpush1.bf16.msra.mxu0 0
        %2182 = vmatprep.subr.bf16.mxu0 0
        %2183 = vmatpush1.bf16.msra.mxu0 0
        %2184 = vmatprep.subr.bf16.mxu0 0
        %2185 = vmatpush1.bf16.msra.mxu0 0
        %2186 = vmatprep.subr.bf16.mxu0 0
        %2187 = vmatpush1.bf16.msra.mxu0 0
        %2188 = vmatprep.subr.bf16.mxu0 0
        %2189 = vmatpush1.bf16.msra.mxu0 0
        %2190 = vmatprep.subr.bf16.mxu0 0
        %2191 = vmatpush1.bf16.msra.mxu0 0
        %2192 = vmatprep.mubr.bf16.mxu0 0
        %2193 = vmatmul.mubr.bf16.gmra.mrb[0].mxu0 %v2095
        %v2194 = vpop.f32.mrb[0].mxu0
        %v2195 = vadd.f32 0.0, %v2194
        %v2196 = vpop.f32.mrb[0].mxu0
        %v2197 = vpop.f32.mrb[0].mxu0
        %v2198 = vpop.f32.mrb[0].mxu0
        %2199 = vdwg.mxu0
        %v2200 = vadd.f32 %v2000, %v2195
        %v2201 = vlaneseq
        %v2202 = vshrl.u32 %v2201, 7
        %v2203 = vsub.s32 0, %v2202
        %v2204 = vrot.slane %v2004, %v2203
        %v2205 = vadd.f32 %v2200, %v2204
        %v2206 = vld [vmem:[#allocation2 + $0x20] sm:$0x1]
        %v2207 = vld [vmem:[#allocation2 + $0x21] sm:$0x1]
        %v2208 = vld [vmem:[#allocation2 + $0x22] sm:$0x1]
        %v2209 = vsel %vm318, %v2205, 0.0
        %2210 = vadd.xlane.f32.xlu0 %v2209
        %v2211 = vpop.xlane.xlu0 %2210
        %v2212 = vmul.f32 %v2211, %v322
        %v2213 = vmul.f32 %v2205, %v2205
        %v2214 = vsel %vm318, %v2213, 0.0
        %2215 = vadd.xlane.f32.xlu0 %v2214
        %v2216 = vpop.xlane.xlu0 %2215
        %v2217 = vmul.f32 %v2216, %v322
        %v2218 = vmul.f32 %v2212, %v2212
        %v2219 = vsub.f32 %v2217, %v2218
        %v2220 = vsub.f32 %v2205, %v2212
        %v2221 = vadd.f32 %v2219, 1e-05
        %v2222 = vrsqrt.pop %v2221
        %v2223 = vmul.f32 %v2220, %v2222
        %v2224 = vlaneseq
        %v2225 = vshrl.u32 %v2224, 7
        %v2226 = vsub.s32 0, %v2225
        %v2227 = vrot.slane %v2206, %v2226
        %v2228 = vmul.f32 %v2223, %v2227
        %v2229 = vlaneseq
        %v2230 = vshrl.u32 %v2229, 7
        %v2231 = vsub.s32 0, %v2230
        %v2232 = vrot.slane %v2207, %v2231
        %v2233 = vadd.f32 %v2228, %v2232
        %v2234 = vpack.c.bf16 %v2233, %v2233
        %v2235 = vld [vmem:[#allocation4 + $0x120] sm:$0xf]
        %v2236 = vld [vmem:[#allocation4 + $0x124] sm:$0xf]
        %v2237 = vld [vmem:[#allocation4 + $0x128] sm:$0xf]
        %v2238 = vld [vmem:[#allocation4 + $0x12c] sm:$0xf]
        %v2239 = vlaneseq
        %v2240 = vshrl.u32 %v2239, 7
        %v2241 = vsub.s32 0, %v2240
        %v2242 = vrot.slane %v2208, %v2241
        %v2247 = vunpack.c.l.b16 %v2235
        %v2248 = vunpack.c.l.b16 %v2236
        %v2249 = vunpack.c.l.b16 %v2237
        %v2250 = vunpack.c.l.b16 %v2238
        %v2251 = vpack.c.b16 %v2248, %v2247
        %v2252 = vpack.c.b16 %v2250, %v2249
        %v2256 = vsel %vm318, %v2234, 0
        %2258 = vmatprep.subr.bf16.mxu0 0
        %2259 = vmatpush1.bf16.msra.mxu0 %v2251
        %2260 = vmatprep.subr.bf16.mxu0 0
        %2261 = vmatpush1.bf16.msra.mxu0 %v2252
        %2262 = vmatprep.subr.bf16.mxu0 0
        %2263 = vmatpush1.bf16.msra.mxu0 0
        %2264 = vmatprep.subr.bf16.mxu0 0
        %2265 = vmatpush1.bf16.msra.mxu0 0
        %2266 = vmatprep.subr.bf16.mxu0 0
        %2267 = vmatpush1.bf16.msra.mxu0 0
        %2268 = vmatprep.subr.bf16.mxu0 0
        %2269 = vmatpush1.bf16.msra.mxu0 0
        %2270 = vmatprep.subr.bf16.mxu0 0
        %2271 = vmatpush1.bf16.msra.mxu0 0
        %2272 = vmatprep.subr.bf16.mxu0 0
        %2273 = vmatpush1.bf16.msra.mxu0 0
        %2274 = vmatprep.subr.bf16.mxu0 0
        %2275 = vmatpush1.bf16.msra.mxu0 0
        %2276 = vmatprep.subr.bf16.mxu0 0
        %2277 = vmatpush1.bf16.msra.mxu0 0
        %2278 = vmatprep.subr.bf16.mxu0 0
        %2279 = vmatpush1.bf16.msra.mxu0 0
        %2280 = vmatprep.subr.bf16.mxu0 0
        %2281 = vmatpush1.bf16.msra.mxu0 0
        %2282 = vmatprep.subr.bf16.mxu0 0
        %2283 = vmatpush1.bf16.msra.mxu0 0
        %2284 = vmatprep.subr.bf16.mxu0 0
        %2285 = vmatpush1.bf16.msra.mxu0 0
        %2286 = vmatprep.subr.bf16.mxu0 0
        %2287 = vmatpush1.bf16.msra.mxu0 0
        %2288 = vmatprep.subr.bf16.mxu0 0
        %2289 = vmatpush1.bf16.msra.mxu0 0
        %2290 = vmatprep.mubr.bf16.mxu0 0
        %2291 = vmatmul.mubr.bf16.gmra.mrb[0].mxu0 %v2256
        %v2292 = vpop.f32.mrb[0].mxu0
        %v2293 = vadd.f32 %v2242, %v2292
        %v2294 = vpop.f32.mrb[0].mxu0
        %v2295 = vpop.f32.mrb[0].mxu0
        %v2296 = vpop.f32.mrb[0].mxu0
        %2297 = vdwg.mxu0
        %2298 = vst [vmem:[%s195] sm:$0xff] %v2293
        %p2299 = scmp.lt.s32.totalorder %s16, 1
        %s2300 = scalar_select %p2299, %s16, 1
        %s2301 = smul.addr %s2300, 8
        %s2302 = scalar_lea.vmem %s3, %s2301
        // Predicated region
        $region41: #{transformer_forward.1} parent=31 // pred_check
          %p2303 = pneg %p102
        $region42: #{transformer_forward.1} parent=31 // pred_check_branch
          %2305 = sbr.rel (%p2303) target = $region44
        $region43: #{transformer_forward.1} parent=31 // pred_region
          _
        $region44: #{transformer_forward.1} parent=31 // pred_fallthru
          _
      $region32: #{transformer_forward.1} parent=5 // pred_fallthru
        _
      %p2306 = scmp.le.s32.totalorder 2, %s11
      // Predicated region
      $region45: #{transformer_forward.1} parent=5 // pred_check
        %p2307 = pneg %p2306
      $region46: #{transformer_forward.1} parent=5 // pred_check_branch
        %2309 = sbr.rel (%p2307) target = $region48
      $region47: #{transformer_forward.1} parent=5 // pred_region
        %s2310 = ssub.s32 %s11, 2
        // Predicated region
        $region49: #{transformer_forward.1} parent=47 // pred_check
          %p2311 = pneg %p108
        $region50: #{transformer_forward.1} parent=47 // pred_check_branch
          %2313 = sbr.rel (%p2311) target = $region52
        $region51: #{transformer_forward.1} parent=47 // pred_region
          %p2314 = scmp.lt.s32.totalorder %s17, 1
          %s2315 = scalar_select %p2314, %s17, 1
          %s2316 = smul.addr %s2315, 8
          %s2317 = scalar_lea.vmem %s3, %s2316
        $region52: #{transformer_forward.1} parent=47 // pred_fallthru
          _
      $region48: #{transformer_forward.1} parent=5 // pred_fallthru
        _
    $region6: #{transformer_forward.1} parent=1 // loop_footer
      %s15 = sadd.s32 1, %s11
    $region7: #{transformer_forward.1} parent=1 // loop_footer_branch
      %10 = sbr.rel target = $region3
    $region8: #{transformer_forward.1} parent=1 // loop_exit
      _
    %2318 = vsyncpa [#allocation3], 1
    %s2319 = scalar_lea.sflag [#allocation3], 1
    %2320 = vsyncpa %s2319, 1
    %2321 = vsyncpa [#allocation5], 1

</llo_original>
